<compile_context>
chip_gen: v7x
topology: tpu7x:2x2x1
jax: 0.10.0
libtpu: 0.0.40
codegen_flags: <defaults>
</compile_context>

<pallas_src>
import functools

import jax
import jax.numpy as jnp
from jax.experimental import pallas as pl
from jax.experimental.pallas import tpu as pltpu


def _round_up(x, m):
    return (x + m - 1) // m * m


# ---------------------------------------------------------------------------
# Pallas kernels
# ---------------------------------------------------------------------------
def _conv_kernel(a_ref, b_ref, bias_ref, o_ref, stat_ref, acc_ref,
                 *, apply_act, slope):
    """K-tiled matmul with f32 accumulator; epilogue adds bias, optional
    LeakyReLU, casts to the output dtype and emits per-channel sum/sumsq."""
    k = pl.program_id(1)

    @pl.when(k == 0)
    def _():
        acc_ref[...] = jnp.zeros_like(acc_ref)

    acc_ref[...] += jnp.dot(a_ref[...], b_ref[...],
                            preferred_element_type=jnp.float32)

    @pl.when(k == pl.num_programs(1) - 1)
    def _():
        y = acc_ref[...] + bias_ref[...]
        if apply_act:
            y = jnp.where(y >= 0.0, y, slope * y)
        o_ref[...] = y.astype(o_ref.dtype)
        # fused BatchNorm statistics (padded rows are exact zeros for the
        # bias-free BN layers, so they do not perturb the sums)
        s = jnp.sum(y, axis=0, keepdims=True)
        sq = jnp.sum(y * y, axis=0, keepdims=True)
        row = jax.lax.broadcasted_iota(jnp.int32, stat_ref.shape, 0)
        stat_ref[...] = jnp.where(row == 0, s, 0.0) + jnp.where(row == 1, sq, 0.0)


def _bn_lrelu_kernel(x_ref, scale_ref, shift_ref, o_ref, *, slope):
    """Fused BatchNorm (precomputed scale/shift) + LeakyReLU; math in f32,
    output stored in o_ref.dtype (bf16)."""
    y = x_ref[...].astype(jnp.float32) * scale_ref[...] + shift_ref[...]
    o_ref[...] = jnp.where(y >= 0.0, y, slope * y).astype(o_ref.dtype)


# ---------------------------------------------------------------------------
# Layer wrappers
# ---------------------------------------------------------------------------
def conv2d_pallas(x_nhwc, w_oihw, bias, stride, pad=1, apply_act=False,
                  slope=0.2, out_dtype=jnp.bfloat16, tm_max=512):
    """Conv2d (k=4) as im2col + Pallas matmul (bf16 in, f32 acc).

    Returns (y_nhwc, ch_sum, ch_sumsq) where the per-channel sums are computed
    in the matmul epilogue (for downstream fused BatchNorm)."""
    N, H, W, C = x_nhwc.shape
    OC, IC, KH, KW = w_oihw.shape
    assert IC == C and KH == 4 and KW == 4

    xp = jnp.pad(x_nhwc, ((0, 0), (pad, pad), (pad, pad), (0, 0)))
    Hp, Wp = H + 2 * pad, W + 2 * pad

    if stride == 2 and Hp % 2 == 0 and Wp % 2 == 0:
        # 2x2 space-to-depth: the k=4 / s=2 conv becomes k=2 / s=1 over 4*C
        # channels, so im2col duplicates the activations 4x instead of 16x.
        Hs, Ws = Hp // 2, Wp // 2
        xs = xp.reshape(N, Hs, 2, Ws, 2, C)
        xs = jnp.transpose(xs, (0, 1, 3, 2, 4, 5)).reshape(N, Hs, Ws, 4 * C)
        OH, OW = Hs - 1, Ws - 1
        patches = [xs[:, i:i + OH, j:j + OW, :]
                   for i in range(2) for j in range(2)]
        cols = jnp.concatenate(patches, axis=-1).reshape(N * OH * OW, 16 * C)
        # w[oc, ic, 2*i+sh, 2*j+sw] -> order (i, j, sh, sw, ic, oc)
        w6 = w_oihw.reshape(OC, IC, 2, 2, 2, 2)
        wmat = jnp.transpose(w6, (2, 4, 3, 5, 1, 0)).reshape(16 * IC, OC)
    else:
        OH = (Hp - KH) // stride + 1
        OW = (Wp - KW) // stride + 1
        patches = [xp[:, i:i + stride * OH:stride, j:j + stride * OW:stride, :]
                   for i in range(KH) for j in range(KW)]
        cols = jnp.concatenate(patches, axis=-1).reshape(N * OH * OW, KH * KW * C)
        wmat = jnp.transpose(w_oihw, (2, 3, 1, 0)).reshape(KH * KW * IC, OC)

    M, K = cols.shape
    tm = min(tm_max, _round_up(M, 8))
    Mp = _round_up(M, tm)
    Kp = _round_up(K, 128)
    tk = next(c for c in (512, 256, 128) if Kp % c == 0)
    OCp = _round_up(OC, 128)

    a = jnp.pad(cols.astype(jnp.bfloat16), ((0, Mp - M), (0, Kp - K)))
    b = jnp.pad(wmat.astype(jnp.bfloat16), ((0, Kp - K), (0, OCp - OC)))
    if bias is None:
        bias = jnp.zeros((OC,), jnp.float32)
    bvec = jnp.pad(bias.astype(jnp.float32), (0, OCp - OC)).reshape(1, OCp)

    n_m, n_k = Mp // tm, Kp // tk
    out, stats = pl.pallas_call(
        functools.partial(_conv_kernel, apply_act=apply_act, slope=slope),
        out_shape=(jax.ShapeDtypeStruct((Mp, OCp), out_dtype),
                   jax.ShapeDtypeStruct((n_m * 8, OCp), jnp.float32)),
        grid_spec=pltpu.PrefetchScalarGridSpec(
            num_scalar_prefetch=0,
            grid=(n_m, n_k),
            in_specs=[
                pl.BlockSpec((tm, tk), lambda i, k: (i, k)),
                pl.BlockSpec((tk, OCp), lambda i, k: (k, 0)),
                pl.BlockSpec((1, OCp), lambda i, k: (0, 0)),
            ],
            out_specs=[
                pl.BlockSpec((tm, OCp), lambda i, k: (i, 0)),
                pl.BlockSpec((8, OCp), lambda i, k: (i, 0)),
            ],
            scratch_shapes=[pltpu.VMEM((tm, OCp), jnp.float32)],
        ),
        compiler_params=pltpu.CompilerParams(
            dimension_semantics=("parallel", "arbitrary")),
    )(a, b, bvec)

    y = out[:M, :OC].reshape(N, OH, OW, OC)
    st = stats.reshape(n_m, 8, OCp).sum(axis=0)
    return y, st[0, :OC], st[1, :OC]


def bn_lrelu_pallas(x_nhwc, scale, shift, slope=0.2, out_dtype=jnp.bfloat16,
                    tm_max=1024):
    """Apply precomputed BatchNorm scale/shift + LeakyReLU(0.2) (bf16 out)."""
    N, H, W, C = x_nhwc.shape
    M = N * H * W
    tm = min(tm_max, _round_up(M, 8))
    Mp = _round_up(M, tm)
    Cp = _round_up(C, 128)
    xf = jnp.pad(x_nhwc.reshape(M, C), ((0, Mp - M), (0, Cp - C)))
    sc = jnp.pad(scale.astype(jnp.float32), (0, Cp - C)).reshape(1, Cp)
    sh = jnp.pad(shift.astype(jnp.float32), (0, Cp - C)).reshape(1, Cp)

    out = pl.pallas_call(
        functools.partial(_bn_lrelu_kernel, slope=slope),
        out_shape=jax.ShapeDtypeStruct((Mp, Cp), out_dtype),
        grid_spec=pltpu.PrefetchScalarGridSpec(
            num_scalar_prefetch=0,
            grid=(Mp // tm,),
            in_specs=[
                pl.BlockSpec((tm, Cp), lambda i: (i, 0)),
                pl.BlockSpec((1, Cp), lambda i: (0, 0)),
                pl.BlockSpec((1, Cp), lambda i: (0, 0)),
            ],
            out_specs=pl.BlockSpec((tm, Cp), lambda i: (i, 0)),
        ),
        compiler_params=pltpu.CompilerParams(dimension_semantics=("parallel",)),
    )(xf, sc, sh)
    return out[:M, :C].reshape(N, H, W, C)


# ---------------------------------------------------------------------------
# Model: parameter init + forward
# ---------------------------------------------------------------------------
def make_layer_specs(nc, ndf, n_layers):
    specs = [dict(cin=nc, cout=ndf, stride=2, bias=True, bn=False, act=True)]
    ndf_mult = 1
    for n in range(1, n_layers):
        ndf_mult_prev = ndf_mult
        ndf_mult = min(2 ** n, 8)
        specs.append(dict(cin=ndf * ndf_mult_prev, cout=ndf * ndf_mult,
                          stride=2, bias=False, bn=True, act=True))
    ndf_mult_prev = ndf_mult
    ndf_mult = min(2 ** n_layers, 8)
    specs.append(dict(cin=ndf * ndf_mult_prev, cout=ndf * ndf_mult,
                      stride=1, bias=False, bn=True, act=True))
    specs.append(dict(cin=ndf * ndf_mult, cout=1,
                      stride=1, bias=True, bn=False, act=False))
    return specs


def init_params(key, nc=3, ndf=64, n_layers=4):
    # TODO(synk): checkpoint loading (torch.load of params_d/params) is not
    # translatable; weights are initialized deterministically in-script.
    params = []
    for s in make_layer_specs(nc, ndf, n_layers):
        key, kw, kb = jax.random.split(key, 3)
        w = jax.random.normal(kw, (s['cout'], s['cin'], 4, 4), jnp.float32) * 0.05
        b = (jax.random.normal(kb, (s['cout'],), jnp.float32) * 0.05
             if s['bias'] else None)
        gamma = jnp.ones((s['cout'],), jnp.float32) if s['bn'] else None
        beta = jnp.zeros((s['cout'],), jnp.float32) if s['bn'] else None
        params.append(dict(w=w, b=b, gamma=gamma, beta=beta, **s))
    return params


def discriminator_forward(params, x_nchw, eps=1e-5):
    # x is NCHW (PyTorch); transposed to NHWC for the kernels, back at the end.
    x = jnp.transpose(x_nchw, (0, 2, 3, 1)).astype(jnp.bfloat16)
    n = len(params)
    for idx, p in enumerate(params):
        is_last = idx == n - 1
        fuse_act = p['act'] and not p['bn']  # first conv fuses LeakyReLU
        y, ch_sum, ch_sumsq = conv2d_pallas(
            x, p['w'], p['b'], p['stride'], pad=1, apply_act=fuse_act,
            out_dtype=jnp.float32 if is_last else jnp.bfloat16)
        if p['bn']:
            # training-mode BatchNorm (biased batch variance) from fused stats
            count = y.shape[0] * y.shape[1] * y.shape[2]
            mean = ch_sum / count
            var = jnp.maximum(ch_sumsq / count - mean * mean, 0.0)
            scale = p['gamma'] * jax.lax.rsqrt(var + eps)
            shift = p['beta'] - mean * scale
            y = bn_lrelu_pallas(y, scale, shift)
        x = y
    return jnp.transpose(x, (0, 3, 1, 2)).astype(jnp.float32)


# ---------------------------------------------------------------------------
# Pure-JAX reference (same math, XLA conv, f32) for a correctness check
# ---------------------------------------------------------------------------
def reference_forward(params, x_nchw):
    x = x_nchw.astype(jnp.float32)
    for p in params:
        x = jax.lax.conv_general_dilated(
            x, p['w'], window_strides=(p['stride'], p['stride']),
            padding=((1, 1), (1, 1)),
            dimension_numbers=('NCHW', 'OIHW', 'NCHW'),
            precision=jax.lax.Precision.HIGHEST)
        if p['b'] is not None:
            x = x + p['b'][None, :, None, None]
        if p['bn']:
            mean = jnp.mean(x, axis=(0, 2, 3), keepdims=True)
            var = jnp.mean(jnp.square(x - mean), axis=(0, 2, 3), keepdims=True)
            x = ((x - mean) * jax.lax.rsqrt(var + 1e-5)
                 * p['gamma'][None, :, None, None] + p['beta'][None, :, None, None])
        if p['act']:
            x = jnp.where(x >= 0.0, x, 0.2 * x)
    return x


if __name__ == "__main__":
    key = jax.random.PRNGKey(0)
    key, kx, kp = jax.random.split(key, 3)

    # small config consistent with the module (nc=3, ndf=16, n_layers=3)
    nc, ndf, n_layers = 3, 16, 3
    x = jax.random.normal(kx, (2, nc, 32, 32), jnp.float32)
    params = init_params(kp, nc=nc, ndf=ndf, n_layers=n_layers)

    fwd = jax.jit(lambda inp: discriminator_forward(params, inp))
    out = jax.block_until_ready(fwd(x))

    ref = jax.block_until_ready(reference_forward(params, x))
    assert out.shape == ref.shape, (out.shape, ref.shape)
    # bf16 activations / bf16 MXU operands end-to-end -> compare at 1e-1
    assert jnp.allclose(out, ref, atol=1e-1, rtol=1e-1), \
        float(jnp.max(jnp.abs(out - ref)))

    print("KERNEL_OK")
</pallas_src>

<mosaic_0001>
module attributes {stable_mosaic.version = 11 : i64} {
  func.func @_conv_kernel(%arg0: i32, %arg1: i32, %arg2: memref<512x128xbf16, #tpu.memory_space<vmem>>, %arg3: memref<128x128xbf16, #tpu.memory_space<vmem>>, %arg4: memref<1x128xf32, #tpu.memory_space<vmem>>, %arg5: memref<512x128xbf16, #tpu.memory_space<vmem>>, %arg6: memref<8x128xf32, #tpu.memory_space<vmem>>, %arg7: memref<512x128xf32, #tpu.memory_space<vmem>>) attributes {dimension_semantics = [#tpu.dimension_semantics<parallel>, #tpu.dimension_semantics<arbitrary>], iteration_bounds = array<i64: 1, 1>, scalar_prefetch = 0 : i64, scratch_operands = 1 : i64, tpu.core_type = #tpu.core_type<tc>, window_params = [{transform_indices = @transform_0, window_bounds = array<i64: 512, 128>}, {transform_indices = @transform_1, window_bounds = array<i64: 128, 128>}, {pipeline_mode = #tpu.pipeline_mode<synchronous>, transform_indices = @transform_2, window_bounds = array<i64: 1, 128>}, {transform_indices = @transform_3, window_bounds = array<i64: 512, 128>}, {transform_indices = @transform_4, window_bounds = array<i64: 8, 128>}]} {
    %c0_i32 = arith.constant 0 : i32
    %0 = arith.cmpi eq, %arg1, %c0_i32 : i32
    %1 = arith.extui %0 : i1 to i32
    %c0_i32_0 = arith.constant 0 : i32
    %2 = arith.cmpi ne, %1, %c0_i32_0 : i32
    scf.if %2 {
      %cst_10 = arith.constant 0.000000e+00 : f32
      %12 = vector.broadcast %cst_10 : f32 to vector<512x128xf32>
      %c0_11 = arith.constant 0 : index
      %c0_12 = arith.constant 0 : index
      %13 = vector.load %arg7[%c0_11, %c0_12] : memref<512x128xf32, #tpu.memory_space<vmem>>, vector<512x128xf32>
      tpu.vector_store %arg7[%c0_11, %c0_12], %12 {strides = array<i32>} : memref<512x128xf32, #tpu.memory_space<vmem>>, vector<512x128xf32>,
    } else {
    }
    %c0 = arith.constant 0 : index
    %c0_1 = arith.constant 0 : index
    %3 = vector.load %arg7[%c0, %c0_1] : memref<512x128xf32, #tpu.memory_space<vmem>>, vector<512x128xf32>
    %c0_2 = arith.constant 0 : index
    %c0_3 = arith.constant 0 : index
    %4 = vector.load %arg2[%c0_2, %c0_3] : memref<512x128xbf16, #tpu.memory_space<vmem>>, vector<512x128xbf16>
    %c0_4 = arith.constant 0 : index
    %c0_5 = arith.constant 0 : index
    %5 = vector.load %arg3[%c0_4, %c0_5] : memref<128x128xbf16, #tpu.memory_space<vmem>>, vector<128x128xbf16>
    %cst = arith.constant dense<0.000000e+00> : vector<512x128xf32>
    %6 = tpu.matmul %4, %5, %cst {dimension_numbers = #tpu.dot_dimension_numbers<[1], [0], [0], [1], [0, 0, 1, 1], [], []>} : vector<512x128xbf16>, vector<128x128xbf16>, vector<512x128xf32> -> vector<512x128xf32>
    %7 = arith.addf %3, %6 : vector<512x128xf32>
    %c0_6 = arith.constant 0 : index
    %c0_7 = arith.constant 0 : index
    %8 = vector.load %arg7[%c0_6, %c0_7] : memref<512x128xf32, #tpu.memory_space<vmem>>, vector<512x128xf32>
    tpu.vector_store %arg7[%c0_6, %c0_7], %7 {strides = array<i32>} : memref<512x128xf32, #tpu.memory_space<vmem>>, vector<512x128xf32>,
    %c0_i32_8 = arith.constant 0 : i32
    %9 = arith.cmpi eq, %arg1, %c0_i32_8 : i32
    %10 = arith.extui %9 : i1 to i32
    %c0_i32_9 = arith.constant 0 : i32
    %11 = arith.cmpi ne, %10, %c0_i32_9 : i32
    scf.if %11 {
      %c0_10 = arith.constant 0 : index
      %c0_11 = arith.constant 0 : index
      %12 = vector.load %arg7[%c0_10, %c0_11] : memref<512x128xf32, #tpu.memory_space<vmem>>, vector<512x128xf32>
      %c0_12 = arith.constant 0 : index
      %c0_13 = arith.constant 0 : index
      %13 = vector.load %arg4[%c0_12, %c0_13] : memref<1x128xf32, #tpu.memory_space<vmem>>, vector<1x128xf32>
      %14 = vector.broadcast %13 : vector<1x128xf32> to vector<512x128xf32>
      %15 = arith.addf %12, %14 : vector<512x128xf32>
      %cst_14 = arith.constant 0.000000e+00 : f32
      %16 = vector.broadcast %cst_14 : f32 to vector<512x128xf32>
      %17 = arith.cmpf oge, %15, %16 : vector<512x128xf32>
      %cst_15 = arith.constant 2.000000e-01 : f32
      %18 = vector.broadcast %cst_15 : f32 to vector<512x128xf32>
      %19 = arith.mulf %18, %15 : vector<512x128xf32>
      %20 = arith.select %17, %15, %19 : vector<512x128xi1>, vector<512x128xf32>
      %21 = arith.truncf %20 : vector<512x128xf32> to vector<512x128xbf16>
      %c0_16 = arith.constant 0 : index
      %c0_17 = arith.constant 0 : index
      %22 = vector.load %arg5[%c0_16, %c0_17] : memref<512x128xbf16, #tpu.memory_space<vmem>>, vector<512x128xbf16>
      tpu.vector_store %arg5[%c0_16, %c0_17], %21 {strides = array<i32>} : memref<512x128xbf16, #tpu.memory_space<vmem>>, vector<512x128xbf16>,
      %cst_18 = arith.constant dense<0.000000e+00> : vector<128xf32>
      %23 = vector.multi_reduction <add>, %20, %cst_18 [0] : vector<512x128xf32> to vector<128xf32>
      %24 = vector.shape_cast %23 : vector<128xf32> to vector<1x128xf32>
      %25 = arith.mulf %20, %20 : vector<512x128xf32>
      %cst_19 = arith.constant dense<0.000000e+00> : vector<128xf32>
      %26 = vector.multi_reduction <add>, %25, %cst_19 [0] : vector<512x128xf32> to vector<128xf32>
      %27 = vector.shape_cast %26 : vector<128xf32> to vector<1x128xf32>
      %28 = tpu.iota {dimensions = array<i32: 0>} : vector<8x128xi32>
      %c0_i32_20 = arith.constant 0 : i32
      %29 = vector.broadcast %c0_i32_20 : i32 to vector<8x128xi32>
      %30 = arith.cmpi eq, %28, %29 : vector<8x128xi32>
      %cst_21 = arith.constant 0.000000e+00 : f32
      %31 = vector.shape_cast %24 : vector<1x128xf32> to vector<1x128xf32>
      %32 = vector.broadcast %31 : vector<1x128xf32> to vector<8x128xf32>
      %33 = vector.broadcast %cst_21 : f32 to vector<8x128xf32>
      %34 = arith.select %30, %32, %33 : vector<8x128xi1>, vector<8x128xf32>
      %c1_i32 = arith.constant 1 : i32
      %35 = vector.broadcast %c1_i32 : i32 to vector<8x128xi32>
      %36 = arith.cmpi eq, %28, %35 : vector<8x128xi32>
      %cst_22 = arith.constant 0.000000e+00 : f32
      %37 = vector.shape_cast %27 : vector<1x128xf32> to vector<1x128xf32>
      %38 = vector.broadcast %37 : vector<1x128xf32> to vector<8x128xf32>
      %39 = vector.broadcast %cst_22 : f32 to vector<8x128xf32>
      %40 = arith.select %36, %38, %39 : vector<8x128xi1>, vector<8x128xf32>
      %41 = arith.addf %34, %40 : vector<8x128xf32>
      %c0_23 = arith.constant 0 : index
      %c0_24 = arith.constant 0 : index
      %42 = vector.load %arg6[%c0_23, %c0_24] : memref<8x128xf32, #tpu.memory_space<vmem>>, vector<8x128xf32>
      tpu.vector_store %arg6[%c0_23, %c0_24], %41 {strides = array<i32>} : memref<8x128xf32, #tpu.memory_space<vmem>>, vector<8x128xf32>,
    } else {
    }
    return
  }
  func.func @transform_0(%arg0: i32, %arg1: i32) -> (i32, i32) {
    %c0_i32 = arith.constant 0 : i32
    return %arg0, %arg1 : i32, i32
  }
  func.func @transform_1(%arg0: i32, %arg1: i32) -> (i32, i32) {
    %c0_i32 = arith.constant 0 : i32
    %c0_i32_0 = arith.constant 0 : i32
    return %arg1, %c0_i32 : i32, i32
  }
  func.func @transform_2(%arg0: i32, %arg1: i32) -> (i32, i32) {
    %c0_i32 = arith.constant 0 : i32
    %c0_i32_0 = arith.constant 0 : i32
    %c0_i32_1 = arith.constant 0 : i32
    return %c0_i32, %c0_i32_0 : i32, i32
  }
  func.func @transform_3(%arg0: i32, %arg1: i32) -> (i32, i32) {
    %c0_i32 = arith.constant 0 : i32
    %c0_i32_0 = arith.constant 0 : i32
    return %arg0, %c0_i32 : i32, i32
  }
  func.func @transform_4(%arg0: i32, %arg1: i32) -> (i32, i32) {
    %c0_i32 = arith.constant 0 : i32
    %c0_i32_0 = arith.constant 0 : i32
    return %arg0, %c0_i32 : i32, i32
  }
}

module attributes {stable_mosaic.version = 11 : i64} {
  func.func @_conv_kernel(%arg0: i32, %arg1: i32, %arg2: memref<128x256xbf16, #tpu.memory_space<vmem>>, %arg3: memref<256x128xbf16, #tpu.memory_space<vmem>>, %arg4: memref<1x128xf32, #tpu.memory_space<vmem>>, %arg5: memref<128x128xbf16, #tpu.memory_space<vmem>>, %arg6: memref<8x128xf32, #tpu.memory_space<vmem>>, %arg7: memref<128x128xf32, #tpu.memory_space<vmem>>) attributes {dimension_semantics = [#tpu.dimension_semantics<parallel>, #tpu.dimension_semantics<arbitrary>], iteration_bounds = array<i64: 1, 1>, scalar_prefetch = 0 : i64, scratch_operands = 1 : i64, tpu.core_type = #tpu.core_type<tc>, window_params = [{transform_indices = @transform_0, window_bounds = array<i64: 128, 256>}, {transform_indices = @transform_1, window_bounds = array<i64: 256, 128>}, {pipeline_mode = #tpu.pipeline_mode<synchronous>, transform_indices = @transform_2, window_bounds = array<i64: 1, 128>}, {transform_indices = @transform_3, window_bounds = array<i64: 128, 128>}, {transform_indices = @transform_4, window_bounds = array<i64: 8, 128>}]} {
    %c0_i32 = arith.constant 0 : i32
    %0 = arith.cmpi eq, %arg1, %c0_i32 : i32
    %1 = arith.extui %0 : i1 to i32
    %c0_i32_0 = arith.constant 0 : i32
    %2 = arith.cmpi ne, %1, %c0_i32_0 : i32
    scf.if %2 {
      %cst_10 = arith.constant 0.000000e+00 : f32
      %12 = vector.broadcast %cst_10 : f32 to vector<128x128xf32>
      %c0_11 = arith.constant 0 : index
      %c0_12 = arith.constant 0 : index
      %13 = vector.load %arg7[%c0_11, %c0_12] : memref<128x128xf32, #tpu.memory_space<vmem>>, vector<128x128xf32>
      tpu.vector_store %arg7[%c0_11, %c0_12], %12 {strides = array<i32>} : memref<128x128xf32, #tpu.memory_space<vmem>>, vector<128x128xf32>,
    } else {
    }
    %c0 = arith.constant 0 : index
    %c0_1 = arith.constant 0 : index
    %3 = vector.load %arg7[%c0, %c0_1] : memref<128x128xf32, #tpu.memory_space<vmem>>, vector<128x128xf32>
    %c0_2 = arith.constant 0 : index
    %c0_3 = arith.constant 0 : index
    %4 = vector.load %arg2[%c0_2, %c0_3] : memref<128x256xbf16, #tpu.memory_space<vmem>>, vector<128x256xbf16>
    %c0_4 = arith.constant 0 : index
    %c0_5 = arith.constant 0 : index
    %5 = vector.load %arg3[%c0_4, %c0_5] : memref<256x128xbf16, #tpu.memory_space<vmem>>, vector<256x128xbf16>
    %cst = arith.constant dense<0.000000e+00> : vector<128x128xf32>
    %6 = tpu.matmul %4, %5, %cst {dimension_numbers = #tpu.dot_dimension_numbers<[1], [0], [0], [1], [0, 0, 1, 1], [], []>} : vector<128x256xbf16>, vector<256x128xbf16>, vector<128x128xf32> -> vector<128x128xf32>
    %7 = arith.addf %3, %6 : vector<128x128xf32>
    %c0_6 = arith.constant 0 : index
    %c0_7 = arith.constant 0 : index
    %8 = vector.load %arg7[%c0_6, %c0_7] : memref<128x128xf32, #tpu.memory_space<vmem>>, vector<128x128xf32>
    tpu.vector_store %arg7[%c0_6, %c0_7], %7 {strides = array<i32>} : memref<128x128xf32, #tpu.memory_space<vmem>>, vector<128x128xf32>,
    %c0_i32_8 = arith.constant 0 : i32
    %9 = arith.cmpi eq, %arg1, %c0_i32_8 : i32
    %10 = arith.extui %9 : i1 to i32
    %c0_i32_9 = arith.constant 0 : i32
    %11 = arith.cmpi ne, %10, %c0_i32_9 : i32
    scf.if %11 {
      %c0_10 = arith.constant 0 : index
      %c0_11 = arith.constant 0 : index
      %12 = vector.load %arg7[%c0_10, %c0_11] : memref<128x128xf32, #tpu.memory_space<vmem>>, vector<128x128xf32>
      %c0_12 = arith.constant 0 : index
      %c0_13 = arith.constant 0 : index
      %13 = vector.load %arg4[%c0_12, %c0_13] : memref<1x128xf32, #tpu.memory_space<vmem>>, vector<1x128xf32>
      %14 = vector.broadcast %13 : vector<1x128xf32> to vector<128x128xf32>
      %15 = arith.addf %12, %14 : vector<128x128xf32>
      %16 = arith.truncf %15 : vector<128x128xf32> to vector<128x128xbf16>
      %c0_14 = arith.constant 0 : index
      %c0_15 = arith.constant 0 : index
      %17 = vector.load %arg5[%c0_14, %c0_15] : memref<128x128xbf16, #tpu.memory_space<vmem>>, vector<128x128xbf16>
      tpu.vector_store %arg5[%c0_14, %c0_15], %16 {strides = array<i32>} : memref<128x128xbf16, #tpu.memory_space<vmem>>, vector<128x128xbf16>,
      %cst_16 = arith.constant dense<0.000000e+00> : vector<128xf32>
      %18 = vector.multi_reduction <add>, %15, %cst_16 [0] : vector<128x128xf32> to vector<128xf32>
      %19 = vector.shape_cast %18 : vector<128xf32> to vector<1x128xf32>
      %20 = arith.mulf %15, %15 : vector<128x128xf32>
      %cst_17 = arith.constant dense<0.000000e+00> : vector<128xf32>
      %21 = vector.multi_reduction <add>, %20, %cst_17 [0] : vector<128x128xf32> to vector<128xf32>
      %22 = vector.shape_cast %21 : vector<128xf32> to vector<1x128xf32>
      %23 = tpu.iota {dimensions = array<i32: 0>} : vector<8x128xi32>
      %c0_i32_18 = arith.constant 0 : i32
      %24 = vector.broadcast %c0_i32_18 : i32 to vector<8x128xi32>
      %25 = arith.cmpi eq, %23, %24 : vector<8x128xi32>
      %cst_19 = arith.constant 0.000000e+00 : f32
      %26 = vector.shape_cast %19 : vector<1x128xf32> to vector<1x128xf32>
      %27 = vector.broadcast %26 : vector<1x128xf32> to vector<8x128xf32>
      %28 = vector.broadcast %cst_19 : f32 to vector<8x128xf32>
      %29 = arith.select %25, %27, %28 : vector<8x128xi1>, vector<8x128xf32>
      %c1_i32 = arith.constant 1 : i32
      %30 = vector.broadcast %c1_i32 : i32 to vector<8x128xi32>
      %31 = arith.cmpi eq, %23, %30 : vector<8x128xi32>
      %cst_20 = arith.constant 0.000000e+00 : f32
      %32 = vector.shape_cast %22 : vector<1x128xf32> to vector<1x128xf32>
      %33 = vector.broadcast %32 : vector<1x128xf32> to vector<8x128xf32>
      %34 = vector.broadcast %cst_20 : f32 to vector<8x128xf32>
      %35 = arith.select %31, %33, %34 : vector<8x128xi1>, vector<8x128xf32>
      %36 = arith.addf %29, %35 : vector<8x128xf32>
      %c0_21 = arith.constant 0 : index
      %c0_22 = arith.constant 0 : index
      %37 = vector.load %arg6[%c0_21, %c0_22] : memref<8x128xf32, #tpu.memory_space<vmem>>, vector<8x128xf32>
      tpu.vector_store %arg6[%c0_21, %c0_22], %36 {strides = array<i32>} : memref<8x128xf32, #tpu.memory_space<vmem>>, vector<8x128xf32>,
    } else {
    }
    return
  }
  func.func @transform_0(%arg0: i32, %arg1: i32) -> (i32, i32) {
    %c0_i32 = arith.constant 0 : i32
    return %arg0, %arg1 : i32, i32
  }
  func.func @transform_1(%arg0: i32, %arg1: i32) -> (i32, i32) {
    %c0_i32 = arith.constant 0 : i32
    %c0_i32_0 = arith.constant 0 : i32
    return %arg1, %c0_i32 : i32, i32
  }
  func.func @transform_2(%arg0: i32, %arg1: i32) -> (i32, i32) {
    %c0_i32 = arith.constant 0 : i32
    %c0_i32_0 = arith.constant 0 : i32
    %c0_i32_1 = arith.constant 0 : i32
    return %c0_i32, %c0_i32_0 : i32, i32
  }
  func.func @transform_3(%arg0: i32, %arg1: i32) -> (i32, i32) {
    %c0_i32 = arith.constant 0 : i32
    %c0_i32_0 = arith.constant 0 : i32
    return %arg0, %c0_i32 : i32, i32
  }
  func.func @transform_4(%arg0: i32, %arg1: i32) -> (i32, i32) {
    %c0_i32 = arith.constant 0 : i32
    %c0_i32_0 = arith.constant 0 : i32
    return %arg0, %c0_i32 : i32, i32
  }
}

module attributes {stable_mosaic.version = 11 : i64} {
  func.func @_bn_lrelu_kernel(%arg0: i32, %arg1: memref<128x128xbf16, #tpu.memory_space<vmem>>, %arg2: memref<1x128xf32, #tpu.memory_space<vmem>>, %arg3: memref<1x128xf32, #tpu.memory_space<vmem>>, %arg4: memref<128x128xbf16, #tpu.memory_space<vmem>>) attributes {dimension_semantics = [#tpu.dimension_semantics<parallel>], iteration_bounds = array<i64: 1>, scalar_prefetch = 0 : i64, scratch_operands = 0 : i64, tpu.core_type = #tpu.core_type<tc>, window_params = [{transform_indices = @transform_0, window_bounds = array<i64: 128, 128>}, {pipeline_mode = #tpu.pipeline_mode<synchronous>, transform_indices = @transform_1, window_bounds = array<i64: 1, 128>}, {pipeline_mode = #tpu.pipeline_mode<synchronous>, transform_indices = @transform_2, window_bounds = array<i64: 1, 128>}, {transform_indices = @transform_3, window_bounds = array<i64: 128, 128>}]} {
    %c0 = arith.constant 0 : index
    %c0_0 = arith.constant 0 : index
    %0 = vector.load %arg1[%c0, %c0_0] : memref<128x128xbf16, #tpu.memory_space<vmem>>, vector<128x128xbf16>
    %1 = arith.extf %0 : vector<128x128xbf16> to vector<128x128xf32>
    %c0_1 = arith.constant 0 : index
    %c0_2 = arith.constant 0 : index
    %2 = vector.load %arg2[%c0_1, %c0_2] : memref<1x128xf32, #tpu.memory_space<vmem>>, vector<1x128xf32>
    %3 = vector.broadcast %2 : vector<1x128xf32> to vector<128x128xf32>
    %4 = arith.mulf %1, %3 : vector<128x128xf32>
    %c0_3 = arith.constant 0 : index
    %c0_4 = arith.constant 0 : index
    %5 = vector.load %arg3[%c0_3, %c0_4] : memref<1x128xf32, #tpu.memory_space<vmem>>, vector<1x128xf32>
    %6 = vector.broadcast %5 : vector<1x128xf32> to vector<128x128xf32>
    %7 = arith.addf %4, %6 : vector<128x128xf32>
    %cst = arith.constant 0.000000e+00 : f32
    %8 = vector.broadcast %cst : f32 to vector<128x128xf32>
    %9 = arith.cmpf oge, %7, %8 : vector<128x128xf32>
    %cst_5 = arith.constant 2.000000e-01 : f32
    %10 = vector.broadcast %cst_5 : f32 to vector<128x128xf32>
    %11 = arith.mulf %10, %7 : vector<128x128xf32>
    %12 = arith.select %9, %7, %11 : vector<128x128xi1>, vector<128x128xf32>
    %13 = arith.truncf %12 : vector<128x128xf32> to vector<128x128xbf16>
    %c0_6 = arith.constant 0 : index
    %c0_7 = arith.constant 0 : index
    %14 = vector.load %arg4[%c0_6, %c0_7] : memref<128x128xbf16, #tpu.memory_space<vmem>>, vector<128x128xbf16>
    tpu.vector_store %arg4[%c0_6, %c0_7], %13 {strides = array<i32>} : memref<128x128xbf16, #tpu.memory_space<vmem>>, vector<128x128xbf16>,
    return
  }
  func.func @transform_0(%arg0: i32) -> (i32, i32) {
    %c0_i32 = arith.constant 0 : i32
    %c0_i32_0 = arith.constant 0 : i32
    return %arg0, %c0_i32 : i32, i32
  }
  func.func @transform_1(%arg0: i32) -> (i32, i32) {
    %c0_i32 = arith.constant 0 : i32
    %c0_i32_0 = arith.constant 0 : i32
    %c0_i32_1 = arith.constant 0 : i32
    return %c0_i32, %c0_i32_0 : i32, i32
  }
  func.func @transform_2(%arg0: i32) -> (i32, i32) {
    %c0_i32 = arith.constant 0 : i32
    %c0_i32_0 = arith.constant 0 : i32
    %c0_i32_1 = arith.constant 0 : i32
    return %c0_i32, %c0_i32_0 : i32, i32
  }
  func.func @transform_3(%arg0: i32) -> (i32, i32) {
    %c0_i32 = arith.constant 0 : i32
    %c0_i32_0 = arith.constant 0 : i32
    return %arg0, %c0_i32 : i32, i32
  }
}

module attributes {stable_mosaic.version = 11 : i64} {
  func.func @_conv_kernel(%arg0: i32, %arg1: i32, %arg2: memref<32x512xbf16, #tpu.memory_space<vmem>>, %arg3: memref<512x128xbf16, #tpu.memory_space<vmem>>, %arg4: memref<1x128xf32, #tpu.memory_space<vmem>>, %arg5: memref<32x128xbf16, #tpu.memory_space<vmem>>, %arg6: memref<8x128xf32, #tpu.memory_space<vmem>>, %arg7: memref<32x128xf32, #tpu.memory_space<vmem>>) attributes {dimension_semantics = [#tpu.dimension_semantics<parallel>, #tpu.dimension_semantics<arbitrary>], iteration_bounds = array<i64: 1, 1>, scalar_prefetch = 0 : i64, scratch_operands = 1 : i64, tpu.core_type = #tpu.core_type<tc>, window_params = [{transform_indices = @transform_0, window_bounds = array<i64: 32, 512>}, {transform_indices = @transform_1, window_bounds = array<i64: 512, 128>}, {pipeline_mode = #tpu.pipeline_mode<synchronous>, transform_indices = @transform_2, window_bounds = array<i64: 1, 128>}, {transform_indices = @transform_3, window_bounds = array<i64: 32, 128>}, {transform_indices = @transform_4, window_bounds = array<i64: 8, 128>}]} {
    %c0_i32 = arith.constant 0 : i32
    %0 = arith.cmpi eq, %arg1, %c0_i32 : i32
    %1 = arith.extui %0 : i1 to i32
    %c0_i32_0 = arith.constant 0 : i32
    %2 = arith.cmpi ne, %1, %c0_i32_0 : i32
    scf.if %2 {
      %cst_10 = arith.constant 0.000000e+00 : f32
      %12 = vector.broadcast %cst_10 : f32 to vector<32x128xf32>
      %c0_11 = arith.constant 0 : index
      %c0_12 = arith.constant 0 : index
      %13 = vector.load %arg7[%c0_11, %c0_12] : memref<32x128xf32, #tpu.memory_space<vmem>>, vector<32x128xf32>
      tpu.vector_store %arg7[%c0_11, %c0_12], %12 {strides = array<i32>} : memref<32x128xf32, #tpu.memory_space<vmem>>, vector<32x128xf32>,
    } else {
    }
    %c0 = arith.constant 0 : index
    %c0_1 = arith.constant 0 : index
    %3 = vector.load %arg7[%c0, %c0_1] : memref<32x128xf32, #tpu.memory_space<vmem>>, vector<32x128xf32>
    %c0_2 = arith.constant 0 : index
    %c0_3 = arith.constant 0 : index
    %4 = vector.load %arg2[%c0_2, %c0_3] : memref<32x512xbf16, #tpu.memory_space<vmem>>, vector<32x512xbf16>
    %c0_4 = arith.constant 0 : index
    %c0_5 = arith.constant 0 : index
    %5 = vector.load %arg3[%c0_4, %c0_5] : memref<512x128xbf16, #tpu.memory_space<vmem>>, vector<512x128xbf16>
    %cst = arith.constant dense<0.000000e+00> : vector<32x128xf32>
    %6 = tpu.matmul %4, %5, %cst {dimension_numbers = #tpu.dot_dimension_numbers<[1], [0], [0], [1], [0, 0, 1, 1], [], []>} : vector<32x512xbf16>, vector<512x128xbf16>, vector<32x128xf32> -> vector<32x128xf32>
    %7 = arith.addf %3, %6 : vector<32x128xf32>
    %c0_6 = arith.constant 0 : index
    %c0_7 = arith.constant 0 : index
    %8 = vector.load %arg7[%c0_6, %c0_7] : memref<32x128xf32, #tpu.memory_space<vmem>>, vector<32x128xf32>
    tpu.vector_store %arg7[%c0_6, %c0_7], %7 {strides = array<i32>} : memref<32x128xf32, #tpu.memory_space<vmem>>, vector<32x128xf32>,
    %c0_i32_8 = arith.constant 0 : i32
    %9 = arith.cmpi eq, %arg1, %c0_i32_8 : i32
    %10 = arith.extui %9 : i1 to i32
    %c0_i32_9 = arith.constant 0 : i32
    %11 = arith.cmpi ne, %10, %c0_i32_9 : i32
    scf.if %11 {
      %c0_10 = arith.constant 0 : index
      %c0_11 = arith.constant 0 : index
      %12 = vector.load %arg7[%c0_10, %c0_11] : memref<32x128xf32, #tpu.memory_space<vmem>>, vector<32x128xf32>
      %c0_12 = arith.constant 0 : index
      %c0_13 = arith.constant 0 : index
      %13 = vector.load %arg4[%c0_12, %c0_13] : memref<1x128xf32, #tpu.memory_space<vmem>>, vector<1x128xf32>
      %14 = vector.broadcast %13 : vector<1x128xf32> to vector<32x128xf32>
      %15 = arith.addf %12, %14 : vector<32x128xf32>
      %16 = arith.truncf %15 : vector<32x128xf32> to vector<32x128xbf16>
      %c0_14 = arith.constant 0 : index
      %c0_15 = arith.constant 0 : index
      %17 = vector.load %arg5[%c0_14, %c0_15] : memref<32x128xbf16, #tpu.memory_space<vmem>>, vector<32x128xbf16>
      tpu.vector_store %arg5[%c0_14, %c0_15], %16 {strides = array<i32>} : memref<32x128xbf16, #tpu.memory_space<vmem>>, vector<32x128xbf16>,
      %cst_16 = arith.constant dense<0.000000e+00> : vector<128xf32>
      %18 = vector.multi_reduction <add>, %15, %cst_16 [0] : vector<32x128xf32> to vector<128xf32>
      %19 = vector.shape_cast %18 : vector<128xf32> to vector<1x128xf32>
      %20 = arith.mulf %15, %15 : vector<32x128xf32>
      %cst_17 = arith.constant dense<0.000000e+00> : vector<128xf32>
      %21 = vector.multi_reduction <add>, %20, %cst_17 [0] : vector<32x128xf32> to vector<128xf32>
      %22 = vector.shape_cast %21 : vector<128xf32> to vector<1x128xf32>
      %23 = tpu.iota {dimensions = array<i32: 0>} : vector<8x128xi32>
      %c0_i32_18 = arith.constant 0 : i32
      %24 = vector.broadcast %c0_i32_18 : i32 to vector<8x128xi32>
      %25 = arith.cmpi eq, %23, %24 : vector<8x128xi32>
      %cst_19 = arith.constant 0.000000e+00 : f32
      %26 = vector.shape_cast %19 : vector<1x128xf32> to vector<1x128xf32>
      %27 = vector.broadcast %26 : vector<1x128xf32> to vector<8x128xf32>
      %28 = vector.broadcast %cst_19 : f32 to vector<8x128xf32>
      %29 = arith.select %25, %27, %28 : vector<8x128xi1>, vector<8x128xf32>
      %c1_i32 = arith.constant 1 : i32
      %30 = vector.broadcast %c1_i32 : i32 to vector<8x128xi32>
      %31 = arith.cmpi eq, %23, %30 : vector<8x128xi32>
      %cst_20 = arith.constant 0.000000e+00 : f32
      %32 = vector.shape_cast %22 : vector<1x128xf32> to vector<1x128xf32>
      %33 = vector.broadcast %32 : vector<1x128xf32> to vector<8x128xf32>
      %34 = vector.broadcast %cst_20 : f32 to vector<8x128xf32>
      %35 = arith.select %31, %33, %34 : vector<8x128xi1>, vector<8x128xf32>
      %36 = arith.addf %29, %35 : vector<8x128xf32>
      %c0_21 = arith.constant 0 : index
      %c0_22 = arith.constant 0 : index
      %37 = vector.load %arg6[%c0_21, %c0_22] : memref<8x128xf32, #tpu.memory_space<vmem>>, vector<8x128xf32>
      tpu.vector_store %arg6[%c0_21, %c0_22], %36 {strides = array<i32>} : memref<8x128xf32, #tpu.memory_space<vmem>>, vector<8x128xf32>,
    } else {
    }
    return
  }
  func.func @transform_0(%arg0: i32, %arg1: i32) -> (i32, i32) {
    %c0_i32 = arith.constant 0 : i32
    return %arg0, %arg1 : i32, i32
  }
  func.func @transform_1(%arg0: i32, %arg1: i32) -> (i32, i32) {
    %c0_i32 = arith.constant 0 : i32
    %c0_i32_0 = arith.constant 0 : i32
    return %arg1, %c0_i32 : i32, i32
  }
  func.func @transform_2(%arg0: i32, %arg1: i32) -> (i32, i32) {
    %c0_i32 = arith.constant 0 : i32
    %c0_i32_0 = arith.constant 0 : i32
    %c0_i32_1 = arith.constant 0 : i32
    return %c0_i32, %c0_i32_0 : i32, i32
  }
  func.func @transform_3(%arg0: i32, %arg1: i32) -> (i32, i32) {
    %c0_i32 = arith.constant 0 : i32
    %c0_i32_0 = arith.constant 0 : i32
    return %arg0, %c0_i32 : i32, i32
  }
  func.func @transform_4(%arg0: i32, %arg1: i32) -> (i32, i32) {
    %c0_i32 = arith.constant 0 : i32
    %c0_i32_0 = arith.constant 0 : i32
    return %arg0, %c0_i32 : i32, i32
  }
}

module attributes {stable_mosaic.version = 11 : i64} {
  func.func @_bn_lrelu_kernel(%arg0: i32, %arg1: memref<32x128xbf16, #tpu.memory_space<vmem>>, %arg2: memref<1x128xf32, #tpu.memory_space<vmem>>, %arg3: memref<1x128xf32, #tpu.memory_space<vmem>>, %arg4: memref<32x128xbf16, #tpu.memory_space<vmem>>) attributes {dimension_semantics = [#tpu.dimension_semantics<parallel>], iteration_bounds = array<i64: 1>, scalar_prefetch = 0 : i64, scratch_operands = 0 : i64, tpu.core_type = #tpu.core_type<tc>, window_params = [{transform_indices = @transform_0, window_bounds = array<i64: 32, 128>}, {pipeline_mode = #tpu.pipeline_mode<synchronous>, transform_indices = @transform_1, window_bounds = array<i64: 1, 128>}, {pipeline_mode = #tpu.pipeline_mode<synchronous>, transform_indices = @transform_2, window_bounds = array<i64: 1, 128>}, {transform_indices = @transform_3, window_bounds = array<i64: 32, 128>}]} {
    %c0 = arith.constant 0 : index
    %c0_0 = arith.constant 0 : index
    %0 = vector.load %arg1[%c0, %c0_0] : memref<32x128xbf16, #tpu.memory_space<vmem>>, vector<32x128xbf16>
    %1 = arith.extf %0 : vector<32x128xbf16> to vector<32x128xf32>
    %c0_1 = arith.constant 0 : index
    %c0_2 = arith.constant 0 : index
    %2 = vector.load %arg2[%c0_1, %c0_2] : memref<1x128xf32, #tpu.memory_space<vmem>>, vector<1x128xf32>
    %3 = vector.broadcast %2 : vector<1x128xf32> to vector<32x128xf32>
    %4 = arith.mulf %1, %3 : vector<32x128xf32>
    %c0_3 = arith.constant 0 : index
    %c0_4 = arith.constant 0 : index
    %5 = vector.load %arg3[%c0_3, %c0_4] : memref<1x128xf32, #tpu.memory_space<vmem>>, vector<1x128xf32>
    %6 = vector.broadcast %5 : vector<1x128xf32> to vector<32x128xf32>
    %7 = arith.addf %4, %6 : vector<32x128xf32>
    %cst = arith.constant 0.000000e+00 : f32
    %8 = vector.broadcast %cst : f32 to vector<32x128xf32>
    %9 = arith.cmpf oge, %7, %8 : vector<32x128xf32>
    %cst_5 = arith.constant 2.000000e-01 : f32
    %10 = vector.broadcast %cst_5 : f32 to vector<32x128xf32>
    %11 = arith.mulf %10, %7 : vector<32x128xf32>
    %12 = arith.select %9, %7, %11 : vector<32x128xi1>, vector<32x128xf32>
    %13 = arith.truncf %12 : vector<32x128xf32> to vector<32x128xbf16>
    %c0_6 = arith.constant 0 : index
    %c0_7 = arith.constant 0 : index
    %14 = vector.load %arg4[%c0_6, %c0_7] : memref<32x128xbf16, #tpu.memory_space<vmem>>, vector<32x128xbf16>
    tpu.vector_store %arg4[%c0_6, %c0_7], %13 {strides = array<i32>} : memref<32x128xbf16, #tpu.memory_space<vmem>>, vector<32x128xbf16>,
    return
  }
  func.func @transform_0(%arg0: i32) -> (i32, i32) {
    %c0_i32 = arith.constant 0 : i32
    %c0_i32_0 = arith.constant 0 : i32
    return %arg0, %c0_i32 : i32, i32
  }
  func.func @transform_1(%arg0: i32) -> (i32, i32) {
    %c0_i32 = arith.constant 0 : i32
    %c0_i32_0 = arith.constant 0 : i32
    %c0_i32_1 = arith.constant 0 : i32
    return %c0_i32, %c0_i32_0 : i32, i32
  }
  func.func @transform_2(%arg0: i32) -> (i32, i32) {
    %c0_i32 = arith.constant 0 : i32
    %c0_i32_0 = arith.constant 0 : i32
    %c0_i32_1 = arith.constant 0 : i32
    return %c0_i32, %c0_i32_0 : i32, i32
  }
  func.func @transform_3(%arg0: i32) -> (i32, i32) {
    %c0_i32 = arith.constant 0 : i32
    %c0_i32_0 = arith.constant 0 : i32
    return %arg0, %c0_i32 : i32, i32
  }
}

module attributes {stable_mosaic.version = 11 : i64} {
  func.func @_bn_lrelu_kernel(%arg0: i32, %arg1: memref<24x128xbf16, #tpu.memory_space<vmem>>, %arg2: memref<1x128xf32, #tpu.memory_space<vmem>>, %arg3: memref<1x128xf32, #tpu.memory_space<vmem>>, %arg4: memref<24x128xbf16, #tpu.memory_space<vmem>>) attributes {dimension_semantics = [#tpu.dimension_semantics<parallel>], iteration_bounds = array<i64: 1>, scalar_prefetch = 0 : i64, scratch_operands = 0 : i64, tpu.core_type = #tpu.core_type<tc>, window_params = [{transform_indices = @transform_0, window_bounds = array<i64: 24, 128>}, {pipeline_mode = #tpu.pipeline_mode<synchronous>, transform_indices = @transform_1, window_bounds = array<i64: 1, 128>}, {pipeline_mode = #tpu.pipeline_mode<synchronous>, transform_indices = @transform_2, window_bounds = array<i64: 1, 128>}, {transform_indices = @transform_3, window_bounds = array<i64: 24, 128>}]} {
    %c0 = arith.constant 0 : index
    %c0_0 = arith.constant 0 : index
    %0 = vector.load %arg1[%c0, %c0_0] : memref<24x128xbf16, #tpu.memory_space<vmem>>, vector<24x128xbf16>
    %1 = arith.extf %0 : vector<24x128xbf16> to vector<24x128xf32>
    %c0_1 = arith.constant 0 : index
    %c0_2 = arith.constant 0 : index
    %2 = vector.load %arg2[%c0_1, %c0_2] : memref<1x128xf32, #tpu.memory_space<vmem>>, vector<1x128xf32>
    %3 = vector.broadcast %2 : vector<1x128xf32> to vector<24x128xf32>
    %4 = arith.mulf %1, %3 : vector<24x128xf32>
    %c0_3 = arith.constant 0 : index
    %c0_4 = arith.constant 0 : index
    %5 = vector.load %arg3[%c0_3, %c0_4] : memref<1x128xf32, #tpu.memory_space<vmem>>, vector<1x128xf32>
    %6 = vector.broadcast %5 : vector<1x128xf32> to vector<24x128xf32>
    %7 = arith.addf %4, %6 : vector<24x128xf32>
    %cst = arith.constant 0.000000e+00 : f32
    %8 = vector.broadcast %cst : f32 to vector<24x128xf32>
    %9 = arith.cmpf oge, %7, %8 : vector<24x128xf32>
    %cst_5 = arith.constant 2.000000e-01 : f32
    %10 = vector.broadcast %cst_5 : f32 to vector<24x128xf32>
    %11 = arith.mulf %10, %7 : vector<24x128xf32>
    %12 = arith.select %9, %7, %11 : vector<24x128xi1>, vector<24x128xf32>
    %13 = arith.truncf %12 : vector<24x128xf32> to vector<24x128xbf16>
    %c0_6 = arith.constant 0 : index
    %c0_7 = arith.constant 0 : index
    %14 = vector.load %arg4[%c0_6, %c0_7] : memref<24x128xbf16, #tpu.memory_space<vmem>>, vector<24x128xbf16>
    tpu.vector_store %arg4[%c0_6, %c0_7], %13 {strides = array<i32>} : memref<24x128xbf16, #tpu.memory_space<vmem>>, vector<24x128xbf16>,
    return
  }
  func.func @transform_0(%arg0: i32) -> (i32, i32) {
    %c0_i32 = arith.constant 0 : i32
    %c0_i32_0 = arith.constant 0 : i32
    return %arg0, %c0_i32 : i32, i32
  }
  func.func @transform_1(%arg0: i32) -> (i32, i32) {
    %c0_i32 = arith.constant 0 : i32
    %c0_i32_0 = arith.constant 0 : i32
    %c0_i32_1 = arith.constant 0 : i32
    return %c0_i32, %c0_i32_0 : i32, i32
  }
  func.func @transform_2(%arg0: i32) -> (i32, i32) {
    %c0_i32 = arith.constant 0 : i32
    %c0_i32_0 = arith.constant 0 : i32
    %c0_i32_1 = arith.constant 0 : i32
    return %c0_i32, %c0_i32_0 : i32, i32
  }
  func.func @transform_3(%arg0: i32) -> (i32, i32) {
    %c0_i32 = arith.constant 0 : i32
    %c0_i32_0 = arith.constant 0 : i32
    return %arg0, %c0_i32 : i32, i32
  }
}

module attributes {stable_mosaic.version = 11 : i64} {
  func.func @_conv_kernel(%arg0: i32, %arg1: i32, %arg2: memref<24x512xbf16, #tpu.memory_space<vmem>>, %arg3: memref<512x128xbf16, #tpu.memory_space<vmem>>, %arg4: memref<1x128xf32, #tpu.memory_space<vmem>>, %arg5: memref<24x128xbf16, #tpu.memory_space<vmem>>, %arg6: memref<8x128xf32, #tpu.memory_space<vmem>>, %arg7: memref<24x128xf32, #tpu.memory_space<vmem>>) attributes {dimension_semantics = [#tpu.dimension_semantics<parallel>, #tpu.dimension_semantics<arbitrary>], iteration_bounds = array<i64: 1, 2>, scalar_prefetch = 0 : i64, scratch_operands = 1 : i64, tpu.core_type = #tpu.core_type<tc>, window_params = [{transform_indices = @transform_0, window_bounds = array<i64: 24, 512>}, {transform_indices = @transform_1, window_bounds = array<i64: 512, 128>}, {pipeline_mode = #tpu.pipeline_mode<synchronous>, transform_indices = @transform_2, window_bounds = array<i64: 1, 128>}, {transform_indices = @transform_3, window_bounds = array<i64: 24, 128>}, {transform_indices = @transform_4, window_bounds = array<i64: 8, 128>}]} {
    %c0_i32 = arith.constant 0 : i32
    %0 = arith.cmpi eq, %arg1, %c0_i32 : i32
    %1 = arith.extui %0 : i1 to i32
    %c0_i32_0 = arith.constant 0 : i32
    %2 = arith.cmpi ne, %1, %c0_i32_0 : i32
    scf.if %2 {
      %cst_9 = arith.constant 0.000000e+00 : f32
      %12 = vector.broadcast %cst_9 : f32 to vector<24x128xf32>
      %c0_10 = arith.constant 0 : index
      %c0_11 = arith.constant 0 : index
      %13 = vector.load %arg7[%c0_10, %c0_11] : memref<24x128xf32, #tpu.memory_space<vmem>>, vector<24x128xf32>
      tpu.vector_store %arg7[%c0_10, %c0_11], %12 {strides = array<i32>} : memref<24x128xf32, #tpu.memory_space<vmem>>, vector<24x128xf32>,
    } else {
    }
    %c0 = arith.constant 0 : index
    %c0_1 = arith.constant 0 : index
    %3 = vector.load %arg7[%c0, %c0_1] : memref<24x128xf32, #tpu.memory_space<vmem>>, vector<24x128xf32>
    %c0_2 = arith.constant 0 : index
    %c0_3 = arith.constant 0 : index
    %4 = vector.load %arg2[%c0_2, %c0_3] : memref<24x512xbf16, #tpu.memory_space<vmem>>, vector<24x512xbf16>
    %c0_4 = arith.constant 0 : index
    %c0_5 = arith.constant 0 : index
    %5 = vector.load %arg3[%c0_4, %c0_5] : memref<512x128xbf16, #tpu.memory_space<vmem>>, vector<512x128xbf16>
    %cst = arith.constant dense<0.000000e+00> : vector<24x128xf32>
    %6 = tpu.matmul %4, %5, %cst {dimension_numbers = #tpu.dot_dimension_numbers<[1], [0], [0], [1], [0, 0, 1, 1], [], []>} : vector<24x512xbf16>, vector<512x128xbf16>, vector<24x128xf32> -> vector<24x128xf32>
    %7 = arith.addf %3, %6 : vector<24x128xf32>
    %c0_6 = arith.constant 0 : index
    %c0_7 = arith.constant 0 : index
    %8 = vector.load %arg7[%c0_6, %c0_7] : memref<24x128xf32, #tpu.memory_space<vmem>>, vector<24x128xf32>
    tpu.vector_store %arg7[%c0_6, %c0_7], %7 {strides = array<i32>} : memref<24x128xf32, #tpu.memory_space<vmem>>, vector<24x128xf32>,
    %c1_i32 = arith.constant 1 : i32
    %9 = arith.cmpi eq, %arg1, %c1_i32 : i32
    %10 = arith.extui %9 : i1 to i32
    %c0_i32_8 = arith.constant 0 : i32
    %11 = arith.cmpi ne, %10, %c0_i32_8 : i32
    scf.if %11 {
      %c0_9 = arith.constant 0 : index
      %c0_10 = arith.constant 0 : index
      %12 = vector.load %arg7[%c0_9, %c0_10] : memref<24x128xf32, #tpu.memory_space<vmem>>, vector<24x128xf32>
      %c0_11 = arith.constant 0 : index
      %c0_12 = arith.constant 0 : index
      %13 = vector.load %arg4[%c0_11, %c0_12] : memref<1x128xf32, #tpu.memory_space<vmem>>, vector<1x128xf32>
      %14 = vector.broadcast %13 : vector<1x128xf32> to vector<24x128xf32>
      %15 = arith.addf %12, %14 : vector<24x128xf32>
      %16 = arith.truncf %15 : vector<24x128xf32> to vector<24x128xbf16>
      %c0_13 = arith.constant 0 : index
      %c0_14 = arith.constant 0 : index
      %17 = vector.load %arg5[%c0_13, %c0_14] : memref<24x128xbf16, #tpu.memory_space<vmem>>, vector<24x128xbf16>
      tpu.vector_store %arg5[%c0_13, %c0_14], %16 {strides = array<i32>} : memref<24x128xbf16, #tpu.memory_space<vmem>>, vector<24x128xbf16>,
      %cst_15 = arith.constant dense<0.000000e+00> : vector<128xf32>
      %18 = vector.multi_reduction <add>, %15, %cst_15 [0] : vector<24x128xf32> to vector<128xf32>
      %19 = vector.shape_cast %18 : vector<128xf32> to vector<1x128xf32>
      %20 = arith.mulf %15, %15 : vector<24x128xf32>
      %cst_16 = arith.constant dense<0.000000e+00> : vector<128xf32>
      %21 = vector.multi_reduction <add>, %20, %cst_16 [0] : vector<24x128xf32> to vector<128xf32>
      %22 = vector.shape_cast %21 : vector<128xf32> to vector<1x128xf32>
      %23 = tpu.iota {dimensions = array<i32: 0>} : vector<8x128xi32>
      %c0_i32_17 = arith.constant 0 : i32
      %24 = vector.broadcast %c0_i32_17 : i32 to vector<8x128xi32>
      %25 = arith.cmpi eq, %23, %24 : vector<8x128xi32>
      %cst_18 = arith.constant 0.000000e+00 : f32
      %26 = vector.shape_cast %19 : vector<1x128xf32> to vector<1x128xf32>
      %27 = vector.broadcast %26 : vector<1x128xf32> to vector<8x128xf32>
      %28 = vector.broadcast %cst_18 : f32 to vector<8x128xf32>
      %29 = arith.select %25, %27, %28 : vector<8x128xi1>, vector<8x128xf32>
      %c1_i32_19 = arith.constant 1 : i32
      %30 = vector.broadcast %c1_i32_19 : i32 to vector<8x128xi32>
      %31 = arith.cmpi eq, %23, %30 : vector<8x128xi32>
      %cst_20 = arith.constant 0.000000e+00 : f32
      %32 = vector.shape_cast %22 : vector<1x128xf32> to vector<1x128xf32>
      %33 = vector.broadcast %32 : vector<1x128xf32> to vector<8x128xf32>
      %34 = vector.broadcast %cst_20 : f32 to vector<8x128xf32>
      %35 = arith.select %31, %33, %34 : vector<8x128xi1>, vector<8x128xf32>
      %36 = arith.addf %29, %35 : vector<8x128xf32>
      %c0_21 = arith.constant 0 : index
      %c0_22 = arith.constant 0 : index
      %37 = vector.load %arg6[%c0_21, %c0_22] : memref<8x128xf32, #tpu.memory_space<vmem>>, vector<8x128xf32>
      tpu.vector_store %arg6[%c0_21, %c0_22], %36 {strides = array<i32>} : memref<8x128xf32, #tpu.memory_space<vmem>>, vector<8x128xf32>,
    } else {
    }
    return
  }
  func.func @transform_0(%arg0: i32, %arg1: i32) -> (i32, i32) {
    %c0_i32 = arith.constant 0 : i32
    return %arg0, %arg1 : i32, i32
  }
  func.func @transform_1(%arg0: i32, %arg1: i32) -> (i32, i32) {
    %c0_i32 = arith.constant 0 : i32
    %c0_i32_0 = arith.constant 0 : i32
    return %arg1, %c0_i32 : i32, i32
  }
  func.func @transform_2(%arg0: i32, %arg1: i32) -> (i32, i32) {
    %c0_i32 = arith.constant 0 : i32
    %c0_i32_0 = arith.constant 0 : i32
    %c0_i32_1 = arith.constant 0 : i32
    return %c0_i32, %c0_i32_0 : i32, i32
  }
  func.func @transform_3(%arg0: i32, %arg1: i32) -> (i32, i32) {
    %c0_i32 = arith.constant 0 : i32
    %c0_i32_0 = arith.constant 0 : i32
    return %arg0, %c0_i32 : i32, i32
  }
  func.func @transform_4(%arg0: i32, %arg1: i32) -> (i32, i32) {
    %c0_i32 = arith.constant 0 : i32
    %c0_i32_0 = arith.constant 0 : i32
    return %arg0, %c0_i32 : i32, i32
  }
}

module attributes {stable_mosaic.version = 11 : i64} {
  func.func @_conv_kernel(%arg0: i32, %arg1: i32, %arg2: memref<8x512xbf16, #tpu.memory_space<vmem>>, %arg3: memref<512x128xbf16, #tpu.memory_space<vmem>>, %arg4: memref<1x128xf32, #tpu.memory_space<vmem>>, %arg5: memref<8x128xf32, #tpu.memory_space<vmem>>, %arg6: memref<8x128xf32, #tpu.memory_space<vmem>>, %arg7: memref<8x128xf32, #tpu.memory_space<vmem>>) attributes {dimension_semantics = [#tpu.dimension_semantics<parallel>, #tpu.dimension_semantics<arbitrary>], iteration_bounds = array<i64: 1, 4>, scalar_prefetch = 0 : i64, scratch_operands = 1 : i64, tpu.core_type = #tpu.core_type<tc>, window_params = [{transform_indices = @transform_0, window_bounds = array<i64: 8, 512>}, {transform_indices = @transform_1, window_bounds = array<i64: 512, 128>}, {pipeline_mode = #tpu.pipeline_mode<synchronous>, transform_indices = @transform_2, window_bounds = array<i64: 1, 128>}, {transform_indices = @transform_3, window_bounds = array<i64: 8, 128>}, {transform_indices = @transform_4, window_bounds = array<i64: 8, 128>}]} {
    %c0_i32 = arith.constant 0 : i32
    %0 = arith.cmpi eq, %arg1, %c0_i32 : i32
    %1 = arith.extui %0 : i1 to i32
    %c0_i32_0 = arith.constant 0 : i32
    %2 = arith.cmpi ne, %1, %c0_i32_0 : i32
    scf.if %2 {
      %cst_9 = arith.constant 0.000000e+00 : f32
      %12 = vector.broadcast %cst_9 : f32 to vector<8x128xf32>
      %c0_10 = arith.constant 0 : index
      %c0_11 = arith.constant 0 : index
      %13 = vector.load %arg7[%c0_10, %c0_11] : memref<8x128xf32, #tpu.memory_space<vmem>>, vector<8x128xf32>
      tpu.vector_store %arg7[%c0_10, %c0_11], %12 {strides = array<i32>} : memref<8x128xf32, #tpu.memory_space<vmem>>, vector<8x128xf32>,
    } else {
    }
    %c0 = arith.constant 0 : index
    %c0_1 = arith.constant 0 : index
    %3 = vector.load %arg7[%c0, %c0_1] : memref<8x128xf32, #tpu.memory_space<vmem>>, vector<8x128xf32>
    %c0_2 = arith.constant 0 : index
    %c0_3 = arith.constant 0 : index
    %4 = vector.load %arg2[%c0_2, %c0_3] : memref<8x512xbf16, #tpu.memory_space<vmem>>, vector<8x512xbf16>
    %c0_4 = arith.constant 0 : index
    %c0_5 = arith.constant 0 : index
    %5 = vector.load %arg3[%c0_4, %c0_5] : memref<512x128xbf16, #tpu.memory_space<vmem>>, vector<512x128xbf16>
    %cst = arith.constant dense<0.000000e+00> : vector<8x128xf32>
    %6 = tpu.matmul %4, %5, %cst {dimension_numbers = #tpu.dot_dimension_numbers<[1], [0], [0], [1], [0, 0, 1, 1], [], []>} : vector<8x512xbf16>, vector<512x128xbf16>, vector<8x128xf32> -> vector<8x128xf32>
    %7 = arith.addf %3, %6 : vector<8x128xf32>
    %c0_6 = arith.constant 0 : index
    %c0_7 = arith.constant 0 : index
    %8 = vector.load %arg7[%c0_6, %c0_7] : memref<8x128xf32, #tpu.memory_space<vmem>>, vector<8x128xf32>
    tpu.vector_store %arg7[%c0_6, %c0_7], %7 {strides = array<i32>} : memref<8x128xf32, #tpu.memory_space<vmem>>, vector<8x128xf32>,
    %c3_i32 = arith.constant 3 : i32
    %9 = arith.cmpi eq, %arg1, %c3_i32 : i32
    %10 = arith.extui %9 : i1 to i32
    %c0_i32_8 = arith.constant 0 : i32
    %11 = arith.cmpi ne, %10, %c0_i32_8 : i32
    scf.if %11 {
      %c0_9 = arith.constant 0 : index
      %c0_10 = arith.constant 0 : index
      %12 = vector.load %arg7[%c0_9, %c0_10] : memref<8x128xf32, #tpu.memory_space<vmem>>, vector<8x128xf32>
      %c0_11 = arith.constant 0 : index
      %c0_12 = arith.constant 0 : index
      %13 = vector.load %arg4[%c0_11, %c0_12] : memref<1x128xf32, #tpu.memory_space<vmem>>, vector<1x128xf32>
      %14 = vector.broadcast %13 : vector<1x128xf32> to vector<8x128xf32>
      %15 = arith.addf %12, %14 : vector<8x128xf32>
      %c0_13 = arith.constant 0 : index
      %c0_14 = arith.constant 0 : index
      %16 = vector.load %arg5[%c0_13, %c0_14] : memref<8x128xf32, #tpu.memory_space<vmem>>, vector<8x128xf32>
      tpu.vector_store %arg5[%c0_13, %c0_14], %15 {strides = array<i32>} : memref<8x128xf32, #tpu.memory_space<vmem>>, vector<8x128xf32>,
      %cst_15 = arith.constant dense<0.000000e+00> : vector<128xf32>
      %17 = vector.multi_reduction <add>, %15, %cst_15 [0] : vector<8x128xf32> to vector<128xf32>
      %18 = vector.shape_cast %17 : vector<128xf32> to vector<1x128xf32>
      %19 = arith.mulf %15, %15 : vector<8x128xf32>
      %cst_16 = arith.constant dense<0.000000e+00> : vector<128xf32>
      %20 = vector.multi_reduction <add>, %19, %cst_16 [0] : vector<8x128xf32> to vector<128xf32>
      %21 = vector.shape_cast %20 : vector<128xf32> to vector<1x128xf32>
      %22 = tpu.iota {dimensions = array<i32: 0>} : vector<8x128xi32>
      %c0_i32_17 = arith.constant 0 : i32
      %23 = vector.broadcast %c0_i32_17 : i32 to vector<8x128xi32>
      %24 = arith.cmpi eq, %22, %23 : vector<8x128xi32>
      %cst_18 = arith.constant 0.000000e+00 : f32
      %25 = vector.shape_cast %18 : vector<1x128xf32> to vector<1x128xf32>
      %26 = vector.broadcast %25 : vector<1x128xf32> to vector<8x128xf32>
      %27 = vector.broadcast %cst_18 : f32 to vector<8x128xf32>
      %28 = arith.select %24, %26, %27 : vector<8x128xi1>, vector<8x128xf32>
      %c1_i32 = arith.constant 1 : i32
      %29 = vector.broadcast %c1_i32 : i32 to vector<8x128xi32>
      %30 = arith.cmpi eq, %22, %29 : vector<8x128xi32>
      %cst_19 = arith.constant 0.000000e+00 : f32
      %31 = vector.shape_cast %21 : vector<1x128xf32> to vector<1x128xf32>
      %32 = vector.broadcast %31 : vector<1x128xf32> to vector<8x128xf32>
      %33 = vector.broadcast %cst_19 : f32 to vector<8x128xf32>
      %34 = arith.select %30, %32, %33 : vector<8x128xi1>, vector<8x128xf32>
      %35 = arith.addf %28, %34 : vector<8x128xf32>
      %c0_20 = arith.constant 0 : index
      %c0_21 = arith.constant 0 : index
      %36 = vector.load %arg6[%c0_20, %c0_21] : memref<8x128xf32, #tpu.memory_space<vmem>>, vector<8x128xf32>
      tpu.vector_store %arg6[%c0_20, %c0_21], %35 {strides = array<i32>} : memref<8x128xf32, #tpu.memory_space<vmem>>, vector<8x128xf32>,
    } else {
    }
    return
  }
  func.func @transform_0(%arg0: i32, %arg1: i32) -> (i32, i32) {
    %c0_i32 = arith.constant 0 : i32
    return %arg0, %arg1 : i32, i32
  }
  func.func @transform_1(%arg0: i32, %arg1: i32) -> (i32, i32) {
    %c0_i32 = arith.constant 0 : i32
    %c0_i32_0 = arith.constant 0 : i32
    return %arg1, %c0_i32 : i32, i32
  }
  func.func @transform_2(%arg0: i32, %arg1: i32) -> (i32, i32) {
    %c0_i32 = arith.constant 0 : i32
    %c0_i32_0 = arith.constant 0 : i32
    %c0_i32_1 = arith.constant 0 : i32
    return %c0_i32, %c0_i32_0 : i32, i32
  }
  func.func @transform_3(%arg0: i32, %arg1: i32) -> (i32, i32) {
    %c0_i32 = arith.constant 0 : i32
    %c0_i32_0 = arith.constant 0 : i32
    return %arg0, %c0_i32 : i32, i32
  }
  func.func @transform_4(%arg0: i32, %arg1: i32) -> (i32, i32) {
    %c0_i32 = arith.constant 0 : i32
    %c0_i32_0 = arith.constant 0 : i32
    return %arg0, %c0_i32 : i32, i32
  }
}

</mosaic_0001>

<llo_original>
// kernel: _lambda_.8
$region0: #{_lambda_.8}
  #allocation0 [shape = 'u32[]', space=smem, size = 0x4, offset = 0x4, fixed_abs, tag = 'smem constant byte address 0x4 - core index']
  #allocation1 [shape = 'u32[144,128]{1,0:T(1,128)}', space=vmem, size = 0x12000, scoped, tag = 'internal scratch']
  #allocation2 [shape = 'f32[512,128]{1,0:T(8,128)}', space=vmem, size = 0x40000, scoped, tag = 'scratch operand']
  %s0 = inlined_call_operand.vmem [shape: bf16[512,128], index: 0, kind: input, shape index: {}]
  %s1 = inlined_call_operand.vmem [shape: bf16[128,128], index: 1, kind: input, shape index: {}]
  %s2 = inlined_call_operand.vmem [shape: f32[1,128], index: 2, kind: input, shape index: {}]
  %s3 = inlined_call_operand.vmem [shape: bf16[512,128], index: 3, kind: output, shape index: {0}]
  %s4 = inlined_call_operand.hbm [shape: f32[8,128], index: 4, kind: output, shape index: {1}]
  %5 = xla_tuple %s3, %s4
  %s6 = sld [smem:[#allocation0]]
  $region38: #{_lambda_.8} parent=0
    _
  %s8 = ssub.s32 1, %s6
  %s9 = scalar_select 0, %s8, %s6
  $region1: #{_lambda_.8} parent=0
    #allocation3 [shape = 'u8[4096]{0}', space=vmem, size = 0x1000, scoped, tag = 'output window, operand 1, single buffered']
    #allocation4 [shape = 's32[1]{0}', space=sflag, size = 0x4, scoped, tag = 'scoped memory for _lambda_.8']
    %10 = vsyncpa [#allocation4], 0
    // Predicated region
    $region2: #{_lambda_.8} parent=1 // pred_check
      _
    $region3: #{_lambda_.8} parent=1 // pred_check_branch
      %12 = sbr.rel (0) target = $region5
    $region4: #{_lambda_.8} parent=1 // pred_region
      _
    $region5: #{_lambda_.8} parent=1 // pred_fallthru
      _
    // Predicated region
    $region6: #{_lambda_.8} parent=1 // pred_check
      _
    $region7: #{_lambda_.8} parent=1 // pred_check_branch
      %14 = sbr.rel (0) target = $region9
    $region8: #{_lambda_.8} parent=1 // pred_region
      _
    $region9: #{_lambda_.8} parent=1 // pred_fallthru
      _
    // Predicated region
    $region10: #{_lambda_.8} parent=1 // pred_check
      _
    $region11: #{_lambda_.8} parent=1 // pred_check_branch
      %16 = sbr.rel (0) target = $region13
    $region12: #{_lambda_.8} parent=1 // pred_region
      _
    $region13: #{_lambda_.8} parent=1 // pred_fallthru
      _
    %p18 = scmp.eq.s32.totalorder 0, 0
    // Predicated region
    $region14: #{_lambda_.8} parent=1 // pred_check
      %p19 = pneg %p18
    $region15: #{_lambda_.8} parent=1 // pred_check_branch
      %21 = sbr.rel (%p19) target = $region17
    $region16: #{_lambda_.8} parent=1 // pred_region
      %22 = vst [vmem:[#allocation2] sm:$0xff] 0.0
      %23 = vst [vmem:[#allocation2 + $0x8] sm:$0xff] 0.0
      %24 = vst [vmem:[#allocation2 + $0x10] sm:$0xff] 0.0
      %25 = vst [vmem:[#allocation2 + $0x18] sm:$0xff] 0.0
      %26 = vst [vmem:[#allocation2 + $0x20] sm:$0xff] 0.0
      %27 = vst [vmem:[#allocation2 + $0x28] sm:$0xff] 0.0
      %28 = vst [vmem:[#allocation2 + $0x30] sm:$0xff] 0.0
      %29 = vst [vmem:[#allocation2 + $0x38] sm:$0xff] 0.0
      %30 = vst [vmem:[#allocation2 + $0x40] sm:$0xff] 0.0
      %31 = vst [vmem:[#allocation2 + $0x48] sm:$0xff] 0.0
      %32 = vst [vmem:[#allocation2 + $0x50] sm:$0xff] 0.0
      %33 = vst [vmem:[#allocation2 + $0x58] sm:$0xff] 0.0
      %34 = vst [vmem:[#allocation2 + $0x60] sm:$0xff] 0.0
      %35 = vst [vmem:[#allocation2 + $0x68] sm:$0xff] 0.0
      %36 = vst [vmem:[#allocation2 + $0x70] sm:$0xff] 0.0
      %37 = vst [vmem:[#allocation2 + $0x78] sm:$0xff] 0.0
      %38 = vst [vmem:[#allocation2 + $0x80] sm:$0xff] 0.0
      %39 = vst [vmem:[#allocation2 + $0x88] sm:$0xff] 0.0
      %40 = vst [vmem:[#allocation2 + $0x90] sm:$0xff] 0.0
      %41 = vst [vmem:[#allocation2 + $0x98] sm:$0xff] 0.0
      %42 = vst [vmem:[#allocation2 + $0xa0] sm:$0xff] 0.0
      %43 = vst [vmem:[#allocation2 + $0xa8] sm:$0xff] 0.0
      %44 = vst [vmem:[#allocation2 + $0xb0] sm:$0xff] 0.0
      %45 = vst [vmem:[#allocation2 + $0xb8] sm:$0xff] 0.0
      %46 = vst [vmem:[#allocation2 + $0xc0] sm:$0xff] 0.0
      %47 = vst [vmem:[#allocation2 + $0xc8] sm:$0xff] 0.0
      %48 = vst [vmem:[#allocation2 + $0xd0] sm:$0xff] 0.0
      %49 = vst [vmem:[#allocation2 + $0xd8] sm:$0xff] 0.0
      %50 = vst [vmem:[#allocation2 + $0xe0] sm:$0xff] 0.0
      %51 = vst [vmem:[#allocation2 + $0xe8] sm:$0xff] 0.0
      %52 = vst [vmem:[#allocation2 + $0xf0] sm:$0xff] 0.0
      %53 = vst [vmem:[#allocation2 + $0xf8] sm:$0xff] 0.0
      %54 = vst [vmem:[#allocation2 + $0x100] sm:$0xff] 0.0
      %55 = vst [vmem:[#allocation2 + $0x108] sm:$0xff] 0.0
      %56 = vst [vmem:[#allocation2 + $0x110] sm:$0xff] 0.0
      %57 = vst [vmem:[#allocation2 + $0x118] sm:$0xff] 0.0
      %58 = vst [vmem:[#allocation2 + $0x120] sm:$0xff] 0.0
      %59 = vst [vmem:[#allocation2 + $0x128] sm:$0xff] 0.0
      %60 = vst [vmem:[#allocation2 + $0x130] sm:$0xff] 0.0
      %61 = vst [vmem:[#allocation2 + $0x138] sm:$0xff] 0.0
      %62 = vst [vmem:[#allocation2 + $0x140] sm:$0xff] 0.0
      %63 = vst [vmem:[#allocation2 + $0x148] sm:$0xff] 0.0
      %64 = vst [vmem:[#allocation2 + $0x150] sm:$0xff] 0.0
      %65 = vst [vmem:[#allocation2 + $0x158] sm:$0xff] 0.0
      %66 = vst [vmem:[#allocation2 + $0x160] sm:$0xff] 0.0
      %67 = vst [vmem:[#allocation2 + $0x168] sm:$0xff] 0.0
      %68 = vst [vmem:[#allocation2 + $0x170] sm:$0xff] 0.0
      %69 = vst [vmem:[#allocation2 + $0x178] sm:$0xff] 0.0
      %70 = vst [vmem:[#allocation2 + $0x180] sm:$0xff] 0.0
      %71 = vst [vmem:[#allocation2 + $0x188] sm:$0xff] 0.0
      %72 = vst [vmem:[#allocation2 + $0x190] sm:$0xff] 0.0
      %73 = vst [vmem:[#allocation2 + $0x198] sm:$0xff] 0.0
      %74 = vst [vmem:[#allocation2 + $0x1a0] sm:$0xff] 0.0
      %75 = vst [vmem:[#allocation2 + $0x1a8] sm:$0xff] 0.0
      %76 = vst [vmem:[#allocation2 + $0x1b0] sm:$0xff] 0.0
      %77 = vst [vmem:[#allocation2 + $0x1b8] sm:$0xff] 0.0
      %78 = vst [vmem:[#allocation2 + $0x1c0] sm:$0xff] 0.0
      %79 = vst [vmem:[#allocation2 + $0x1c8] sm:$0xff] 0.0
      %80 = vst [vmem:[#allocation2 + $0x1d0] sm:$0xff] 0.0
      %81 = vst [vmem:[#allocation2 + $0x1d8] sm:$0xff] 0.0
      %82 = vst [vmem:[#allocation2 + $0x1e0] sm:$0xff] 0.0
      %83 = vst [vmem:[#allocation2 + $0x1e8] sm:$0xff] 0.0
      %84 = vst [vmem:[#allocation2 + $0x1f0] sm:$0xff] 0.0
      %85 = vst [vmem:[#allocation2 + $0x1f8] sm:$0xff] 0.0
    $region17: #{_lambda_.8} parent=1 // pred_fallthru
      _
    %v86 = vld [vmem:[#allocation2] sm:$0xff]
    %v87 = vld [vmem:[#allocation2 + $0x8] sm:$0xff]
    %v88 = vld [vmem:[#allocation2 + $0x10] sm:$0xff]
    %v89 = vld [vmem:[#allocation2 + $0x18] sm:$0xff]
    %v90 = vld [vmem:[#allocation2 + $0x20] sm:$0xff]
    %v91 = vld [vmem:[#allocation2 + $0x28] sm:$0xff]
    %v92 = vld [vmem:[#allocation2 + $0x30] sm:$0xff]
    %v93 = vld [vmem:[#allocation2 + $0x38] sm:$0xff]
    %v94 = vld [vmem:[#allocation2 + $0x40] sm:$0xff]
    %v95 = vld [vmem:[#allocation2 + $0x48] sm:$0xff]
    %v96 = vld [vmem:[#allocation2 + $0x50] sm:$0xff]
    %v97 = vld [vmem:[#allocation2 + $0x58] sm:$0xff]
    %v98 = vld [vmem:[#allocation2 + $0x60] sm:$0xff]
    %v99 = vld [vmem:[#allocation2 + $0x68] sm:$0xff]
    %v100 = vld [vmem:[#allocation2 + $0x70] sm:$0xff]
    %v101 = vld [vmem:[#allocation2 + $0x78] sm:$0xff]
    %v102 = vld [vmem:[#allocation2 + $0x80] sm:$0xff]
    %v103 = vld [vmem:[#allocation2 + $0x88] sm:$0xff]
    %v104 = vld [vmem:[#allocation2 + $0x90] sm:$0xff]
    %v105 = vld [vmem:[#allocation2 + $0x98] sm:$0xff]
    %v106 = vld [vmem:[#allocation2 + $0xa0] sm:$0xff]
    %v107 = vld [vmem:[#allocation2 + $0xa8] sm:$0xff]
    %v108 = vld [vmem:[#allocation2 + $0xb0] sm:$0xff]
    %v109 = vld [vmem:[#allocation2 + $0xb8] sm:$0xff]
    %v110 = vld [vmem:[#allocation2 + $0xc0] sm:$0xff]
    %v111 = vld [vmem:[#allocation2 + $0xc8] sm:$0xff]
    %v112 = vld [vmem:[#allocation2 + $0xd0] sm:$0xff]
    %v113 = vld [vmem:[#allocation2 + $0xd8] sm:$0xff]
    %v114 = vld [vmem:[#allocation2 + $0xe0] sm:$0xff]
    %v115 = vld [vmem:[#allocation2 + $0xe8] sm:$0xff]
    %v116 = vld [vmem:[#allocation2 + $0xf0] sm:$0xff]
    %v117 = vld [vmem:[#allocation2 + $0xf8] sm:$0xff]
    %v118 = vld [vmem:[#allocation2 + $0x100] sm:$0xff]
    %v119 = vld [vmem:[#allocation2 + $0x108] sm:$0xff]
    %v120 = vld [vmem:[#allocation2 + $0x110] sm:$0xff]
    %v121 = vld [vmem:[#allocation2 + $0x118] sm:$0xff]
    %v122 = vld [vmem:[#allocation2 + $0x120] sm:$0xff]
    %v123 = vld [vmem:[#allocation2 + $0x128] sm:$0xff]
    %v124 = vld [vmem:[#allocation2 + $0x130] sm:$0xff]
    %v125 = vld [vmem:[#allocation2 + $0x138] sm:$0xff]
    %v126 = vld [vmem:[#allocation2 + $0x140] sm:$0xff]
    %v127 = vld [vmem:[#allocation2 + $0x148] sm:$0xff]
    %v128 = vld [vmem:[#allocation2 + $0x150] sm:$0xff]
    %v129 = vld [vmem:[#allocation2 + $0x158] sm:$0xff]
    %v130 = vld [vmem:[#allocation2 + $0x160] sm:$0xff]
    %v131 = vld [vmem:[#allocation2 + $0x168] sm:$0xff]
    %v132 = vld [vmem:[#allocation2 + $0x170] sm:$0xff]
    %v133 = vld [vmem:[#allocation2 + $0x178] sm:$0xff]
    %v134 = vld [vmem:[#allocation2 + $0x180] sm:$0xff]
    %v135 = vld [vmem:[#allocation2 + $0x188] sm:$0xff]
    %v136 = vld [vmem:[#allocation2 + $0x190] sm:$0xff]
    %v137 = vld [vmem:[#allocation2 + $0x198] sm:$0xff]
    %v138 = vld [vmem:[#allocation2 + $0x1a0] sm:$0xff]
    %v139 = vld [vmem:[#allocation2 + $0x1a8] sm:$0xff]
    %v140 = vld [vmem:[#allocation2 + $0x1b0] sm:$0xff]
    %v141 = vld [vmem:[#allocation2 + $0x1b8] sm:$0xff]
    %v142 = vld [vmem:[#allocation2 + $0x1c0] sm:$0xff]
    %v143 = vld [vmem:[#allocation2 + $0x1c8] sm:$0xff]
    %v144 = vld [vmem:[#allocation2 + $0x1d0] sm:$0xff]
    %v145 = vld [vmem:[#allocation2 + $0x1d8] sm:$0xff]
    %v146 = vld [vmem:[#allocation2 + $0x1e0] sm:$0xff]
    %v147 = vld [vmem:[#allocation2 + $0x1e8] sm:$0xff]
    %v148 = vld [vmem:[#allocation2 + $0x1f0] sm:$0xff]
    %v149 = vld [vmem:[#allocation2 + $0x1f8] sm:$0xff]
    %v150 = vld [vmem:[%s0] sm:$0xf]
    %v151 = vld [vmem:[%s0 + $0x4] sm:$0xf]
    %v152 = vld [vmem:[%s0 + $0x8] sm:$0xf]
    %v153 = vld [vmem:[%s0 + $0xc] sm:$0xf]
    %v154 = vld [vmem:[%s0 + $0x10] sm:$0xf]
    %v155 = vld [vmem:[%s0 + $0x14] sm:$0xf]
    %v156 = vld [vmem:[%s0 + $0x18] sm:$0xf]
    %v157 = vld [vmem:[%s0 + $0x1c] sm:$0xf]
    %v158 = vld [vmem:[%s0 + $0x20] sm:$0xf]
    %v159 = vld [vmem:[%s0 + $0x24] sm:$0xf]
    %v160 = vld [vmem:[%s0 + $0x28] sm:$0xf]
    %v161 = vld [vmem:[%s0 + $0x2c] sm:$0xf]
    %v162 = vld [vmem:[%s0 + $0x30] sm:$0xf]
    %v163 = vld [vmem:[%s0 + $0x34] sm:$0xf]
    %v164 = vld [vmem:[%s0 + $0x38] sm:$0xf]
    %v165 = vld [vmem:[%s0 + $0x3c] sm:$0xf]
    %v166 = vld [vmem:[%s0 + $0x40] sm:$0xf]
    %v167 = vld [vmem:[%s0 + $0x44] sm:$0xf]
    %v168 = vld [vmem:[%s0 + $0x48] sm:$0xf]
    %v169 = vld [vmem:[%s0 + $0x4c] sm:$0xf]
    %v170 = vld [vmem:[%s0 + $0x50] sm:$0xf]
    %v171 = vld [vmem:[%s0 + $0x54] sm:$0xf]
    %v172 = vld [vmem:[%s0 + $0x58] sm:$0xf]
    %v173 = vld [vmem:[%s0 + $0x5c] sm:$0xf]
    %v174 = vld [vmem:[%s0 + $0x60] sm:$0xf]
    %v175 = vld [vmem:[%s0 + $0x64] sm:$0xf]
    %v176 = vld [vmem:[%s0 + $0x68] sm:$0xf]
    %v177 = vld [vmem:[%s0 + $0x6c] sm:$0xf]
    %v178 = vld [vmem:[%s0 + $0x70] sm:$0xf]
    %v179 = vld [vmem:[%s0 + $0x74] sm:$0xf]
    %v180 = vld [vmem:[%s0 + $0x78] sm:$0xf]
    %v181 = vld [vmem:[%s0 + $0x7c] sm:$0xf]
    %v182 = vld [vmem:[%s0 + $0x80] sm:$0xf]
    %v183 = vld [vmem:[%s0 + $0x84] sm:$0xf]
    %v184 = vld [vmem:[%s0 + $0x88] sm:$0xf]
    %v185 = vld [vmem:[%s0 + $0x8c] sm:$0xf]
    %v186 = vld [vmem:[%s0 + $0x90] sm:$0xf]
    %v187 = vld [vmem:[%s0 + $0x94] sm:$0xf]
    %v188 = vld [vmem:[%s0 + $0x98] sm:$0xf]
    %v189 = vld [vmem:[%s0 + $0x9c] sm:$0xf]
    %v190 = vld [vmem:[%s0 + $0xa0] sm:$0xf]
    %v191 = vld [vmem:[%s0 + $0xa4] sm:$0xf]
    %v192 = vld [vmem:[%s0 + $0xa8] sm:$0xf]
    %v193 = vld [vmem:[%s0 + $0xac] sm:$0xf]
    %v194 = vld [vmem:[%s0 + $0xb0] sm:$0xf]
    %v195 = vld [vmem:[%s0 + $0xb4] sm:$0xf]
    %v196 = vld [vmem:[%s0 + $0xb8] sm:$0xf]
    %v197 = vld [vmem:[%s0 + $0xbc] sm:$0xf]
    %v198 = vld [vmem:[%s0 + $0xc0] sm:$0xf]
    %v199 = vld [vmem:[%s0 + $0xc4] sm:$0xf]
    %v200 = vld [vmem:[%s0 + $0xc8] sm:$0xf]
    %v201 = vld [vmem:[%s0 + $0xcc] sm:$0xf]
    %v202 = vld [vmem:[%s0 + $0xd0] sm:$0xf]
    %v203 = vld [vmem:[%s0 + $0xd4] sm:$0xf]
    %v204 = vld [vmem:[%s0 + $0xd8] sm:$0xf]
    %v205 = vld [vmem:[%s0 + $0xdc] sm:$0xf]
    %v206 = vld [vmem:[%s0 + $0xe0] sm:$0xf]
    %v207 = vld [vmem:[%s0 + $0xe4] sm:$0xf]
    %v208 = vld [vmem:[%s0 + $0xe8] sm:$0xf]
    %v209 = vld [vmem:[%s0 + $0xec] sm:$0xf]
    %v210 = vld [vmem:[%s0 + $0xf0] sm:$0xf]
    %v211 = vld [vmem:[%s0 + $0xf4] sm:$0xf]
    %v212 = vld [vmem:[%s0 + $0xf8] sm:$0xf]
    %v213 = vld [vmem:[%s0 + $0xfc] sm:$0xf]
    %v214 = vld [vmem:[%s1] sm:$0xf]
    %v215 = vld [vmem:[%s1 + $0x4] sm:$0xf]
    %v216 = vld [vmem:[%s1 + $0x8] sm:$0xf]
    %v217 = vld [vmem:[%s1 + $0xc] sm:$0xf]
    %v218 = vld [vmem:[%s1 + $0x10] sm:$0xf]
    %v219 = vld [vmem:[%s1 + $0x14] sm:$0xf]
    %v220 = vld [vmem:[%s1 + $0x18] sm:$0xf]
    %v221 = vld [vmem:[%s1 + $0x1c] sm:$0xf]
    %v222 = vld [vmem:[%s1 + $0x20] sm:$0xf]
    %v223 = vld [vmem:[%s1 + $0x24] sm:$0xf]
    %v224 = vld [vmem:[%s1 + $0x28] sm:$0xf]
    %v225 = vld [vmem:[%s1 + $0x2c] sm:$0xf]
    %v226 = vld [vmem:[%s1 + $0x30] sm:$0xf]
    %v227 = vld [vmem:[%s1 + $0x34] sm:$0xf]
    %v228 = vld [vmem:[%s1 + $0x38] sm:$0xf]
    %v229 = vld [vmem:[%s1 + $0x3c] sm:$0xf]
    %v294 = vunpack.c.l.b16 %v150
    %v295 = vunpack.c.l.b16 %v151
    %v296 = vunpack.c.l.b16 %v152
    %v297 = vunpack.c.l.b16 %v153
    %v298 = vunpack.c.l.b16 %v154
    %v299 = vunpack.c.l.b16 %v155
    %v300 = vunpack.c.l.b16 %v156
    %v301 = vunpack.c.l.b16 %v157
    %v302 = vunpack.c.l.b16 %v158
    %v303 = vunpack.c.l.b16 %v159
    %v304 = vunpack.c.l.b16 %v160
    %v305 = vunpack.c.l.b16 %v161
    %v306 = vunpack.c.l.b16 %v162
    %v307 = vunpack.c.l.b16 %v163
    %v308 = vunpack.c.l.b16 %v164
    %v309 = vunpack.c.l.b16 %v165
    %v310 = vunpack.c.l.b16 %v166
    %v311 = vunpack.c.l.b16 %v167
    %v312 = vunpack.c.l.b16 %v168
    %v313 = vunpack.c.l.b16 %v169
    %v314 = vunpack.c.l.b16 %v170
    %v315 = vunpack.c.l.b16 %v171
    %v316 = vunpack.c.l.b16 %v172
    %v317 = vunpack.c.l.b16 %v173
    %v318 = vunpack.c.l.b16 %v174
    %v319 = vunpack.c.l.b16 %v175
    %v320 = vunpack.c.l.b16 %v176
    %v321 = vunpack.c.l.b16 %v177
    %v322 = vunpack.c.l.b16 %v178
    %v323 = vunpack.c.l.b16 %v179
    %v324 = vunpack.c.l.b16 %v180
    %v325 = vunpack.c.l.b16 %v181
    %v326 = vunpack.c.l.b16 %v182
    %v327 = vunpack.c.l.b16 %v183
    %v328 = vunpack.c.l.b16 %v184
    %v329 = vunpack.c.l.b16 %v185
    %v330 = vunpack.c.l.b16 %v186
    %v331 = vunpack.c.l.b16 %v187
    %v332 = vunpack.c.l.b16 %v188
    %v333 = vunpack.c.l.b16 %v189
    %v334 = vunpack.c.l.b16 %v190
    %v335 = vunpack.c.l.b16 %v191
    %v336 = vunpack.c.l.b16 %v192
    %v337 = vunpack.c.l.b16 %v193
    %v338 = vunpack.c.l.b16 %v194
    %v339 = vunpack.c.l.b16 %v195
    %v340 = vunpack.c.l.b16 %v196
    %v341 = vunpack.c.l.b16 %v197
    %v342 = vunpack.c.l.b16 %v198
    %v343 = vunpack.c.l.b16 %v199
    %v344 = vunpack.c.l.b16 %v200
    %v345 = vunpack.c.l.b16 %v201
    %v346 = vunpack.c.l.b16 %v202
    %v347 = vunpack.c.l.b16 %v203
    %v348 = vunpack.c.l.b16 %v204
    %v349 = vunpack.c.l.b16 %v205
    %v350 = vunpack.c.l.b16 %v206
    %v351 = vunpack.c.l.b16 %v207
    %v352 = vunpack.c.l.b16 %v208
    %v353 = vunpack.c.l.b16 %v209
    %v354 = vunpack.c.l.b16 %v210
    %v355 = vunpack.c.l.b16 %v211
    %v356 = vunpack.c.l.b16 %v212
    %v357 = vunpack.c.l.b16 %v213
    %v358 = vpack.c.b16 %v295, %v294
    %v359 = vpack.c.b16 %v297, %v296
    %v360 = vpack.c.b16 %v299, %v298
    %v361 = vpack.c.b16 %v301, %v300
    %v362 = vpack.c.b16 %v303, %v302
    %v363 = vpack.c.b16 %v305, %v304
    %v364 = vpack.c.b16 %v307, %v306
    %v365 = vpack.c.b16 %v309, %v308
    %v366 = vpack.c.b16 %v311, %v310
    %v367 = vpack.c.b16 %v313, %v312
    %v368 = vpack.c.b16 %v315, %v314
    %v369 = vpack.c.b16 %v317, %v316
    %v370 = vpack.c.b16 %v319, %v318
    %v371 = vpack.c.b16 %v321, %v320
    %v372 = vpack.c.b16 %v323, %v322
    %v373 = vpack.c.b16 %v325, %v324
    %v374 = vpack.c.b16 %v327, %v326
    %v375 = vpack.c.b16 %v329, %v328
    %v376 = vpack.c.b16 %v331, %v330
    %v377 = vpack.c.b16 %v333, %v332
    %v378 = vpack.c.b16 %v335, %v334
    %v379 = vpack.c.b16 %v337, %v336
    %v380 = vpack.c.b16 %v339, %v338
    %v381 = vpack.c.b16 %v341, %v340
    %v382 = vpack.c.b16 %v343, %v342
    %v383 = vpack.c.b16 %v345, %v344
    %v384 = vpack.c.b16 %v347, %v346
    %v385 = vpack.c.b16 %v349, %v348
    %v386 = vpack.c.b16 %v351, %v350
    %v387 = vpack.c.b16 %v353, %v352
    %v388 = vpack.c.b16 %v355, %v354
    %v389 = vpack.c.b16 %v357, %v356
    %v438 = vunpack.c.l.b16 %v214
    %v439 = vunpack.c.l.b16 %v215
    %v440 = vunpack.c.l.b16 %v216
    %v441 = vunpack.c.l.b16 %v217
    %v442 = vunpack.c.l.b16 %v218
    %v443 = vunpack.c.l.b16 %v219
    %v444 = vunpack.c.l.b16 %v220
    %v445 = vunpack.c.l.b16 %v221
    %v446 = vunpack.c.l.b16 %v222
    %v447 = vunpack.c.l.b16 %v223
    %v448 = vunpack.c.l.b16 %v224
    %v449 = vunpack.c.l.b16 %v225
    %v450 = vunpack.c.l.b16 %v226
    %v451 = vunpack.c.l.b16 %v227
    %v452 = vunpack.c.l.b16 %v228
    %v453 = vunpack.c.l.b16 %v229
    %v454 = vpack.c.b16 %v439, %v438
    %v455 = vpack.c.b16 %v441, %v440
    %v456 = vpack.c.b16 %v443, %v442
    %v457 = vpack.c.b16 %v445, %v444
    %v458 = vpack.c.b16 %v447, %v446
    %v459 = vpack.c.b16 %v449, %v448
    %v460 = vpack.c.b16 %v451, %v450
    %v461 = vpack.c.b16 %v453, %v452
    %470 = vmatprep.subr.bf16.mxu0 0
    %471 = vmatpush1.bf16.msra.mxu0 %v454
    %472 = vmatprep.subr.bf16.mxu0 0
    %473 = vmatpush1.bf16.msra.mxu0 %v455
    %474 = vmatprep.subr.bf16.mxu0 0
    %475 = vmatpush1.bf16.msra.mxu0 %v456
    %476 = vmatprep.subr.bf16.mxu0 0
    %477 = vmatpush1.bf16.msra.mxu0 %v457
    %478 = vmatprep.subr.bf16.mxu0 0
    %479 = vmatpush1.bf16.msra.mxu0 %v458
    %480 = vmatprep.subr.bf16.mxu0 0
    %481 = vmatpush1.bf16.msra.mxu0 %v459
    %482 = vmatprep.subr.bf16.mxu0 0
    %483 = vmatpush1.bf16.msra.mxu0 %v460
    %484 = vmatprep.subr.bf16.mxu0 0
    %485 = vmatpush1.bf16.msra.mxu0 %v461
    %486 = vmatprep.subr.bf16.mxu0 0
    %487 = vmatpush1.bf16.msra.mxu0 0
    %488 = vmatprep.subr.bf16.mxu0 0
    %489 = vmatpush1.bf16.msra.mxu0 0
    %490 = vmatprep.subr.bf16.mxu0 0
    %491 = vmatpush1.bf16.msra.mxu0 0
    %492 = vmatprep.subr.bf16.mxu0 0
    %493 = vmatpush1.bf16.msra.mxu0 0
    %494 = vmatprep.subr.bf16.mxu0 0
    %495 = vmatpush1.bf16.msra.mxu0 0
    %496 = vmatprep.subr.bf16.mxu0 0
    %497 = vmatpush1.bf16.msra.mxu0 0
    %498 = vmatprep.subr.bf16.mxu0 0
    %499 = vmatpush1.bf16.msra.mxu0 0
    %500 = vmatprep.subr.bf16.mxu0 0
    %501 = vmatpush1.bf16.msra.mxu0 0
    %502 = vmatprep.mubr.bf16.mxu0 0
    %503 = vmatmul.mubr.bf16.gmra.mrb[0].mxu0 %v358
    %v504 = vpop.f32.mrb[0].mxu0
    %v505 = vadd.f32 0.0, %v504
    %v506 = vpop.f32.mrb[0].mxu0
    %v507 = vpop.f32.mrb[0].mxu0
    %v508 = vadd.f32 0.0, %v507
    %v509 = vpop.f32.mrb[0].mxu0
    %510 = vmatprep.mubr.bf16.mxu0 0
    %511 = vmatmul.mubr.bf16.gmra.mrb[0].mxu0 %v359
    %v512 = vpop.f32.mrb[0].mxu0
    %v513 = vadd.f32 0.0, %v512
    %v514 = vpop.f32.mrb[0].mxu0
    %v515 = vpop.f32.mrb[0].mxu0
    %v516 = vadd.f32 0.0, %v515
    %v517 = vpop.f32.mrb[0].mxu0
    %518 = vmatprep.mubr.bf16.mxu0 0
    %519 = vmatmul.mubr.bf16.gmra.mrb[0].mxu0 %v360
    %v520 = vpop.f32.mrb[0].mxu0
    %v521 = vadd.f32 0.0, %v520
    %v522 = vpop.f32.mrb[0].mxu0
    %v523 = vpop.f32.mrb[0].mxu0
    %v524 = vadd.f32 0.0, %v523
    %v525 = vpop.f32.mrb[0].mxu0
    %526 = vmatprep.mubr.bf16.mxu0 0
    %527 = vmatmul.mubr.bf16.gmra.mrb[0].mxu0 %v361
    %v528 = vpop.f32.mrb[0].mxu0
    %v529 = vadd.f32 0.0, %v528
    %v530 = vpop.f32.mrb[0].mxu0
    %v531 = vpop.f32.mrb[0].mxu0
    %v532 = vadd.f32 0.0, %v531
    %v533 = vpop.f32.mrb[0].mxu0
    %534 = vmatprep.mubr.bf16.mxu0 0
    %535 = vmatmul.mubr.bf16.gmra.mrb[0].mxu0 %v362
    %v536 = vpop.f32.mrb[0].mxu0
    %v537 = vadd.f32 0.0, %v536
    %v538 = vpop.f32.mrb[0].mxu0
    %v539 = vpop.f32.mrb[0].mxu0
    %v540 = vadd.f32 0.0, %v539
    %v541 = vpop.f32.mrb[0].mxu0
    %542 = vmatprep.mubr.bf16.mxu0 0
    %543 = vmatmul.mubr.bf16.gmra.mrb[0].mxu0 %v363
    %v544 = vpop.f32.mrb[0].mxu0
    %v545 = vadd.f32 0.0, %v544
    %v546 = vpop.f32.mrb[0].mxu0
    %v547 = vpop.f32.mrb[0].mxu0
    %v548 = vadd.f32 0.0, %v547
    %v549 = vpop.f32.mrb[0].mxu0
    %550 = vmatprep.mubr.bf16.mxu0 0
    %551 = vmatmul.mubr.bf16.gmra.mrb[0].mxu0 %v364
    %v552 = vpop.f32.mrb[0].mxu0
    %v553 = vadd.f32 0.0, %v552
    %v554 = vpop.f32.mrb[0].mxu0
    %v555 = vpop.f32.mrb[0].mxu0
    %v556 = vadd.f32 0.0, %v555
    %v557 = vpop.f32.mrb[0].mxu0
    %558 = vmatprep.mubr.bf16.mxu0 0
    %559 = vmatmul.mubr.bf16.gmra.mrb[0].mxu0 %v365
    %v560 = vpop.f32.mrb[0].mxu0
    %v561 = vadd.f32 0.0, %v560
    %v562 = vpop.f32.mrb[0].mxu0
    %v563 = vpop.f32.mrb[0].mxu0
    %v564 = vadd.f32 0.0, %v563
    %v565 = vpop.f32.mrb[0].mxu0
    %566 = vmatprep.mubr.bf16.mxu0 0
    %567 = vmatmul.mubr.bf16.gmra.mrb[0].mxu0 %v366
    %v568 = vpop.f32.mrb[0].mxu0
    %v569 = vadd.f32 0.0, %v568
    %v570 = vpop.f32.mrb[0].mxu0
    %v571 = vpop.f32.mrb[0].mxu0
    %v572 = vadd.f32 0.0, %v571
    %v573 = vpop.f32.mrb[0].mxu0
    %574 = vmatprep.mubr.bf16.mxu0 0
    %575 = vmatmul.mubr.bf16.gmra.mrb[0].mxu0 %v367
    %v576 = vpop.f32.mrb[0].mxu0
    %v577 = vadd.f32 0.0, %v576
    %v578 = vpop.f32.mrb[0].mxu0
    %v579 = vpop.f32.mrb[0].mxu0
    %v580 = vadd.f32 0.0, %v579
    %v581 = vpop.f32.mrb[0].mxu0
    %582 = vmatprep.mubr.bf16.mxu0 0
    %583 = vmatmul.mubr.bf16.gmra.mrb[0].mxu0 %v368
    %v584 = vpop.f32.mrb[0].mxu0
    %v585 = vadd.f32 0.0, %v584
    %v586 = vpop.f32.mrb[0].mxu0
    %v587 = vpop.f32.mrb[0].mxu0
    %v588 = vadd.f32 0.0, %v587
    %v589 = vpop.f32.mrb[0].mxu0
    %590 = vmatprep.mubr.bf16.mxu0 0
    %591 = vmatmul.mubr.bf16.gmra.mrb[0].mxu0 %v369
    %v592 = vpop.f32.mrb[0].mxu0
    %v593 = vadd.f32 0.0, %v592
    %v594 = vpop.f32.mrb[0].mxu0
    %v595 = vpop.f32.mrb[0].mxu0
    %v596 = vadd.f32 0.0, %v595
    %v597 = vpop.f32.mrb[0].mxu0
    %598 = vmatprep.mubr.bf16.mxu0 0
    %599 = vmatmul.mubr.bf16.gmra.mrb[0].mxu0 %v370
    %v600 = vpop.f32.mrb[0].mxu0
    %v601 = vadd.f32 0.0, %v600
    %v602 = vpop.f32.mrb[0].mxu0
    %v603 = vpop.f32.mrb[0].mxu0
    %v604 = vadd.f32 0.0, %v603
    %v605 = vpop.f32.mrb[0].mxu0
    %606 = vmatprep.mubr.bf16.mxu0 0
    %607 = vmatmul.mubr.bf16.gmra.mrb[0].mxu0 %v371
    %v608 = vpop.f32.mrb[0].mxu0
    %v609 = vadd.f32 0.0, %v608
    %v610 = vpop.f32.mrb[0].mxu0
    %v611 = vpop.f32.mrb[0].mxu0
    %v612 = vadd.f32 0.0, %v611
    %v613 = vpop.f32.mrb[0].mxu0
    %614 = vmatprep.mubr.bf16.mxu0 0
    %615 = vmatmul.mubr.bf16.gmra.mrb[0].mxu0 %v372
    %v616 = vpop.f32.mrb[0].mxu0
    %v617 = vadd.f32 0.0, %v616
    %v618 = vpop.f32.mrb[0].mxu0
    %v619 = vpop.f32.mrb[0].mxu0
    %v620 = vadd.f32 0.0, %v619
    %v621 = vpop.f32.mrb[0].mxu0
    %622 = vmatprep.mubr.bf16.mxu0 0
    %623 = vmatmul.mubr.bf16.gmra.mrb[0].mxu0 %v373
    %v624 = vpop.f32.mrb[0].mxu0
    %v625 = vadd.f32 0.0, %v624
    %v626 = vpop.f32.mrb[0].mxu0
    %v627 = vpop.f32.mrb[0].mxu0
    %v628 = vadd.f32 0.0, %v627
    %v629 = vpop.f32.mrb[0].mxu0
    %630 = vmatprep.mubr.bf16.mxu0 0
    %631 = vmatmul.mubr.bf16.gmra.mrb[0].mxu0 %v374
    %v632 = vpop.f32.mrb[0].mxu0
    %v633 = vadd.f32 0.0, %v632
    %v634 = vpop.f32.mrb[0].mxu0
    %v635 = vpop.f32.mrb[0].mxu0
    %v636 = vadd.f32 0.0, %v635
    %v637 = vpop.f32.mrb[0].mxu0
    %638 = vmatprep.mubr.bf16.mxu0 0
    %639 = vmatmul.mubr.bf16.gmra.mrb[0].mxu0 %v375
    %v640 = vpop.f32.mrb[0].mxu0
    %v641 = vadd.f32 0.0, %v640
    %v642 = vpop.f32.mrb[0].mxu0
    %v643 = vpop.f32.mrb[0].mxu0
    %v644 = vadd.f32 0.0, %v643
    %v645 = vpop.f32.mrb[0].mxu0
    %646 = vmatprep.mubr.bf16.mxu0 0
    %647 = vmatmul.mubr.bf16.gmra.mrb[0].mxu0 %v376
    %v648 = vpop.f32.mrb[0].mxu0
    %v649 = vadd.f32 0.0, %v648
    %v650 = vpop.f32.mrb[0].mxu0
    %v651 = vpop.f32.mrb[0].mxu0
    %v652 = vadd.f32 0.0, %v651
    %v653 = vpop.f32.mrb[0].mxu0
    %654 = vmatprep.mubr.bf16.mxu0 0
    %655 = vmatmul.mubr.bf16.gmra.mrb[0].mxu0 %v377
    %v656 = vpop.f32.mrb[0].mxu0
    %v657 = vadd.f32 0.0, %v656
    %v658 = vpop.f32.mrb[0].mxu0
    %v659 = vpop.f32.mrb[0].mxu0
    %v660 = vadd.f32 0.0, %v659
    %v661 = vpop.f32.mrb[0].mxu0
    %662 = vmatprep.mubr.bf16.mxu0 0
    %663 = vmatmul.mubr.bf16.gmra.mrb[0].mxu0 %v378
    %v664 = vpop.f32.mrb[0].mxu0
    %v665 = vadd.f32 0.0, %v664
    %v666 = vpop.f32.mrb[0].mxu0
    %v667 = vpop.f32.mrb[0].mxu0
    %v668 = vadd.f32 0.0, %v667
    %v669 = vpop.f32.mrb[0].mxu0
    %670 = vmatprep.mubr.bf16.mxu0 0
    %671 = vmatmul.mubr.bf16.gmra.mrb[0].mxu0 %v379
    %v672 = vpop.f32.mrb[0].mxu0
    %v673 = vadd.f32 0.0, %v672
    %v674 = vpop.f32.mrb[0].mxu0
    %v675 = vpop.f32.mrb[0].mxu0
    %v676 = vadd.f32 0.0, %v675
    %v677 = vpop.f32.mrb[0].mxu0
    %678 = vmatprep.mubr.bf16.mxu0 0
    %679 = vmatmul.mubr.bf16.gmra.mrb[0].mxu0 %v380
    %v680 = vpop.f32.mrb[0].mxu0
    %v681 = vadd.f32 0.0, %v680
    %v682 = vpop.f32.mrb[0].mxu0
    %v683 = vpop.f32.mrb[0].mxu0
    %v684 = vadd.f32 0.0, %v683
    %v685 = vpop.f32.mrb[0].mxu0
    %686 = vmatprep.mubr.bf16.mxu0 0
    %687 = vmatmul.mubr.bf16.gmra.mrb[0].mxu0 %v381
    %v688 = vpop.f32.mrb[0].mxu0
    %v689 = vadd.f32 0.0, %v688
    %v690 = vpop.f32.mrb[0].mxu0
    %v691 = vpop.f32.mrb[0].mxu0
    %v692 = vadd.f32 0.0, %v691
    %v693 = vpop.f32.mrb[0].mxu0
    %694 = vmatprep.mubr.bf16.mxu0 0
    %695 = vmatmul.mubr.bf16.gmra.mrb[0].mxu0 %v382
    %v696 = vpop.f32.mrb[0].mxu0
    %v697 = vadd.f32 0.0, %v696
    %v698 = vpop.f32.mrb[0].mxu0
    %v699 = vpop.f32.mrb[0].mxu0
    %v700 = vadd.f32 0.0, %v699
    %v701 = vpop.f32.mrb[0].mxu0
    %702 = vmatprep.mubr.bf16.mxu0 0
    %703 = vmatmul.mubr.bf16.gmra.mrb[0].mxu0 %v383
    %v704 = vpop.f32.mrb[0].mxu0
    %v705 = vadd.f32 0.0, %v704
    %v706 = vpop.f32.mrb[0].mxu0
    %v707 = vpop.f32.mrb[0].mxu0
    %v708 = vadd.f32 0.0, %v707
    %v709 = vpop.f32.mrb[0].mxu0
    %710 = vmatprep.mubr.bf16.mxu0 0
    %711 = vmatmul.mubr.bf16.gmra.mrb[0].mxu0 %v384
    %v712 = vpop.f32.mrb[0].mxu0
    %v713 = vadd.f32 0.0, %v712
    %v714 = vpop.f32.mrb[0].mxu0
    %v715 = vpop.f32.mrb[0].mxu0
    %v716 = vadd.f32 0.0, %v715
    %v717 = vpop.f32.mrb[0].mxu0
    %718 = vmatprep.mubr.bf16.mxu0 0
    %719 = vmatmul.mubr.bf16.gmra.mrb[0].mxu0 %v385
    %v720 = vpop.f32.mrb[0].mxu0
    %v721 = vadd.f32 0.0, %v720
    %v722 = vpop.f32.mrb[0].mxu0
    %v723 = vpop.f32.mrb[0].mxu0
    %v724 = vadd.f32 0.0, %v723
    %v725 = vpop.f32.mrb[0].mxu0
    %726 = vmatprep.mubr.bf16.mxu0 0
    %727 = vmatmul.mubr.bf16.gmra.mrb[0].mxu0 %v386
    %v728 = vpop.f32.mrb[0].mxu0
    %v729 = vadd.f32 0.0, %v728
    %v730 = vpop.f32.mrb[0].mxu0
    %v731 = vpop.f32.mrb[0].mxu0
    %v732 = vadd.f32 0.0, %v731
    %v733 = vpop.f32.mrb[0].mxu0
    %734 = vmatprep.mubr.bf16.mxu0 0
    %735 = vmatmul.mubr.bf16.gmra.mrb[0].mxu0 %v387
    %v736 = vpop.f32.mrb[0].mxu0
    %v737 = vadd.f32 0.0, %v736
    %v738 = vpop.f32.mrb[0].mxu0
    %v739 = vpop.f32.mrb[0].mxu0
    %v740 = vadd.f32 0.0, %v739
    %v741 = vpop.f32.mrb[0].mxu0
    %742 = vmatprep.mubr.bf16.mxu0 0
    %743 = vmatmul.mubr.bf16.gmra.mrb[0].mxu0 %v388
    %v744 = vpop.f32.mrb[0].mxu0
    %v745 = vadd.f32 0.0, %v744
    %v746 = vpop.f32.mrb[0].mxu0
    %v747 = vpop.f32.mrb[0].mxu0
    %v748 = vadd.f32 0.0, %v747
    %v749 = vpop.f32.mrb[0].mxu0
    %750 = vmatprep.mubr.bf16.mxu0 0
    %751 = vmatmul.mubr.bf16.gmra.mrb[0].mxu0 %v389
    %v752 = vpop.f32.mrb[0].mxu0
    %v753 = vadd.f32 0.0, %v752
    %v754 = vpop.f32.mrb[0].mxu0
    %v755 = vpop.f32.mrb[0].mxu0
    %v756 = vadd.f32 0.0, %v755
    %v757 = vpop.f32.mrb[0].mxu0
    %758 = vdwg.mxu0
    %v759 = vadd.f32 %v86, %v505
    %v760 = vadd.f32 %v87, %v508
    %v761 = vadd.f32 %v88, %v513
    %v762 = vadd.f32 %v89, %v516
    %v763 = vadd.f32 %v90, %v521
    %v764 = vadd.f32 %v91, %v524
    %v765 = vadd.f32 %v92, %v529
    %v766 = vadd.f32 %v93, %v532
    %v767 = vadd.f32 %v94, %v537
    %v768 = vadd.f32 %v95, %v540
    %v769 = vadd.f32 %v96, %v545
    %v770 = vadd.f32 %v97, %v548
    %v771 = vadd.f32 %v98, %v553
    %v772 = vadd.f32 %v99, %v556
    %v773 = vadd.f32 %v100, %v561
    %v774 = vadd.f32 %v101, %v564
    %v775 = vadd.f32 %v102, %v569
    %v776 = vadd.f32 %v103, %v572
    %v777 = vadd.f32 %v104, %v577
    %v778 = vadd.f32 %v105, %v580
    %v779 = vadd.f32 %v106, %v585
    %v780 = vadd.f32 %v107, %v588
    %v781 = vadd.f32 %v108, %v593
    %v782 = vadd.f32 %v109, %v596
    %v783 = vadd.f32 %v110, %v601
    %v784 = vadd.f32 %v111, %v604
    %v785 = vadd.f32 %v112, %v609
    %v786 = vadd.f32 %v113, %v612
    %v787 = vadd.f32 %v114, %v617
    %v788 = vadd.f32 %v115, %v620
    %v789 = vadd.f32 %v116, %v625
    %v790 = vadd.f32 %v117, %v628
    %v791 = vadd.f32 %v118, %v633
    %v792 = vadd.f32 %v119, %v636
    %v793 = vadd.f32 %v120, %v641
    %v794 = vadd.f32 %v121, %v644
    %v795 = vadd.f32 %v122, %v649
    %v796 = vadd.f32 %v123, %v652
    %v797 = vadd.f32 %v124, %v657
    %v798 = vadd.f32 %v125, %v660
    %v799 = vadd.f32 %v126, %v665
    %v800 = vadd.f32 %v127, %v668
    %v801 = vadd.f32 %v128, %v673
    %v802 = vadd.f32 %v129, %v676
    %v803 = vadd.f32 %v130, %v681
    %v804 = vadd.f32 %v131, %v684
    %v805 = vadd.f32 %v132, %v689
    %v806 = vadd.f32 %v133, %v692
    %v807 = vadd.f32 %v134, %v697
    %v808 = vadd.f32 %v135, %v700
    %v809 = vadd.f32 %v136, %v705
    %v810 = vadd.f32 %v137, %v708
    %v811 = vadd.f32 %v138, %v713
    %v812 = vadd.f32 %v139, %v716
    %v813 = vadd.f32 %v140, %v721
    %v814 = vadd.f32 %v141, %v724
    %v815 = vadd.f32 %v142, %v729
    %v816 = vadd.f32 %v143, %v732
    %v817 = vadd.f32 %v144, %v737
    %v818 = vadd.f32 %v145, %v740
    %v819 = vadd.f32 %v146, %v745
    %v820 = vadd.f32 %v147, %v748
    %v821 = vadd.f32 %v148, %v753
    %v822 = vadd.f32 %v149, %v756
    %823 = vst [vmem:[#allocation2] sm:$0xff] %v759
    %824 = vst [vmem:[#allocation2 + $0x8] sm:$0xff] %v760
    %825 = vst [vmem:[#allocation2 + $0x10] sm:$0xff] %v761
    %826 = vst [vmem:[#allocation2 + $0x18] sm:$0xff] %v762
    %827 = vst [vmem:[#allocation2 + $0x20] sm:$0xff] %v763
    %828 = vst [vmem:[#allocation2 + $0x28] sm:$0xff] %v764
    %829 = vst [vmem:[#allocation2 + $0x30] sm:$0xff] %v765
    %830 = vst [vmem:[#allocation2 + $0x38] sm:$0xff] %v766
    %831 = vst [vmem:[#allocation2 + $0x40] sm:$0xff] %v767
    %832 = vst [vmem:[#allocation2 + $0x48] sm:$0xff] %v768
    %833 = vst [vmem:[#allocation2 + $0x50] sm:$0xff] %v769
    %834 = vst [vmem:[#allocation2 + $0x58] sm:$0xff] %v770
    %835 = vst [vmem:[#allocation2 + $0x60] sm:$0xff] %v771
    %836 = vst [vmem:[#allocation2 + $0x68] sm:$0xff] %v772
    %837 = vst [vmem:[#allocation2 + $0x70] sm:$0xff] %v773
    %838 = vst [vmem:[#allocation2 + $0x78] sm:$0xff] %v774
    %839 = vst [vmem:[#allocation2 + $0x80] sm:$0xff] %v775
    %840 = vst [vmem:[#allocation2 + $0x88] sm:$0xff] %v776
    %841 = vst [vmem:[#allocation2 + $0x90] sm:$0xff] %v777
    %842 = vst [vmem:[#allocation2 + $0x98] sm:$0xff] %v778
    %843 = vst [vmem:[#allocation2 + $0xa0] sm:$0xff] %v779
    %844 = vst [vmem:[#allocation2 + $0xa8] sm:$0xff] %v780
    %845 = vst [vmem:[#allocation2 + $0xb0] sm:$0xff] %v781
    %846 = vst [vmem:[#allocation2 + $0xb8] sm:$0xff] %v782
    %847 = vst [vmem:[#allocation2 + $0xc0] sm:$0xff] %v783
    %848 = vst [vmem:[#allocation2 + $0xc8] sm:$0xff] %v784
    %849 = vst [vmem:[#allocation2 + $0xd0] sm:$0xff] %v785
    %850 = vst [vmem:[#allocation2 + $0xd8] sm:$0xff] %v786
    %851 = vst [vmem:[#allocation2 + $0xe0] sm:$0xff] %v787
    %852 = vst [vmem:[#allocation2 + $0xe8] sm:$0xff] %v788
    %853 = vst [vmem:[#allocation2 + $0xf0] sm:$0xff] %v789
    %854 = vst [vmem:[#allocation2 + $0xf8] sm:$0xff] %v790
    %855 = vst [vmem:[#allocation2 + $0x100] sm:$0xff] %v791
    %856 = vst [vmem:[#allocation2 + $0x108] sm:$0xff] %v792
    %857 = vst [vmem:[#allocation2 + $0x110] sm:$0xff] %v793
    %858 = vst [vmem:[#allocation2 + $0x118] sm:$0xff] %v794
    %859 = vst [vmem:[#allocation2 + $0x120] sm:$0xff] %v795
    %860 = vst [vmem:[#allocation2 + $0x128] sm:$0xff] %v796
    %861 = vst [vmem:[#allocation2 + $0x130] sm:$0xff] %v797
    %862 = vst [vmem:[#allocation2 + $0x138] sm:$0xff] %v798
    %863 = vst [vmem:[#allocation2 + $0x140] sm:$0xff] %v799
    %864 = vst [vmem:[#allocation2 + $0x148] sm:$0xff] %v800
    %865 = vst [vmem:[#allocation2 + $0x150] sm:$0xff] %v801
    %866 = vst [vmem:[#allocation2 + $0x158] sm:$0xff] %v802
    %867 = vst [vmem:[#allocation2 + $0x160] sm:$0xff] %v803
    %868 = vst [vmem:[#allocation2 + $0x168] sm:$0xff] %v804
    %869 = vst [vmem:[#allocation2 + $0x170] sm:$0xff] %v805
    %870 = vst [vmem:[#allocation2 + $0x178] sm:$0xff] %v806
    %871 = vst [vmem:[#allocation2 + $0x180] sm:$0xff] %v807
    %872 = vst [vmem:[#allocation2 + $0x188] sm:$0xff] %v808
    %873 = vst [vmem:[#allocation2 + $0x190] sm:$0xff] %v809
    %874 = vst [vmem:[#allocation2 + $0x198] sm:$0xff] %v810
    %875 = vst [vmem:[#allocation2 + $0x1a0] sm:$0xff] %v811
    %876 = vst [vmem:[#allocation2 + $0x1a8] sm:$0xff] %v812
    %877 = vst [vmem:[#allocation2 + $0x1b0] sm:$0xff] %v813
    %878 = vst [vmem:[#allocation2 + $0x1b8] sm:$0xff] %v814
    %879 = vst [vmem:[#allocation2 + $0x1c0] sm:$0xff] %v815
    %880 = vst [vmem:[#allocation2 + $0x1c8] sm:$0xff] %v816
    %881 = vst [vmem:[#allocation2 + $0x1d0] sm:$0xff] %v817
    %882 = vst [vmem:[#allocation2 + $0x1d8] sm:$0xff] %v818
    %883 = vst [vmem:[#allocation2 + $0x1e0] sm:$0xff] %v819
    %884 = vst [vmem:[#allocation2 + $0x1e8] sm:$0xff] %v820
    %885 = vst [vmem:[#allocation2 + $0x1f0] sm:$0xff] %v821
    %886 = vst [vmem:[#allocation2 + $0x1f8] sm:$0xff] %v822
    // Predicated region
    $region18: #{_lambda_.8} parent=1 // pred_check
      %p887 = pneg %p18
    $region19: #{_lambda_.8} parent=1 // pred_check_branch
      %889 = sbr.rel (%p887) target = $region21
    $region20: #{_lambda_.8} parent=1 // pred_region
      %v890 = vld [vmem:[#allocation2] sm:$0xff]
      %v891 = vld [vmem:[#allocation2 + $0x8] sm:$0xff]
      %v892 = vld [vmem:[#allocation2 + $0x10] sm:$0xff]
      %v893 = vld [vmem:[#allocation2 + $0x18] sm:$0xff]
      %v894 = vld [vmem:[#allocation2 + $0x20] sm:$0xff]
      %v895 = vld [vmem:[#allocation2 + $0x28] sm:$0xff]
      %v896 = vld [vmem:[#allocation2 + $0x30] sm:$0xff]
      %v897 = vld [vmem:[#allocation2 + $0x38] sm:$0xff]
      %v898 = vld [vmem:[#allocation2 + $0x40] sm:$0xff]
      %v899 = vld [vmem:[#allocation2 + $0x48] sm:$0xff]
      %v900 = vld [vmem:[#allocation2 + $0x50] sm:$0xff]
      %v901 = vld [vmem:[#allocation2 + $0x58] sm:$0xff]
      %v902 = vld [vmem:[#allocation2 + $0x60] sm:$0xff]
      %v903 = vld [vmem:[#allocation2 + $0x68] sm:$0xff]
      %v904 = vld [vmem:[#allocation2 + $0x70] sm:$0xff]
      %v905 = vld [vmem:[#allocation2 + $0x78] sm:$0xff]
      %v906 = vld [vmem:[#allocation2 + $0x80] sm:$0xff]
      %v907 = vld [vmem:[#allocation2 + $0x88] sm:$0xff]
      %v908 = vld [vmem:[#allocation2 + $0x90] sm:$0xff]
      %v909 = vld [vmem:[#allocation2 + $0x98] sm:$0xff]
      %v910 = vld [vmem:[#allocation2 + $0xa0] sm:$0xff]
      %v911 = vld [vmem:[#allocation2 + $0xa8] sm:$0xff]
      %v912 = vld [vmem:[#allocation2 + $0xb0] sm:$0xff]
      %v913 = vld [vmem:[#allocation2 + $0xb8] sm:$0xff]
      %v914 = vld [vmem:[#allocation2 + $0xc0] sm:$0xff]
      %v915 = vld [vmem:[#allocation2 + $0xc8] sm:$0xff]
      %v916 = vld [vmem:[#allocation2 + $0xd0] sm:$0xff]
      %v917 = vld [vmem:[#allocation2 + $0xd8] sm:$0xff]
      %v918 = vld [vmem:[#allocation2 + $0xe0] sm:$0xff]
      %v919 = vld [vmem:[#allocation2 + $0xe8] sm:$0xff]
      %v920 = vld [vmem:[#allocation2 + $0xf0] sm:$0xff]
      %v921 = vld [vmem:[#allocation2 + $0xf8] sm:$0xff]
      %v922 = vld [vmem:[#allocation2 + $0x100] sm:$0xff]
      %v923 = vld [vmem:[#allocation2 + $0x108] sm:$0xff]
      %v924 = vld [vmem:[#allocation2 + $0x110] sm:$0xff]
      %v925 = vld [vmem:[#allocation2 + $0x118] sm:$0xff]
      %v926 = vld [vmem:[#allocation2 + $0x120] sm:$0xff]
      %v927 = vld [vmem:[#allocation2 + $0x128] sm:$0xff]
      %v928 = vld [vmem:[#allocation2 + $0x130] sm:$0xff]
      %v929 = vld [vmem:[#allocation2 + $0x138] sm:$0xff]
      %v930 = vld [vmem:[#allocation2 + $0x140] sm:$0xff]
      %v931 = vld [vmem:[#allocation2 + $0x148] sm:$0xff]
      %v932 = vld [vmem:[#allocation2 + $0x150] sm:$0xff]
      %v933 = vld [vmem:[#allocation2 + $0x158] sm:$0xff]
      %v934 = vld [vmem:[#allocation2 + $0x160] sm:$0xff]
      %v935 = vld [vmem:[#allocation2 + $0x168] sm:$0xff]
      %v936 = vld [vmem:[#allocation2 + $0x170] sm:$0xff]
      %v937 = vld [vmem:[#allocation2 + $0x178] sm:$0xff]
      %v938 = vld [vmem:[#allocation2 + $0x180] sm:$0xff]
      %v939 = vld [vmem:[#allocation2 + $0x188] sm:$0xff]
      %v940 = vld [vmem:[#allocation2 + $0x190] sm:$0xff]
      %v941 = vld [vmem:[#allocation2 + $0x198] sm:$0xff]
      %v942 = vld [vmem:[#allocation2 + $0x1a0] sm:$0xff]
      %v943 = vld [vmem:[#allocation2 + $0x1a8] sm:$0xff]
      %v944 = vld [vmem:[#allocation2 + $0x1b0] sm:$0xff]
      %v945 = vld [vmem:[#allocation2 + $0x1b8] sm:$0xff]
      %v946 = vld [vmem:[#allocation2 + $0x1c0] sm:$0xff]
      %v947 = vld [vmem:[#allocation2 + $0x1c8] sm:$0xff]
      %v948 = vld [vmem:[#allocation2 + $0x1d0] sm:$0xff]
      %v949 = vld [vmem:[#allocation2 + $0x1d8] sm:$0xff]
      %v950 = vld [vmem:[#allocation2 + $0x1e0] sm:$0xff]
      %v951 = vld [vmem:[#allocation2 + $0x1e8] sm:$0xff]
      %v952 = vld [vmem:[#allocation2 + $0x1f0] sm:$0xff]
      %v953 = vld [vmem:[#allocation2 + $0x1f8] sm:$0xff]
      %v954 = vld [vmem:[%s2] sm:$0x1]
      %v956 = vlaneseq
      %v957 = vshrl.u32 %v956, 7
      %v958 = vsub.s32 0, %v957
      %v959 = vrot.slane %v954, %v958
      %v961 = vadd.f32 %v890, %v959
      %v962 = vadd.f32 %v891, %v959
      %v963 = vadd.f32 %v892, %v959
      %v964 = vadd.f32 %v893, %v959
      %v965 = vadd.f32 %v894, %v959
      %v966 = vadd.f32 %v895, %v959
      %v967 = vadd.f32 %v896, %v959
      %v968 = vadd.f32 %v897, %v959
      %v969 = vadd.f32 %v898, %v959
      %v970 = vadd.f32 %v899, %v959
      %v971 = vadd.f32 %v900, %v959
      %v972 = vadd.f32 %v901, %v959
      %v973 = vadd.f32 %v902, %v959
      %v974 = vadd.f32 %v903, %v959
      %v975 = vadd.f32 %v904, %v959
      %v976 = vadd.f32 %v905, %v959
      %v977 = vadd.f32 %v906, %v959
      %v978 = vadd.f32 %v907, %v959
      %v979 = vadd.f32 %v908, %v959
      %v980 = vadd.f32 %v909, %v959
      %v981 = vadd.f32 %v910, %v959
      %v982 = vadd.f32 %v911, %v959
      %v983 = vadd.f32 %v912, %v959
      %v984 = vadd.f32 %v913, %v959
      %v985 = vadd.f32 %v914, %v959
      %v986 = vadd.f32 %v915, %v959
      %v987 = vadd.f32 %v916, %v959
      %v988 = vadd.f32 %v917, %v959
      %v989 = vadd.f32 %v918, %v959
      %v990 = vadd.f32 %v919, %v959
      %v991 = vadd.f32 %v920, %v959
      %v992 = vadd.f32 %v921, %v959
      %v993 = vadd.f32 %v922, %v959
      %v994 = vadd.f32 %v923, %v959
      %v995 = vadd.f32 %v924, %v959
      %v996 = vadd.f32 %v925, %v959
      %v997 = vadd.f32 %v926, %v959
      %v998 = vadd.f32 %v927, %v959
      %v999 = vadd.f32 %v928, %v959
      %v1000 = vadd.f32 %v929, %v959
      %v1001 = vadd.f32 %v930, %v959
      %v1002 = vadd.f32 %v931, %v959
      %v1003 = vadd.f32 %v932, %v959
      %v1004 = vadd.f32 %v933, %v959
      %v1005 = vadd.f32 %v934, %v959
      %v1006 = vadd.f32 %v935, %v959
      %v1007 = vadd.f32 %v936, %v959
      %v1008 = vadd.f32 %v937, %v959
      %v1009 = vadd.f32 %v938, %v959
      %v1010 = vadd.f32 %v939, %v959
      %v1011 = vadd.f32 %v940, %v959
      %v1012 = vadd.f32 %v941, %v959
      %v1013 = vadd.f32 %v942, %v959
      %v1014 = vadd.f32 %v943, %v959
      %v1015 = vadd.f32 %v944, %v959
      %v1016 = vadd.f32 %v945, %v959
      %v1017 = vadd.f32 %v946, %v959
      %v1018 = vadd.f32 %v947, %v959
      %v1019 = vadd.f32 %v948, %v959
      %v1020 = vadd.f32 %v949, %v959
      %v1021 = vadd.f32 %v950, %v959
      %v1022 = vadd.f32 %v951, %v959
      %v1023 = vadd.f32 %v952, %v959
      %v1024 = vadd.f32 %v953, %v959
      %vm1025 = vcmp.ge.f32.partialorder %v961, 0.0
      %vm1026 = vcmp.ge.f32.partialorder %v962, 0.0
      %vm1027 = vcmp.ge.f32.partialorder %v963, 0.0
      %vm1028 = vcmp.ge.f32.partialorder %v964, 0.0
      %vm1029 = vcmp.ge.f32.partialorder %v965, 0.0
      %vm1030 = vcmp.ge.f32.partialorder %v966, 0.0
      %vm1031 = vcmp.ge.f32.partialorder %v967, 0.0
      %vm1032 = vcmp.ge.f32.partialorder %v968, 0.0
      %vm1033 = vcmp.ge.f32.partialorder %v969, 0.0
      %vm1034 = vcmp.ge.f32.partialorder %v970, 0.0
      %vm1035 = vcmp.ge.f32.partialorder %v971, 0.0
      %vm1036 = vcmp.ge.f32.partialorder %v972, 0.0
      %vm1037 = vcmp.ge.f32.partialorder %v973, 0.0
      %vm1038 = vcmp.ge.f32.partialorder %v974, 0.0
      %vm1039 = vcmp.ge.f32.partialorder %v975, 0.0
      %vm1040 = vcmp.ge.f32.partialorder %v976, 0.0
      %vm1041 = vcmp.ge.f32.partialorder %v977, 0.0
      %vm1042 = vcmp.ge.f32.partialorder %v978, 0.0
      %vm1043 = vcmp.ge.f32.partialorder %v979, 0.0
      %vm1044 = vcmp.ge.f32.partialorder %v980, 0.0
      %vm1045 = vcmp.ge.f32.partialorder %v981, 0.0
      %vm1046 = vcmp.ge.f32.partialorder %v982, 0.0
      %vm1047 = vcmp.ge.f32.partialorder %v983, 0.0
      %vm1048 = vcmp.ge.f32.partialorder %v984, 0.0
      %vm1049 = vcmp.ge.f32.partialorder %v985, 0.0
      %vm1050 = vcmp.ge.f32.partialorder %v986, 0.0
      %vm1051 = vcmp.ge.f32.partialorder %v987, 0.0
      %vm1052 = vcmp.ge.f32.partialorder %v988, 0.0
      %vm1053 = vcmp.ge.f32.partialorder %v989, 0.0
      %vm1054 = vcmp.ge.f32.partialorder %v990, 0.0
      %vm1055 = vcmp.ge.f32.partialorder %v991, 0.0
      %vm1056 = vcmp.ge.f32.partialorder %v992, 0.0
      %vm1057 = vcmp.ge.f32.partialorder %v993, 0.0
      %vm1058 = vcmp.ge.f32.partialorder %v994, 0.0
      %vm1059 = vcmp.ge.f32.partialorder %v995, 0.0
      %vm1060 = vcmp.ge.f32.partialorder %v996, 0.0
      %vm1061 = vcmp.ge.f32.partialorder %v997, 0.0
      %vm1062 = vcmp.ge.f32.partialorder %v998, 0.0
      %vm1063 = vcmp.ge.f32.partialorder %v999, 0.0
      %vm1064 = vcmp.ge.f32.partialorder %v1000, 0.0
      %vm1065 = vcmp.ge.f32.partialorder %v1001, 0.0
      %vm1066 = vcmp.ge.f32.partialorder %v1002, 0.0
      %vm1067 = vcmp.ge.f32.partialorder %v1003, 0.0
      %vm1068 = vcmp.ge.f32.partialorder %v1004, 0.0
      %vm1069 = vcmp.ge.f32.partialorder %v1005, 0.0
      %vm1070 = vcmp.ge.f32.partialorder %v1006, 0.0
      %vm1071 = vcmp.ge.f32.partialorder %v1007, 0.0
      %vm1072 = vcmp.ge.f32.partialorder %v1008, 0.0
      %vm1073 = vcmp.ge.f32.partialorder %v1009, 0.0
      %vm1074 = vcmp.ge.f32.partialorder %v1010, 0.0
      %vm1075 = vcmp.ge.f32.partialorder %v1011, 0.0
      %vm1076 = vcmp.ge.f32.partialorder %v1012, 0.0
      %vm1077 = vcmp.ge.f32.partialorder %v1013, 0.0
      %vm1078 = vcmp.ge.f32.partialorder %v1014, 0.0
      %vm1079 = vcmp.ge.f32.partialorder %v1015, 0.0
      %vm1080 = vcmp.ge.f32.partialorder %v1016, 0.0
      %vm1081 = vcmp.ge.f32.partialorder %v1017, 0.0
      %vm1082 = vcmp.ge.f32.partialorder %v1018, 0.0
      %vm1083 = vcmp.ge.f32.partialorder %v1019, 0.0
      %vm1084 = vcmp.ge.f32.partialorder %v1020, 0.0
      %vm1085 = vcmp.ge.f32.partialorder %v1021, 0.0
      %vm1086 = vcmp.ge.f32.partialorder %v1022, 0.0
      %vm1087 = vcmp.ge.f32.partialorder %v1023, 0.0
      %vm1088 = vcmp.ge.f32.partialorder %v1024, 0.0
      %v1089 = vmul.f32 %v961, 0.2
      %v1090 = vmul.f32 %v962, 0.2
      %v1091 = vmul.f32 %v963, 0.2
      %v1092 = vmul.f32 %v964, 0.2
      %v1093 = vmul.f32 %v965, 0.2
      %v1094 = vmul.f32 %v966, 0.2
      %v1095 = vmul.f32 %v967, 0.2
      %v1096 = vmul.f32 %v968, 0.2
      %v1097 = vmul.f32 %v969, 0.2
      %v1098 = vmul.f32 %v970, 0.2
      %v1099 = vmul.f32 %v971, 0.2
      %v1100 = vmul.f32 %v972, 0.2
      %v1101 = vmul.f32 %v973, 0.2
      %v1102 = vmul.f32 %v974, 0.2
      %v1103 = vmul.f32 %v975, 0.2
      %v1104 = vmul.f32 %v976, 0.2
      %v1105 = vmul.f32 %v977, 0.2
      %v1106 = vmul.f32 %v978, 0.2
      %v1107 = vmul.f32 %v979, 0.2
      %v1108 = vmul.f32 %v980, 0.2
      %v1109 = vmul.f32 %v981, 0.2
      %v1110 = vmul.f32 %v982, 0.2
      %v1111 = vmul.f32 %v983, 0.2
      %v1112 = vmul.f32 %v984, 0.2
      %v1113 = vmul.f32 %v985, 0.2
      %v1114 = vmul.f32 %v986, 0.2
      %v1115 = vmul.f32 %v987, 0.2
      %v1116 = vmul.f32 %v988, 0.2
      %v1117 = vmul.f32 %v989, 0.2
      %v1118 = vmul.f32 %v990, 0.2
      %v1119 = vmul.f32 %v991, 0.2
      %v1120 = vmul.f32 %v992, 0.2
      %v1121 = vmul.f32 %v993, 0.2
      %v1122 = vmul.f32 %v994, 0.2
      %v1123 = vmul.f32 %v995, 0.2
      %v1124 = vmul.f32 %v996, 0.2
      %v1125 = vmul.f32 %v997, 0.2
      %v1126 = vmul.f32 %v998, 0.2
      %v1127 = vmul.f32 %v999, 0.2
      %v1128 = vmul.f32 %v1000, 0.2
      %v1129 = vmul.f32 %v1001, 0.2
      %v1130 = vmul.f32 %v1002, 0.2
      %v1131 = vmul.f32 %v1003, 0.2
      %v1132 = vmul.f32 %v1004, 0.2
      %v1133 = vmul.f32 %v1005, 0.2
      %v1134 = vmul.f32 %v1006, 0.2
      %v1135 = vmul.f32 %v1007, 0.2
      %v1136 = vmul.f32 %v1008, 0.2
      %v1137 = vmul.f32 %v1009, 0.2
      %v1138 = vmul.f32 %v1010, 0.2
      %v1139 = vmul.f32 %v1011, 0.2
      %v1140 = vmul.f32 %v1012, 0.2
      %v1141 = vmul.f32 %v1013, 0.2
      %v1142 = vmul.f32 %v1014, 0.2
      %v1143 = vmul.f32 %v1015, 0.2
      %v1144 = vmul.f32 %v1016, 0.2
      %v1145 = vmul.f32 %v1017, 0.2
      %v1146 = vmul.f32 %v1018, 0.2
      %v1147 = vmul.f32 %v1019, 0.2
      %v1148 = vmul.f32 %v1020, 0.2
      %v1149 = vmul.f32 %v1021, 0.2
      %v1150 = vmul.f32 %v1022, 0.2
      %v1151 = vmul.f32 %v1023, 0.2
      %v1152 = vmul.f32 %v1024, 0.2
      %v1153 = vsel %vm1025, %v961, %v1089
      %v1154 = vsel %vm1026, %v962, %v1090
      %v1155 = vsel %vm1027, %v963, %v1091
      %v1156 = vsel %vm1028, %v964, %v1092
      %v1157 = vsel %vm1029, %v965, %v1093
      %v1158 = vsel %vm1030, %v966, %v1094
      %v1159 = vsel %vm1031, %v967, %v1095
      %v1160 = vsel %vm1032, %v968, %v1096
      %v1161 = vsel %vm1033, %v969, %v1097
      %v1162 = vsel %vm1034, %v970, %v1098
      %v1163 = vsel %vm1035, %v971, %v1099
      %v1164 = vsel %vm1036, %v972, %v1100
      %v1165 = vsel %vm1037, %v973, %v1101
      %v1166 = vsel %vm1038, %v974, %v1102
      %v1167 = vsel %vm1039, %v975, %v1103
      %v1168 = vsel %vm1040, %v976, %v1104
      %v1169 = vsel %vm1041, %v977, %v1105
      %v1170 = vsel %vm1042, %v978, %v1106
      %v1171 = vsel %vm1043, %v979, %v1107
      %v1172 = vsel %vm1044, %v980, %v1108
      %v1173 = vsel %vm1045, %v981, %v1109
      %v1174 = vsel %vm1046, %v982, %v1110
      %v1175 = vsel %vm1047, %v983, %v1111
      %v1176 = vsel %vm1048, %v984, %v1112
      %v1177 = vsel %vm1049, %v985, %v1113
      %v1178 = vsel %vm1050, %v986, %v1114
      %v1179 = vsel %vm1051, %v987, %v1115
      %v1180 = vsel %vm1052, %v988, %v1116
      %v1181 = vsel %vm1053, %v989, %v1117
      %v1182 = vsel %vm1054, %v990, %v1118
      %v1183 = vsel %vm1055, %v991, %v1119
      %v1184 = vsel %vm1056, %v992, %v1120
      %v1185 = vsel %vm1057, %v993, %v1121
      %v1186 = vsel %vm1058, %v994, %v1122
      %v1187 = vsel %vm1059, %v995, %v1123
      %v1188 = vsel %vm1060, %v996, %v1124
      %v1189 = vsel %vm1061, %v997, %v1125
      %v1190 = vsel %vm1062, %v998, %v1126
      %v1191 = vsel %vm1063, %v999, %v1127
      %v1192 = vsel %vm1064, %v1000, %v1128
      %v1193 = vsel %vm1065, %v1001, %v1129
      %v1194 = vsel %vm1066, %v1002, %v1130
      %v1195 = vsel %vm1067, %v1003, %v1131
      %v1196 = vsel %vm1068, %v1004, %v1132
      %v1197 = vsel %vm1069, %v1005, %v1133
      %v1198 = vsel %vm1070, %v1006, %v1134
      %v1199 = vsel %vm1071, %v1007, %v1135
      %v1200 = vsel %vm1072, %v1008, %v1136
      %v1201 = vsel %vm1073, %v1009, %v1137
      %v1202 = vsel %vm1074, %v1010, %v1138
      %v1203 = vsel %vm1075, %v1011, %v1139
      %v1204 = vsel %vm1076, %v1012, %v1140
      %v1205 = vsel %vm1077, %v1013, %v1141
      %v1206 = vsel %vm1078, %v1014, %v1142
      %v1207 = vsel %vm1079, %v1015, %v1143
      %v1208 = vsel %vm1080, %v1016, %v1144
      %v1209 = vsel %vm1081, %v1017, %v1145
      %v1210 = vsel %vm1082, %v1018, %v1146
      %v1211 = vsel %vm1083, %v1019, %v1147
      %v1212 = vsel %vm1084, %v1020, %v1148
      %v1213 = vsel %vm1085, %v1021, %v1149
      %v1214 = vsel %vm1086, %v1022, %v1150
      %v1215 = vsel %vm1087, %v1023, %v1151
      %v1216 = vsel %vm1088, %v1024, %v1152
      %v1217 = vpack.c.bf16 %v1154, %v1153
      %v1218 = vpack.c.bf16 %v1156, %v1155
      %v1219 = vpack.c.bf16 %v1158, %v1157
      %v1220 = vpack.c.bf16 %v1160, %v1159
      %v1221 = vpack.c.bf16 %v1162, %v1161
      %v1222 = vpack.c.bf16 %v1164, %v1163
      %v1223 = vpack.c.bf16 %v1166, %v1165
      %v1224 = vpack.c.bf16 %v1168, %v1167
      %v1225 = vpack.c.bf16 %v1170, %v1169
      %v1226 = vpack.c.bf16 %v1172, %v1171
      %v1227 = vpack.c.bf16 %v1174, %v1173
      %v1228 = vpack.c.bf16 %v1176, %v1175
      %v1229 = vpack.c.bf16 %v1178, %v1177
      %v1230 = vpack.c.bf16 %v1180, %v1179
      %v1231 = vpack.c.bf16 %v1182, %v1181
      %v1232 = vpack.c.bf16 %v1184, %v1183
      %v1233 = vpack.c.bf16 %v1186, %v1185
      %v1234 = vpack.c.bf16 %v1188, %v1187
      %v1235 = vpack.c.bf16 %v1190, %v1189
      %v1236 = vpack.c.bf16 %v1192, %v1191
      %v1237 = vpack.c.bf16 %v1194, %v1193
      %v1238 = vpack.c.bf16 %v1196, %v1195
      %v1239 = vpack.c.bf16 %v1198, %v1197
      %v1240 = vpack.c.bf16 %v1200, %v1199
      %v1241 = vpack.c.bf16 %v1202, %v1201
      %v1242 = vpack.c.bf16 %v1204, %v1203
      %v1243 = vpack.c.bf16 %v1206, %v1205
      %v1244 = vpack.c.bf16 %v1208, %v1207
      %v1245 = vpack.c.bf16 %v1210, %v1209
      %v1246 = vpack.c.bf16 %v1212, %v1211
      %v1247 = vpack.c.bf16 %v1214, %v1213
      %v1248 = vpack.c.bf16 %v1216, %v1215
      %v1281 = vunpack.c.l.b16 %v1217
      %v1282 = vunpack.c.h.b16 %v1217
      %v1283 = vunpack.c.l.b16 %v1218
      %v1284 = vunpack.c.h.b16 %v1218
      %v1285 = vunpack.c.l.b16 %v1219
      %v1286 = vunpack.c.h.b16 %v1219
      %v1287 = vunpack.c.l.b16 %v1220
      %v1288 = vunpack.c.h.b16 %v1220
      %v1289 = vunpack.c.l.b16 %v1221
      %v1290 = vunpack.c.h.b16 %v1221
      %v1291 = vunpack.c.l.b16 %v1222
      %v1292 = vunpack.c.h.b16 %v1222
      %v1293 = vunpack.c.l.b16 %v1223
      %v1294 = vunpack.c.h.b16 %v1223
      %v1295 = vunpack.c.l.b16 %v1224
      %v1296 = vunpack.c.h.b16 %v1224
      %v1297 = vunpack.c.l.b16 %v1225
      %v1298 = vunpack.c.h.b16 %v1225
      %v1299 = vunpack.c.l.b16 %v1226
      %v1300 = vunpack.c.h.b16 %v1226
      %v1301 = vunpack.c.l.b16 %v1227
      %v1302 = vunpack.c.h.b16 %v1227
      %v1303 = vunpack.c.l.b16 %v1228
      %v1304 = vunpack.c.h.b16 %v1228
      %v1305 = vunpack.c.l.b16 %v1229
      %v1306 = vunpack.c.h.b16 %v1229
      %v1307 = vunpack.c.l.b16 %v1230
      %v1308 = vunpack.c.h.b16 %v1230
      %v1309 = vunpack.c.l.b16 %v1231
      %v1310 = vunpack.c.h.b16 %v1231
      %v1311 = vunpack.c.l.b16 %v1232
      %v1312 = vunpack.c.h.b16 %v1232
      %v1313 = vunpack.c.l.b16 %v1233
      %v1314 = vunpack.c.h.b16 %v1233
      %v1315 = vunpack.c.l.b16 %v1234
      %v1316 = vunpack.c.h.b16 %v1234
      %v1317 = vunpack.c.l.b16 %v1235
      %v1318 = vunpack.c.h.b16 %v1235
      %v1319 = vunpack.c.l.b16 %v1236
      %v1320 = vunpack.c.h.b16 %v1236
      %v1321 = vunpack.c.l.b16 %v1237
      %v1322 = vunpack.c.h.b16 %v1237
      %v1323 = vunpack.c.l.b16 %v1238
      %v1324 = vunpack.c.h.b16 %v1238
      %v1325 = vunpack.c.l.b16 %v1239
      %v1326 = vunpack.c.h.b16 %v1239
      %v1327 = vunpack.c.l.b16 %v1240
      %v1328 = vunpack.c.h.b16 %v1240
      %v1329 = vunpack.c.l.b16 %v1241
      %v1330 = vunpack.c.h.b16 %v1241
      %v1331 = vunpack.c.l.b16 %v1242
      %v1332 = vunpack.c.h.b16 %v1242
      %v1333 = vunpack.c.l.b16 %v1243
      %v1334 = vunpack.c.h.b16 %v1243
      %v1335 = vunpack.c.l.b16 %v1244
      %v1336 = vunpack.c.h.b16 %v1244
      %v1337 = vunpack.c.l.b16 %v1245
      %v1338 = vunpack.c.h.b16 %v1245
      %v1339 = vunpack.c.l.b16 %v1246
      %v1340 = vunpack.c.h.b16 %v1246
      %v1341 = vunpack.c.l.b16 %v1247
      %v1342 = vunpack.c.h.b16 %v1247
      %v1343 = vunpack.c.l.b16 %v1248
      %v1344 = vunpack.c.h.b16 %v1248
      %v1345 = vpack.c.b16 %v1281, %v1281
      %v1346 = vpack.c.b16 %v1282, %v1282
      %v1347 = vpack.c.b16 %v1283, %v1283
      %v1348 = vpack.c.b16 %v1284, %v1284
      %v1349 = vpack.c.b16 %v1285, %v1285
      %v1350 = vpack.c.b16 %v1286, %v1286
      %v1351 = vpack.c.b16 %v1287, %v1287
      %v1352 = vpack.c.b16 %v1288, %v1288
      %v1353 = vpack.c.b16 %v1289, %v1289
      %v1354 = vpack.c.b16 %v1290, %v1290
      %v1355 = vpack.c.b16 %v1291, %v1291
      %v1356 = vpack.c.b16 %v1292, %v1292
      %v1357 = vpack.c.b16 %v1293, %v1293
      %v1358 = vpack.c.b16 %v1294, %v1294
      %v1359 = vpack.c.b16 %v1295, %v1295
      %v1360 = vpack.c.b16 %v1296, %v1296
      %v1361 = vpack.c.b16 %v1297, %v1297
      %v1362 = vpack.c.b16 %v1298, %v1298
      %v1363 = vpack.c.b16 %v1299, %v1299
      %v1364 = vpack.c.b16 %v1300, %v1300
      %v1365 = vpack.c.b16 %v1301, %v1301
      %v1366 = vpack.c.b16 %v1302, %v1302
      %v1367 = vpack.c.b16 %v1303, %v1303
      %v1368 = vpack.c.b16 %v1304, %v1304
      %v1369 = vpack.c.b16 %v1305, %v1305
      %v1370 = vpack.c.b16 %v1306, %v1306
      %v1371 = vpack.c.b16 %v1307, %v1307
      %v1372 = vpack.c.b16 %v1308, %v1308
      %v1373 = vpack.c.b16 %v1309, %v1309
      %v1374 = vpack.c.b16 %v1310, %v1310
      %v1375 = vpack.c.b16 %v1311, %v1311
      %v1376 = vpack.c.b16 %v1312, %v1312
      %v1377 = vpack.c.b16 %v1313, %v1313
      %v1378 = vpack.c.b16 %v1314, %v1314
      %v1379 = vpack.c.b16 %v1315, %v1315
      %v1380 = vpack.c.b16 %v1316, %v1316
      %v1381 = vpack.c.b16 %v1317, %v1317
      %v1382 = vpack.c.b16 %v1318, %v1318
      %v1383 = vpack.c.b16 %v1319, %v1319
      %v1384 = vpack.c.b16 %v1320, %v1320
      %v1385 = vpack.c.b16 %v1321, %v1321
      %v1386 = vpack.c.b16 %v1322, %v1322
      %v1387 = vpack.c.b16 %v1323, %v1323
      %v1388 = vpack.c.b16 %v1324, %v1324
      %v1389 = vpack.c.b16 %v1325, %v1325
      %v1390 = vpack.c.b16 %v1326, %v1326
      %v1391 = vpack.c.b16 %v1327, %v1327
      %v1392 = vpack.c.b16 %v1328, %v1328
      %v1393 = vpack.c.b16 %v1329, %v1329
      %v1394 = vpack.c.b16 %v1330, %v1330
      %v1395 = vpack.c.b16 %v1331, %v1331
      %v1396 = vpack.c.b16 %v1332, %v1332
      %v1397 = vpack.c.b16 %v1333, %v1333
      %v1398 = vpack.c.b16 %v1334, %v1334
      %v1399 = vpack.c.b16 %v1335, %v1335
      %v1400 = vpack.c.b16 %v1336, %v1336
      %v1401 = vpack.c.b16 %v1337, %v1337
      %v1402 = vpack.c.b16 %v1338, %v1338
      %v1403 = vpack.c.b16 %v1339, %v1339
      %v1404 = vpack.c.b16 %v1340, %v1340
      %v1405 = vpack.c.b16 %v1341, %v1341
      %v1406 = vpack.c.b16 %v1342, %v1342
      %v1407 = vpack.c.b16 %v1343, %v1343
      %v1408 = vpack.c.b16 %v1344, %v1344
      %1473 = vst [vmem:[%s3] sm:$0xf] %v1345
      %1474 = vst [vmem:[%s3 + $0x4] sm:$0xf] %v1346
      %1475 = vst [vmem:[%s3 + $0x8] sm:$0xf] %v1347
      %1476 = vst [vmem:[%s3 + $0xc] sm:$0xf] %v1348
      %1477 = vst [vmem:[%s3 + $0x10] sm:$0xf] %v1349
      %1478 = vst [vmem:[%s3 + $0x14] sm:$0xf] %v1350
      %1479 = vst [vmem:[%s3 + $0x18] sm:$0xf] %v1351
      %1480 = vst [vmem:[%s3 + $0x1c] sm:$0xf] %v1352
      %1481 = vst [vmem:[%s3 + $0x20] sm:$0xf] %v1353
      %1482 = vst [vmem:[%s3 + $0x24] sm:$0xf] %v1354
      %1483 = vst [vmem:[%s3 + $0x28] sm:$0xf] %v1355
      %1484 = vst [vmem:[%s3 + $0x2c] sm:$0xf] %v1356
      %1485 = vst [vmem:[%s3 + $0x30] sm:$0xf] %v1357
      %1486 = vst [vmem:[%s3 + $0x34] sm:$0xf] %v1358
      %1487 = vst [vmem:[%s3 + $0x38] sm:$0xf] %v1359
      %1488 = vst [vmem:[%s3 + $0x3c] sm:$0xf] %v1360
      %1489 = vst [vmem:[%s3 + $0x40] sm:$0xf] %v1361
      %1490 = vst [vmem:[%s3 + $0x44] sm:$0xf] %v1362
      %1491 = vst [vmem:[%s3 + $0x48] sm:$0xf] %v1363
      %1492 = vst [vmem:[%s3 + $0x4c] sm:$0xf] %v1364
      %1493 = vst [vmem:[%s3 + $0x50] sm:$0xf] %v1365
      %1494 = vst [vmem:[%s3 + $0x54] sm:$0xf] %v1366
      %1495 = vst [vmem:[%s3 + $0x58] sm:$0xf] %v1367
      %1496 = vst [vmem:[%s3 + $0x5c] sm:$0xf] %v1368
      %1497 = vst [vmem:[%s3 + $0x60] sm:$0xf] %v1369
      %1498 = vst [vmem:[%s3 + $0x64] sm:$0xf] %v1370
      %1499 = vst [vmem:[%s3 + $0x68] sm:$0xf] %v1371
      %1500 = vst [vmem:[%s3 + $0x6c] sm:$0xf] %v1372
      %1501 = vst [vmem:[%s3 + $0x70] sm:$0xf] %v1373
      %1502 = vst [vmem:[%s3 + $0x74] sm:$0xf] %v1374
      %1503 = vst [vmem:[%s3 + $0x78] sm:$0xf] %v1375
      %1504 = vst [vmem:[%s3 + $0x7c] sm:$0xf] %v1376
      %1505 = vst [vmem:[%s3 + $0x80] sm:$0xf] %v1377
      %1506 = vst [vmem:[%s3 + $0x84] sm:$0xf] %v1378
      %1507 = vst [vmem:[%s3 + $0x88] sm:$0xf] %v1379
      %1508 = vst [vmem:[%s3 + $0x8c] sm:$0xf] %v1380
      %1509 = vst [vmem:[%s3 + $0x90] sm:$0xf] %v1381
      %1510 = vst [vmem:[%s3 + $0x94] sm:$0xf] %v1382
      %1511 = vst [vmem:[%s3 + $0x98] sm:$0xf] %v1383
      %1512 = vst [vmem:[%s3 + $0x9c] sm:$0xf] %v1384
      %1513 = vst [vmem:[%s3 + $0xa0] sm:$0xf] %v1385
      %1514 = vst [vmem:[%s3 + $0xa4] sm:$0xf] %v1386
      %1515 = vst [vmem:[%s3 + $0xa8] sm:$0xf] %v1387
      %1516 = vst [vmem:[%s3 + $0xac] sm:$0xf] %v1388
      %1517 = vst [vmem:[%s3 + $0xb0] sm:$0xf] %v1389
      %1518 = vst [vmem:[%s3 + $0xb4] sm:$0xf] %v1390
      %1519 = vst [vmem:[%s3 + $0xb8] sm:$0xf] %v1391
      %1520 = vst [vmem:[%s3 + $0xbc] sm:$0xf] %v1392
      %1521 = vst [vmem:[%s3 + $0xc0] sm:$0xf] %v1393
      %1522 = vst [vmem:[%s3 + $0xc4] sm:$0xf] %v1394
      %1523 = vst [vmem:[%s3 + $0xc8] sm:$0xf] %v1395
      %1524 = vst [vmem:[%s3 + $0xcc] sm:$0xf] %v1396
      %1525 = vst [vmem:[%s3 + $0xd0] sm:$0xf] %v1397
      %1526 = vst [vmem:[%s3 + $0xd4] sm:$0xf] %v1398
      %1527 = vst [vmem:[%s3 + $0xd8] sm:$0xf] %v1399
      %1528 = vst [vmem:[%s3 + $0xdc] sm:$0xf] %v1400
      %1529 = vst [vmem:[%s3 + $0xe0] sm:$0xf] %v1401
      %1530 = vst [vmem:[%s3 + $0xe4] sm:$0xf] %v1402
      %1531 = vst [vmem:[%s3 + $0xe8] sm:$0xf] %v1403
      %1532 = vst [vmem:[%s3 + $0xec] sm:$0xf] %v1404
      %1533 = vst [vmem:[%s3 + $0xf0] sm:$0xf] %v1405
      %1534 = vst [vmem:[%s3 + $0xf4] sm:$0xf] %v1406
      %1535 = vst [vmem:[%s3 + $0xf8] sm:$0xf] %v1407
      %1536 = vst [vmem:[%s3 + $0xfc] sm:$0xf] %v1408
      %v1537 = vadd.f32 %v1153, %v1154
      %v1538 = vadd.f32 %v1537, %v1155
      %v1539 = vadd.f32 %v1538, %v1156
      %v1540 = vadd.f32 %v1539, %v1157
      %v1541 = vadd.f32 %v1540, %v1158
      %v1542 = vadd.f32 %v1541, %v1159
      %v1543 = vadd.f32 %v1542, %v1160
      %v1544 = vadd.f32 %v1543, %v1161
      %v1545 = vadd.f32 %v1544, %v1162
      %v1546 = vadd.f32 %v1545, %v1163
      %v1547 = vadd.f32 %v1546, %v1164
      %v1548 = vadd.f32 %v1547, %v1165
      %v1549 = vadd.f32 %v1548, %v1166
      %v1550 = vadd.f32 %v1549, %v1167
      %v1551 = vadd.f32 %v1550, %v1168
      %v1552 = vadd.f32 %v1551, %v1169
      %v1553 = vadd.f32 %v1552, %v1170
      %v1554 = vadd.f32 %v1553, %v1171
      %v1555 = vadd.f32 %v1554, %v1172
      %v1556 = vadd.f32 %v1555, %v1173
      %v1557 = vadd.f32 %v1556, %v1174
      %v1558 = vadd.f32 %v1557, %v1175
      %v1559 = vadd.f32 %v1558, %v1176
      %v1560 = vadd.f32 %v1559, %v1177
      %v1561 = vadd.f32 %v1560, %v1178
      %v1562 = vadd.f32 %v1561, %v1179
      %v1563 = vadd.f32 %v1562, %v1180
      %v1564 = vadd.f32 %v1563, %v1181
      %v1565 = vadd.f32 %v1564, %v1182
      %v1566 = vadd.f32 %v1565, %v1183
      %v1567 = vadd.f32 %v1566, %v1184
      %v1568 = vadd.f32 %v1567, %v1185
      %v1569 = vadd.f32 %v1568, %v1186
      %v1570 = vadd.f32 %v1569, %v1187
      %v1571 = vadd.f32 %v1570, %v1188
      %v1572 = vadd.f32 %v1571, %v1189
      %v1573 = vadd.f32 %v1572, %v1190
      %v1574 = vadd.f32 %v1573, %v1191
      %v1575 = vadd.f32 %v1574, %v1192
      %v1576 = vadd.f32 %v1575, %v1193
      %v1577 = vadd.f32 %v1576, %v1194
      %v1578 = vadd.f32 %v1577, %v1195
      %v1579 = vadd.f32 %v1578, %v1196
      %v1580 = vadd.f32 %v1579, %v1197
      %v1581 = vadd.f32 %v1580, %v1198
      %v1582 = vadd.f32 %v1581, %v1199
      %v1583 = vadd.f32 %v1582, %v1200
      %v1584 = vadd.f32 %v1583, %v1201
      %v1585 = vadd.f32 %v1584, %v1202
      %v1586 = vadd.f32 %v1585, %v1203
      %v1587 = vadd.f32 %v1586, %v1204
      %v1588 = vadd.f32 %v1587, %v1205
      %v1589 = vadd.f32 %v1588, %v1206
      %v1590 = vadd.f32 %v1589, %v1207
      %v1591 = vadd.f32 %v1590, %v1208
      %v1592 = vadd.f32 %v1591, %v1209
      %v1593 = vadd.f32 %v1592, %v1210
      %v1594 = vadd.f32 %v1593, %v1211
      %v1595 = vadd.f32 %v1594, %v1212
      %v1596 = vadd.f32 %v1595, %v1213
      %v1597 = vadd.f32 %v1596, %v1214
      %v1598 = vadd.f32 %v1597, %v1215
      %v1599 = vadd.f32 %v1598, %v1216
      %v1600 = vrot.slane %v1599, 4
      %v1601 = vadd.f32 %v1599, %v1600
      %v1602 = vrot.slane %v1601, 2
      %v1603 = vadd.f32 %v1601, %v1602
      %v1604 = vrot.slane %v1603, 1
      %v1605 = vadd.f32 %v1603, %v1604
      %v1606 = vmul.f32 %v1153, %v1153
      %v1607 = vmul.f32 %v1154, %v1154
      %v1608 = vmul.f32 %v1155, %v1155
      %v1609 = vmul.f32 %v1156, %v1156
      %v1610 = vmul.f32 %v1157, %v1157
      %v1611 = vmul.f32 %v1158, %v1158
      %v1612 = vmul.f32 %v1159, %v1159
      %v1613 = vmul.f32 %v1160, %v1160
      %v1614 = vmul.f32 %v1161, %v1161
      %v1615 = vmul.f32 %v1162, %v1162
      %v1616 = vmul.f32 %v1163, %v1163
      %v1617 = vmul.f32 %v1164, %v1164
      %v1618 = vmul.f32 %v1165, %v1165
      %v1619 = vmul.f32 %v1166, %v1166
      %v1620 = vmul.f32 %v1167, %v1167
      %v1621 = vmul.f32 %v1168, %v1168
      %v1622 = vmul.f32 %v1169, %v1169
      %v1623 = vmul.f32 %v1170, %v1170
      %v1624 = vmul.f32 %v1171, %v1171
      %v1625 = vmul.f32 %v1172, %v1172
      %v1626 = vmul.f32 %v1173, %v1173
      %v1627 = vmul.f32 %v1174, %v1174
      %v1628 = vmul.f32 %v1175, %v1175
      %v1629 = vmul.f32 %v1176, %v1176
      %v1630 = vmul.f32 %v1177, %v1177
      %v1631 = vmul.f32 %v1178, %v1178
      %v1632 = vmul.f32 %v1179, %v1179
      %v1633 = vmul.f32 %v1180, %v1180
      %v1634 = vmul.f32 %v1181, %v1181
      %v1635 = vmul.f32 %v1182, %v1182
      %v1636 = vmul.f32 %v1183, %v1183
      %v1637 = vmul.f32 %v1184, %v1184
      %v1638 = vmul.f32 %v1185, %v1185
      %v1639 = vmul.f32 %v1186, %v1186
      %v1640 = vmul.f32 %v1187, %v1187
      %v1641 = vmul.f32 %v1188, %v1188
      %v1642 = vmul.f32 %v1189, %v1189
      %v1643 = vmul.f32 %v1190, %v1190
      %v1644 = vmul.f32 %v1191, %v1191
      %v1645 = vmul.f32 %v1192, %v1192
      %v1646 = vmul.f32 %v1193, %v1193
      %v1647 = vmul.f32 %v1194, %v1194
      %v1648 = vmul.f32 %v1195, %v1195
      %v1649 = vmul.f32 %v1196, %v1196
      %v1650 = vmul.f32 %v1197, %v1197
      %v1651 = vmul.f32 %v1198, %v1198
      %v1652 = vmul.f32 %v1199, %v1199
      %v1653 = vmul.f32 %v1200, %v1200
      %v1654 = vmul.f32 %v1201, %v1201
      %v1655 = vmul.f32 %v1202, %v1202
      %v1656 = vmul.f32 %v1203, %v1203
      %v1657 = vmul.f32 %v1204, %v1204
      %v1658 = vmul.f32 %v1205, %v1205
      %v1659 = vmul.f32 %v1206, %v1206
      %v1660 = vmul.f32 %v1207, %v1207
      %v1661 = vmul.f32 %v1208, %v1208
      %v1662 = vmul.f32 %v1209, %v1209
      %v1663 = vmul.f32 %v1210, %v1210
      %v1664 = vmul.f32 %v1211, %v1211
      %v1665 = vmul.f32 %v1212, %v1212
      %v1666 = vmul.f32 %v1213, %v1213
      %v1667 = vmul.f32 %v1214, %v1214
      %v1668 = vmul.f32 %v1215, %v1215
      %v1669 = vmul.f32 %v1216, %v1216
      %v1670 = vadd.f32 %v1606, %v1607
      %v1671 = vadd.f32 %v1670, %v1608
      %v1672 = vadd.f32 %v1671, %v1609
      %v1673 = vadd.f32 %v1672, %v1610
      %v1674 = vadd.f32 %v1673, %v1611
      %v1675 = vadd.f32 %v1674, %v1612
      %v1676 = vadd.f32 %v1675, %v1613
      %v1677 = vadd.f32 %v1676, %v1614
      %v1678 = vadd.f32 %v1677, %v1615
      %v1679 = vadd.f32 %v1678, %v1616
      %v1680 = vadd.f32 %v1679, %v1617
      %v1681 = vadd.f32 %v1680, %v1618
      %v1682 = vadd.f32 %v1681, %v1619
      %v1683 = vadd.f32 %v1682, %v1620
      %v1684 = vadd.f32 %v1683, %v1621
      %v1685 = vadd.f32 %v1684, %v1622
      %v1686 = vadd.f32 %v1685, %v1623
      %v1687 = vadd.f32 %v1686, %v1624
      %v1688 = vadd.f32 %v1687, %v1625
      %v1689 = vadd.f32 %v1688, %v1626
      %v1690 = vadd.f32 %v1689, %v1627
      %v1691 = vadd.f32 %v1690, %v1628
      %v1692 = vadd.f32 %v1691, %v1629
      %v1693 = vadd.f32 %v1692, %v1630
      %v1694 = vadd.f32 %v1693, %v1631
      %v1695 = vadd.f32 %v1694, %v1632
      %v1696 = vadd.f32 %v1695, %v1633
      %v1697 = vadd.f32 %v1696, %v1634
      %v1698 = vadd.f32 %v1697, %v1635
      %v1699 = vadd.f32 %v1698, %v1636
      %v1700 = vadd.f32 %v1699, %v1637
      %v1701 = vadd.f32 %v1700, %v1638
      %v1702 = vadd.f32 %v1701, %v1639
      %v1703 = vadd.f32 %v1702, %v1640
      %v1704 = vadd.f32 %v1703, %v1641
      %v1705 = vadd.f32 %v1704, %v1642
      %v1706 = vadd.f32 %v1705, %v1643
      %v1707 = vadd.f32 %v1706, %v1644
      %v1708 = vadd.f32 %v1707, %v1645
      %v1709 = vadd.f32 %v1708, %v1646
      %v1710 = vadd.f32 %v1709, %v1647
      %v1711 = vadd.f32 %v1710, %v1648
      %v1712 = vadd.f32 %v1711, %v1649
      %v1713 = vadd.f32 %v1712, %v1650
      %v1714 = vadd.f32 %v1713, %v1651
      %v1715 = vadd.f32 %v1714, %v1652
      %v1716 = vadd.f32 %v1715, %v1653
      %v1717 = vadd.f32 %v1716, %v1654
      %v1718 = vadd.f32 %v1717, %v1655
      %v1719 = vadd.f32 %v1718, %v1656
      %v1720 = vadd.f32 %v1719, %v1657
      %v1721 = vadd.f32 %v1720, %v1658
      %v1722 = vadd.f32 %v1721, %v1659
      %v1723 = vadd.f32 %v1722, %v1660
      %v1724 = vadd.f32 %v1723, %v1661
      %v1725 = vadd.f32 %v1724, %v1662
      %v1726 = vadd.f32 %v1725, %v1663
      %v1727 = vadd.f32 %v1726, %v1664
      %v1728 = vadd.f32 %v1727, %v1665
      %v1729 = vadd.f32 %v1728, %v1666
      %v1730 = vadd.f32 %v1729, %v1667
      %v1731 = vadd.f32 %v1730, %v1668
      %v1732 = vadd.f32 %v1731, %v1669
      %v1733 = vrot.slane %v1732, 4
      %v1734 = vadd.f32 %v1732, %v1733
      %v1735 = vrot.slane %v1734, 2
      %v1736 = vadd.f32 %v1734, %v1735
      %v1737 = vrot.slane %v1736, 1
      %v1738 = vadd.f32 %v1736, %v1737
      %v1739 = vlaneseq
      %v1740 = vshrl.u32 %v1739, 7
      %vm1741 = vcmp.eq.s32.totalorder %v1740, 0
      %v1742 = vsel %vm1741, %v1605, 0.0
      %vm1743 = vcmp.eq.s32.totalorder %v1740, 1
      %v1744 = vsel %vm1743, %v1738, 0.0
      %v1745 = vadd.f32 %v1742, %v1744
      %1746 = vst [vmem:[#allocation3] sm:$0xff] %v1745
    $region21: #{_lambda_.8} parent=1 // pred_fallthru
      _
    // Predicated region
    $region22: #{_lambda_.8} parent=1 // pred_check
      _
    $region23: #{_lambda_.8} parent=1 // pred_check_branch
      %1748 = sbr.rel (0) target = $region25
    $region24: #{_lambda_.8} parent=1 // pred_region
      _
    $region25: #{_lambda_.8} parent=1 // pred_fallthru
      _
    // Predicated region
    $region26: #{_lambda_.8} parent=1 // pred_check
      _
    $region27: #{_lambda_.8} parent=1 // pred_check_branch
      %1750 = sbr.rel (0) target = $region29
    $region28: #{_lambda_.8} parent=1 // pred_region
      %s1752 = ssub.s32 128, 128
      %1753 = vsyncadd [#allocation4], %s1752
      %s1755 = sshll.u32 [#allocation3], 4
      %s1756 = int_to_ptr.vmem [resolvable:$true] %s1755
      %1758 = dma.vmem_to_hbm [thread:$0]  %s1756, 128, %s4, [#allocation4]
    $region29: #{_lambda_.8} parent=1 // pred_fallthru
      _
    // Predicated region
    $region30: #{_lambda_.8} parent=1 // pred_check
      _
    $region31: #{_lambda_.8} parent=1 // pred_check_branch
      %1760 = sbr.rel (0) target = $region33
    $region32: #{_lambda_.8} parent=1 // pred_region
      _
    $region33: #{_lambda_.8} parent=1 // pred_fallthru
      _
    // Predicated region
    $region34: #{_lambda_.8} parent=1 // pred_check
      _
    $region35: #{_lambda_.8} parent=1 // pred_check_branch
      %1762 = sbr.rel (0) target = $region37
    $region36: #{_lambda_.8} parent=1 // pred_region
      %1763 = dma.done [#allocation4], 128
    $region37: #{_lambda_.8} parent=1 // pred_fallthru
      _
    %1764 = vsyncpa [#allocation4], 1

// kernel: _lambda_.10
$region0: #{_lambda_.10}
  #allocation0 [shape = 'u32[]', space=smem, size = 0x4, offset = 0x4, fixed_abs, tag = 'smem constant byte address 0x4 - core index']
  #allocation1 [shape = 'u32[144,128]{1,0:T(1,128)}', space=vmem, size = 0x12000, scoped, tag = 'internal scratch']
  %s0 = inlined_call_operand.vmem [shape: bf16[128,128], index: 0, kind: input, shape index: {}]
  %s1 = inlined_call_operand.vmem [shape: f32[1,128], index: 1, kind: input, shape index: {}]
  %s2 = inlined_call_operand.vmem [shape: f32[1,128], index: 2, kind: input, shape index: {}]
  %s3 = inlined_call_operand.vmem [shape: bf16[128,128], index: 3, kind: output, shape index: {}]
  %s4 = sld [smem:[#allocation0]]
  $region22: #{_lambda_.10} parent=0
    _
  %s6 = ssub.s32 1, %s4
  %s7 = scalar_select 0, %s6, %s4
  // Predicated region
  $region2: #{_lambda_.10} parent=0 // pred_check
    _
  $region3: #{_lambda_.10} parent=0 // pred_check_branch
    %9 = sbr.rel (0) target = $region5
  $region4: #{_lambda_.10} parent=0 // pred_region
    _
  $region5: #{_lambda_.10} parent=0 // pred_fallthru
    _
  // Predicated region
  $region6: #{_lambda_.10} parent=0 // pred_check
    _
  $region7: #{_lambda_.10} parent=0 // pred_check_branch
    %11 = sbr.rel (0) target = $region9
  $region8: #{_lambda_.10} parent=0 // pred_region
    _
  $region9: #{_lambda_.10} parent=0 // pred_fallthru
    _
  // Predicated region
  $region10: #{_lambda_.10} parent=0 // pred_check
    _
  $region11: #{_lambda_.10} parent=0 // pred_check_branch
    %13 = sbr.rel (0) target = $region13
  $region12: #{_lambda_.10} parent=0 // pred_region
    _
  $region13: #{_lambda_.10} parent=0 // pred_fallthru
    _
  %v14 = vld [vmem:[%s0] sm:$0xf]
  %v15 = vld [vmem:[%s0 + $0x4] sm:$0xf]
  %v16 = vld [vmem:[%s0 + $0x8] sm:$0xf]
  %v17 = vld [vmem:[%s0 + $0xc] sm:$0xf]
  %v18 = vld [vmem:[%s0 + $0x10] sm:$0xf]
  %v19 = vld [vmem:[%s0 + $0x14] sm:$0xf]
  %v20 = vld [vmem:[%s0 + $0x18] sm:$0xf]
  %v21 = vld [vmem:[%s0 + $0x1c] sm:$0xf]
  %v22 = vld [vmem:[%s0 + $0x20] sm:$0xf]
  %v23 = vld [vmem:[%s0 + $0x24] sm:$0xf]
  %v24 = vld [vmem:[%s0 + $0x28] sm:$0xf]
  %v25 = vld [vmem:[%s0 + $0x2c] sm:$0xf]
  %v26 = vld [vmem:[%s0 + $0x30] sm:$0xf]
  %v27 = vld [vmem:[%s0 + $0x34] sm:$0xf]
  %v28 = vld [vmem:[%s0 + $0x38] sm:$0xf]
  %v29 = vld [vmem:[%s0 + $0x3c] sm:$0xf]
  %v30 = vunpack.c.l.bf16 %v14
  %v31 = vunpack.c.l.bf16 %v15
  %v32 = vunpack.c.l.bf16 %v16
  %v33 = vunpack.c.l.bf16 %v17
  %v34 = vunpack.c.l.bf16 %v18
  %v35 = vunpack.c.l.bf16 %v19
  %v36 = vunpack.c.l.bf16 %v20
  %v37 = vunpack.c.l.bf16 %v21
  %v38 = vunpack.c.l.bf16 %v22
  %v39 = vunpack.c.l.bf16 %v23
  %v40 = vunpack.c.l.bf16 %v24
  %v41 = vunpack.c.l.bf16 %v25
  %v42 = vunpack.c.l.bf16 %v26
  %v43 = vunpack.c.l.bf16 %v27
  %v44 = vunpack.c.l.bf16 %v28
  %v45 = vunpack.c.l.bf16 %v29
  %v46 = vld [vmem:[%s1] sm:$0x1]
  %v48 = vlaneseq
  %v49 = vshrl.u32 %v48, 7
  %v50 = vsub.s32 0, %v49
  %v51 = vrot.slane %v46, %v50
  %v53 = vmul.f32 %v30, %v51
  %v54 = vmul.f32 %v31, %v51
  %v55 = vmul.f32 %v32, %v51
  %v56 = vmul.f32 %v33, %v51
  %v57 = vmul.f32 %v34, %v51
  %v58 = vmul.f32 %v35, %v51
  %v59 = vmul.f32 %v36, %v51
  %v60 = vmul.f32 %v37, %v51
  %v61 = vmul.f32 %v38, %v51
  %v62 = vmul.f32 %v39, %v51
  %v63 = vmul.f32 %v40, %v51
  %v64 = vmul.f32 %v41, %v51
  %v65 = vmul.f32 %v42, %v51
  %v66 = vmul.f32 %v43, %v51
  %v67 = vmul.f32 %v44, %v51
  %v68 = vmul.f32 %v45, %v51
  %v69 = vld [vmem:[%s2] sm:$0x1]
  %v71 = vlaneseq
  %v72 = vshrl.u32 %v71, 7
  %v73 = vsub.s32 0, %v72
  %v74 = vrot.slane %v69, %v73
  %v76 = vadd.f32 %v53, %v74
  %v77 = vadd.f32 %v54, %v74
  %v78 = vadd.f32 %v55, %v74
  %v79 = vadd.f32 %v56, %v74
  %v80 = vadd.f32 %v57, %v74
  %v81 = vadd.f32 %v58, %v74
  %v82 = vadd.f32 %v59, %v74
  %v83 = vadd.f32 %v60, %v74
  %v84 = vadd.f32 %v61, %v74
  %v85 = vadd.f32 %v62, %v74
  %v86 = vadd.f32 %v63, %v74
  %v87 = vadd.f32 %v64, %v74
  %v88 = vadd.f32 %v65, %v74
  %v89 = vadd.f32 %v66, %v74
  %v90 = vadd.f32 %v67, %v74
  %v91 = vadd.f32 %v68, %v74
  %vm92 = vcmp.ge.f32.partialorder %v76, 0.0
  %vm93 = vcmp.ge.f32.partialorder %v77, 0.0
  %vm94 = vcmp.ge.f32.partialorder %v78, 0.0
  %vm95 = vcmp.ge.f32.partialorder %v79, 0.0
  %vm96 = vcmp.ge.f32.partialorder %v80, 0.0
  %vm97 = vcmp.ge.f32.partialorder %v81, 0.0
  %vm98 = vcmp.ge.f32.partialorder %v82, 0.0
  %vm99 = vcmp.ge.f32.partialorder %v83, 0.0
  %vm100 = vcmp.ge.f32.partialorder %v84, 0.0
  %vm101 = vcmp.ge.f32.partialorder %v85, 0.0
  %vm102 = vcmp.ge.f32.partialorder %v86, 0.0
  %vm103 = vcmp.ge.f32.partialorder %v87, 0.0
  %vm104 = vcmp.ge.f32.partialorder %v88, 0.0
  %vm105 = vcmp.ge.f32.partialorder %v89, 0.0
  %vm106 = vcmp.ge.f32.partialorder %v90, 0.0
  %vm107 = vcmp.ge.f32.partialorder %v91, 0.0
  %v108 = vmul.f32 %v76, 0.2
  %v109 = vmul.f32 %v77, 0.2
  %v110 = vmul.f32 %v78, 0.2
  %v111 = vmul.f32 %v79, 0.2
  %v112 = vmul.f32 %v80, 0.2
  %v113 = vmul.f32 %v81, 0.2
  %v114 = vmul.f32 %v82, 0.2
  %v115 = vmul.f32 %v83, 0.2
  %v116 = vmul.f32 %v84, 0.2
  %v117 = vmul.f32 %v85, 0.2
  %v118 = vmul.f32 %v86, 0.2
  %v119 = vmul.f32 %v87, 0.2
  %v120 = vmul.f32 %v88, 0.2
  %v121 = vmul.f32 %v89, 0.2
  %v122 = vmul.f32 %v90, 0.2
  %v123 = vmul.f32 %v91, 0.2
  %v124 = vsel %vm92, %v76, %v108
  %v125 = vsel %vm93, %v77, %v109
  %v126 = vsel %vm94, %v78, %v110
  %v127 = vsel %vm95, %v79, %v111
  %v128 = vsel %vm96, %v80, %v112
  %v129 = vsel %vm97, %v81, %v113
  %v130 = vsel %vm98, %v82, %v114
  %v131 = vsel %vm99, %v83, %v115
  %v132 = vsel %vm100, %v84, %v116
  %v133 = vsel %vm101, %v85, %v117
  %v134 = vsel %vm102, %v86, %v118
  %v135 = vsel %vm103, %v87, %v119
  %v136 = vsel %vm104, %v88, %v120
  %v137 = vsel %vm105, %v89, %v121
  %v138 = vsel %vm106, %v90, %v122
  %v139 = vsel %vm107, %v91, %v123
  %v140 = vpack.c.bf16 %v125, %v124
  %v141 = vpack.c.bf16 %v127, %v126
  %v142 = vpack.c.bf16 %v129, %v128
  %v143 = vpack.c.bf16 %v131, %v130
  %v144 = vpack.c.bf16 %v133, %v132
  %v145 = vpack.c.bf16 %v135, %v134
  %v146 = vpack.c.bf16 %v137, %v136
  %v147 = vpack.c.bf16 %v139, %v138
  %v156 = vunpack.c.l.b16 %v140
  %v157 = vunpack.c.h.b16 %v140
  %v158 = vunpack.c.l.b16 %v141
  %v159 = vunpack.c.h.b16 %v141
  %v160 = vunpack.c.l.b16 %v142
  %v161 = vunpack.c.h.b16 %v142
  %v162 = vunpack.c.l.b16 %v143
  %v163 = vunpack.c.h.b16 %v143
  %v164 = vunpack.c.l.b16 %v144
  %v165 = vunpack.c.h.b16 %v144
  %v166 = vunpack.c.l.b16 %v145
  %v167 = vunpack.c.h.b16 %v145
  %v168 = vunpack.c.l.b16 %v146
  %v169 = vunpack.c.h.b16 %v146
  %v170 = vunpack.c.l.b16 %v147
  %v171 = vunpack.c.h.b16 %v147
  %v172 = vpack.c.b16 %v156, %v156
  %v173 = vpack.c.b16 %v157, %v157
  %v174 = vpack.c.b16 %v158, %v158
  %v175 = vpack.c.b16 %v159, %v159
  %v176 = vpack.c.b16 %v160, %v160
  %v177 = vpack.c.b16 %v161, %v161
  %v178 = vpack.c.b16 %v162, %v162
  %v179 = vpack.c.b16 %v163, %v163
  %v180 = vpack.c.b16 %v164, %v164
  %v181 = vpack.c.b16 %v165, %v165
  %v182 = vpack.c.b16 %v166, %v166
  %v183 = vpack.c.b16 %v167, %v167
  %v184 = vpack.c.b16 %v168, %v168
  %v185 = vpack.c.b16 %v169, %v169
  %v186 = vpack.c.b16 %v170, %v170
  %v187 = vpack.c.b16 %v171, %v171
  %204 = vst [vmem:[%s3] sm:$0xf] %v172
  %205 = vst [vmem:[%s3 + $0x4] sm:$0xf] %v173
  %206 = vst [vmem:[%s3 + $0x8] sm:$0xf] %v174
  %207 = vst [vmem:[%s3 + $0xc] sm:$0xf] %v175
  %208 = vst [vmem:[%s3 + $0x10] sm:$0xf] %v176
  %209 = vst [vmem:[%s3 + $0x14] sm:$0xf] %v177
  %210 = vst [vmem:[%s3 + $0x18] sm:$0xf] %v178
  %211 = vst [vmem:[%s3 + $0x1c] sm:$0xf] %v179
  %212 = vst [vmem:[%s3 + $0x20] sm:$0xf] %v180
  %213 = vst [vmem:[%s3 + $0x24] sm:$0xf] %v181
  %214 = vst [vmem:[%s3 + $0x28] sm:$0xf] %v182
  %215 = vst [vmem:[%s3 + $0x2c] sm:$0xf] %v183
  %216 = vst [vmem:[%s3 + $0x30] sm:$0xf] %v184
  %217 = vst [vmem:[%s3 + $0x34] sm:$0xf] %v185
  %218 = vst [vmem:[%s3 + $0x38] sm:$0xf] %v186
  %219 = vst [vmem:[%s3 + $0x3c] sm:$0xf] %v187
  // Predicated region
  $region14: #{_lambda_.10} parent=0 // pred_check
    _
  $region15: #{_lambda_.10} parent=0 // pred_check_branch
    %221 = sbr.rel (0) target = $region17
  $region16: #{_lambda_.10} parent=0 // pred_region
    _
  $region17: #{_lambda_.10} parent=0 // pred_fallthru
    _
  // Predicated region
  $region18: #{_lambda_.10} parent=0 // pred_check
    _
  $region19: #{_lambda_.10} parent=0 // pred_check_branch
    %223 = sbr.rel (0) target = $region21
  $region20: #{_lambda_.10} parent=0 // pred_region
    _
  $region21: #{_lambda_.10} parent=0 // pred_fallthru
    _

// kernel: _lambda_.9
$region0: #{_lambda_.9}
  #allocation0 [shape = 'u32[]', space=smem, size = 0x4, offset = 0x4, fixed_abs, tag = 'smem constant byte address 0x4 - core index']
  #allocation1 [shape = 'u32[144,128]{1,0:T(1,128)}', space=vmem, size = 0x12000, scoped, tag = 'internal scratch']
  #allocation2 [shape = 'f32[128,128]{1,0:T(8,128)}', space=vmem, size = 0x10000, scoped, tag = 'scratch operand']
  %s0 = inlined_call_operand.vmem [shape: bf16[128,256], index: 0, kind: input, shape index: {}]
  %s1 = inlined_call_operand.vmem [shape: bf16[256,128], index: 1, kind: input, shape index: {}]
  %s2 = inlined_call_operand.vmem [shape: f32[1,128], index: 2, kind: input, shape index: {}]
  %s3 = inlined_call_operand.vmem [shape: bf16[128,128], index: 3, kind: output, shape index: {0}]
  %s4 = inlined_call_operand.vmem [shape: f32[8,128], index: 4, kind: output, shape index: {1}]
  %5 = xla_tuple %s3, %s4
  %s6 = sld [smem:[#allocation0]]
  $region38: #{_lambda_.9} parent=0
    _
  %s8 = ssub.s32 1, %s6
  %s9 = scalar_select 0, %s8, %s6
  // Predicated region
  $region2: #{_lambda_.9} parent=0 // pred_check
    _
  $region3: #{_lambda_.9} parent=0 // pred_check_branch
    %11 = sbr.rel (0) target = $region5
  $region4: #{_lambda_.9} parent=0 // pred_region
    _
  $region5: #{_lambda_.9} parent=0 // pred_fallthru
    _
  // Predicated region
  $region6: #{_lambda_.9} parent=0 // pred_check
    _
  $region7: #{_lambda_.9} parent=0 // pred_check_branch
    %13 = sbr.rel (0) target = $region9
  $region8: #{_lambda_.9} parent=0 // pred_region
    _
  $region9: #{_lambda_.9} parent=0 // pred_fallthru
    _
  // Predicated region
  $region10: #{_lambda_.9} parent=0 // pred_check
    _
  $region11: #{_lambda_.9} parent=0 // pred_check_branch
    %15 = sbr.rel (0) target = $region13
  $region12: #{_lambda_.9} parent=0 // pred_region
    _
  $region13: #{_lambda_.9} parent=0 // pred_fallthru
    _
  %p17 = scmp.eq.s32.totalorder 0, 0
  // Predicated region
  $region14: #{_lambda_.9} parent=0 // pred_check
    %p18 = pneg %p17
  $region15: #{_lambda_.9} parent=0 // pred_check_branch
    %20 = sbr.rel (%p18) target = $region17
  $region16: #{_lambda_.9} parent=0 // pred_region
    %21 = vst [vmem:[#allocation2] sm:$0xff] 0.0
    %22 = vst [vmem:[#allocation2 + $0x8] sm:$0xff] 0.0
    %23 = vst [vmem:[#allocation2 + $0x10] sm:$0xff] 0.0
    %24 = vst [vmem:[#allocation2 + $0x18] sm:$0xff] 0.0
    %25 = vst [vmem:[#allocation2 + $0x20] sm:$0xff] 0.0
    %26 = vst [vmem:[#allocation2 + $0x28] sm:$0xff] 0.0
    %27 = vst [vmem:[#allocation2 + $0x30] sm:$0xff] 0.0
    %28 = vst [vmem:[#allocation2 + $0x38] sm:$0xff] 0.0
    %29 = vst [vmem:[#allocation2 + $0x40] sm:$0xff] 0.0
    %30 = vst [vmem:[#allocation2 + $0x48] sm:$0xff] 0.0
    %31 = vst [vmem:[#allocation2 + $0x50] sm:$0xff] 0.0
    %32 = vst [vmem:[#allocation2 + $0x58] sm:$0xff] 0.0
    %33 = vst [vmem:[#allocation2 + $0x60] sm:$0xff] 0.0
    %34 = vst [vmem:[#allocation2 + $0x68] sm:$0xff] 0.0
    %35 = vst [vmem:[#allocation2 + $0x70] sm:$0xff] 0.0
    %36 = vst [vmem:[#allocation2 + $0x78] sm:$0xff] 0.0
  $region17: #{_lambda_.9} parent=0 // pred_fallthru
    _
  %v37 = vld [vmem:[#allocation2] sm:$0xff]
  %v38 = vld [vmem:[#allocation2 + $0x8] sm:$0xff]
  %v39 = vld [vmem:[#allocation2 + $0x10] sm:$0xff]
  %v40 = vld [vmem:[#allocation2 + $0x18] sm:$0xff]
  %v41 = vld [vmem:[#allocation2 + $0x20] sm:$0xff]
  %v42 = vld [vmem:[#allocation2 + $0x28] sm:$0xff]
  %v43 = vld [vmem:[#allocation2 + $0x30] sm:$0xff]
  %v44 = vld [vmem:[#allocation2 + $0x38] sm:$0xff]
  %v45 = vld [vmem:[#allocation2 + $0x40] sm:$0xff]
  %v46 = vld [vmem:[#allocation2 + $0x48] sm:$0xff]
  %v47 = vld [vmem:[#allocation2 + $0x50] sm:$0xff]
  %v48 = vld [vmem:[#allocation2 + $0x58] sm:$0xff]
  %v49 = vld [vmem:[#allocation2 + $0x60] sm:$0xff]
  %v50 = vld [vmem:[#allocation2 + $0x68] sm:$0xff]
  %v51 = vld [vmem:[#allocation2 + $0x70] sm:$0xff]
  %v52 = vld [vmem:[#allocation2 + $0x78] sm:$0xff]
  %v53 = vld [vmem:[%s0] sm:$0xff]
  %v54 = vld [vmem:[%s0 + $0x8] sm:$0xff]
  %v55 = vld [vmem:[%s0 + $0x10] sm:$0xff]
  %v56 = vld [vmem:[%s0 + $0x18] sm:$0xff]
  %v57 = vld [vmem:[%s0 + $0x20] sm:$0xff]
  %v58 = vld [vmem:[%s0 + $0x28] sm:$0xff]
  %v59 = vld [vmem:[%s0 + $0x30] sm:$0xff]
  %v60 = vld [vmem:[%s0 + $0x38] sm:$0xff]
  %v61 = vld [vmem:[%s0 + $0x40] sm:$0xff]
  %v62 = vld [vmem:[%s0 + $0x48] sm:$0xff]
  %v63 = vld [vmem:[%s0 + $0x50] sm:$0xff]
  %v64 = vld [vmem:[%s0 + $0x58] sm:$0xff]
  %v65 = vld [vmem:[%s0 + $0x60] sm:$0xff]
  %v66 = vld [vmem:[%s0 + $0x68] sm:$0xff]
  %v67 = vld [vmem:[%s0 + $0x70] sm:$0xff]
  %v68 = vld [vmem:[%s0 + $0x78] sm:$0xff]
  %v69 = vld [vmem:[%s1] sm:$0xf]
  %v70 = vld [vmem:[%s1 + $0x4] sm:$0xf]
  %v71 = vld [vmem:[%s1 + $0x8] sm:$0xf]
  %v72 = vld [vmem:[%s1 + $0xc] sm:$0xf]
  %v73 = vld [vmem:[%s1 + $0x10] sm:$0xf]
  %v74 = vld [vmem:[%s1 + $0x14] sm:$0xf]
  %v75 = vld [vmem:[%s1 + $0x18] sm:$0xf]
  %v76 = vld [vmem:[%s1 + $0x1c] sm:$0xf]
  %v77 = vld [vmem:[%s1 + $0x20] sm:$0xf]
  %v78 = vld [vmem:[%s1 + $0x24] sm:$0xf]
  %v79 = vld [vmem:[%s1 + $0x28] sm:$0xf]
  %v80 = vld [vmem:[%s1 + $0x2c] sm:$0xf]
  %v81 = vld [vmem:[%s1 + $0x30] sm:$0xf]
  %v82 = vld [vmem:[%s1 + $0x34] sm:$0xf]
  %v83 = vld [vmem:[%s1 + $0x38] sm:$0xf]
  %v84 = vld [vmem:[%s1 + $0x3c] sm:$0xf]
  %v85 = vld [vmem:[%s1 + $0x40] sm:$0xf]
  %v86 = vld [vmem:[%s1 + $0x44] sm:$0xf]
  %v87 = vld [vmem:[%s1 + $0x48] sm:$0xf]
  %v88 = vld [vmem:[%s1 + $0x4c] sm:$0xf]
  %v89 = vld [vmem:[%s1 + $0x50] sm:$0xf]
  %v90 = vld [vmem:[%s1 + $0x54] sm:$0xf]
  %v91 = vld [vmem:[%s1 + $0x58] sm:$0xf]
  %v92 = vld [vmem:[%s1 + $0x5c] sm:$0xf]
  %v93 = vld [vmem:[%s1 + $0x60] sm:$0xf]
  %v94 = vld [vmem:[%s1 + $0x64] sm:$0xf]
  %v95 = vld [vmem:[%s1 + $0x68] sm:$0xf]
  %v96 = vld [vmem:[%s1 + $0x6c] sm:$0xf]
  %v97 = vld [vmem:[%s1 + $0x70] sm:$0xf]
  %v98 = vld [vmem:[%s1 + $0x74] sm:$0xf]
  %v99 = vld [vmem:[%s1 + $0x78] sm:$0xf]
  %v100 = vld [vmem:[%s1 + $0x7c] sm:$0xf]
  %v117 = vunpack.c.l.b16 %v53
  %v118 = vunpack.c.h.b16 %v53
  %v119 = vunpack.c.l.b16 %v54
  %v120 = vunpack.c.h.b16 %v54
  %v121 = vunpack.c.l.b16 %v55
  %v122 = vunpack.c.h.b16 %v55
  %v123 = vunpack.c.l.b16 %v56
  %v124 = vunpack.c.h.b16 %v56
  %v125 = vunpack.c.l.b16 %v57
  %v126 = vunpack.c.h.b16 %v57
  %v127 = vunpack.c.l.b16 %v58
  %v128 = vunpack.c.h.b16 %v58
  %v129 = vunpack.c.l.b16 %v59
  %v130 = vunpack.c.h.b16 %v59
  %v131 = vunpack.c.l.b16 %v60
  %v132 = vunpack.c.h.b16 %v60
  %v133 = vunpack.c.l.b16 %v61
  %v134 = vunpack.c.h.b16 %v61
  %v135 = vunpack.c.l.b16 %v62
  %v136 = vunpack.c.h.b16 %v62
  %v137 = vunpack.c.l.b16 %v63
  %v138 = vunpack.c.h.b16 %v63
  %v139 = vunpack.c.l.b16 %v64
  %v140 = vunpack.c.h.b16 %v64
  %v141 = vunpack.c.l.b16 %v65
  %v142 = vunpack.c.h.b16 %v65
  %v143 = vunpack.c.l.b16 %v66
  %v144 = vunpack.c.h.b16 %v66
  %v145 = vunpack.c.l.b16 %v67
  %v146 = vunpack.c.h.b16 %v67
  %v147 = vunpack.c.l.b16 %v68
  %v148 = vunpack.c.h.b16 %v68
  %v149 = vpack.c.b16 %v119, %v117
  %v150 = vpack.c.b16 %v120, %v118
  %v151 = vpack.c.b16 %v123, %v121
  %v152 = vpack.c.b16 %v124, %v122
  %v153 = vpack.c.b16 %v127, %v125
  %v154 = vpack.c.b16 %v128, %v126
  %v155 = vpack.c.b16 %v131, %v129
  %v156 = vpack.c.b16 %v132, %v130
  %v157 = vpack.c.b16 %v135, %v133
  %v158 = vpack.c.b16 %v136, %v134
  %v159 = vpack.c.b16 %v139, %v137
  %v160 = vpack.c.b16 %v140, %v138
  %v161 = vpack.c.b16 %v143, %v141
  %v162 = vpack.c.b16 %v144, %v142
  %v163 = vpack.c.b16 %v147, %v145
  %v164 = vpack.c.b16 %v148, %v146
  %v213 = vunpack.c.l.b16 %v69
  %v214 = vunpack.c.l.b16 %v70
  %v215 = vunpack.c.l.b16 %v71
  %v216 = vunpack.c.l.b16 %v72
  %v217 = vunpack.c.l.b16 %v73
  %v218 = vunpack.c.l.b16 %v74
  %v219 = vunpack.c.l.b16 %v75
  %v220 = vunpack.c.l.b16 %v76
  %v221 = vunpack.c.l.b16 %v77
  %v222 = vunpack.c.l.b16 %v78
  %v223 = vunpack.c.l.b16 %v79
  %v224 = vunpack.c.l.b16 %v80
  %v225 = vunpack.c.l.b16 %v81
  %v226 = vunpack.c.l.b16 %v82
  %v227 = vunpack.c.l.b16 %v83
  %v228 = vunpack.c.l.b16 %v84
  %v229 = vunpack.c.l.b16 %v85
  %v230 = vunpack.c.l.b16 %v86
  %v231 = vunpack.c.l.b16 %v87
  %v232 = vunpack.c.l.b16 %v88
  %v233 = vunpack.c.l.b16 %v89
  %v234 = vunpack.c.l.b16 %v90
  %v235 = vunpack.c.l.b16 %v91
  %v236 = vunpack.c.l.b16 %v92
  %v237 = vunpack.c.l.b16 %v93
  %v238 = vunpack.c.l.b16 %v94
  %v239 = vunpack.c.l.b16 %v95
  %v240 = vunpack.c.l.b16 %v96
  %v241 = vunpack.c.l.b16 %v97
  %v242 = vunpack.c.l.b16 %v98
  %v243 = vunpack.c.l.b16 %v99
  %v244 = vunpack.c.l.b16 %v100
  %v245 = vpack.c.b16 %v214, %v213
  %v246 = vpack.c.b16 %v216, %v215
  %v247 = vpack.c.b16 %v218, %v217
  %v248 = vpack.c.b16 %v220, %v219
  %v249 = vpack.c.b16 %v222, %v221
  %v250 = vpack.c.b16 %v224, %v223
  %v251 = vpack.c.b16 %v226, %v225
  %v252 = vpack.c.b16 %v228, %v227
  %v253 = vpack.c.b16 %v230, %v229
  %v254 = vpack.c.b16 %v232, %v231
  %v255 = vpack.c.b16 %v234, %v233
  %v256 = vpack.c.b16 %v236, %v235
  %v257 = vpack.c.b16 %v238, %v237
  %v258 = vpack.c.b16 %v240, %v239
  %v259 = vpack.c.b16 %v242, %v241
  %v260 = vpack.c.b16 %v244, %v243
  %277 = vmatprep.subr.bf16.mxu0 0
  %278 = vmatpush1.bf16.msra.mxu0 %v245
  %279 = vmatprep.subr.bf16.mxu0 0
  %280 = vmatpush1.bf16.msra.mxu0 %v246
  %281 = vmatprep.subr.bf16.mxu0 0
  %282 = vmatpush1.bf16.msra.mxu0 %v247
  %283 = vmatprep.subr.bf16.mxu0 0
  %284 = vmatpush1.bf16.msra.mxu0 %v248
  %285 = vmatprep.subr.bf16.mxu0 0
  %286 = vmatpush1.bf16.msra.mxu0 %v249
  %287 = vmatprep.subr.bf16.mxu0 0
  %288 = vmatpush1.bf16.msra.mxu0 %v250
  %289 = vmatprep.subr.bf16.mxu0 0
  %290 = vmatpush1.bf16.msra.mxu0 %v251
  %291 = vmatprep.subr.bf16.mxu0 0
  %292 = vmatpush1.bf16.msra.mxu0 %v252
  %293 = vmatprep.subr.bf16.mxu0 0
  %294 = vmatpush1.bf16.msra.mxu0 %v253
  %295 = vmatprep.subr.bf16.mxu0 0
  %296 = vmatpush1.bf16.msra.mxu0 %v254
  %297 = vmatprep.subr.bf16.mxu0 0
  %298 = vmatpush1.bf16.msra.mxu0 %v255
  %299 = vmatprep.subr.bf16.mxu0 0
  %300 = vmatpush1.bf16.msra.mxu0 %v256
  %301 = vmatprep.subr.bf16.mxu0 0
  %302 = vmatpush1.bf16.msra.mxu0 %v257
  %303 = vmatprep.subr.bf16.mxu0 0
  %304 = vmatpush1.bf16.msra.mxu0 %v258
  %305 = vmatprep.subr.bf16.mxu0 0
  %306 = vmatpush1.bf16.msra.mxu0 %v259
  %307 = vmatprep.subr.bf16.mxu0 0
  %308 = vmatpush1.bf16.msra.mxu0 %v260
  %309 = vmatprep.mubr.bf16.mxu0 %v150
  %310 = vmatmul.mubr.bf16.gmra.mrb[0].mxu0 %v149
  %v311 = vpop.f32.mrb[0].mxu0
  %v312 = vadd.f32 0.0, %v311
  %v313 = vpop.f32.mrb[0].mxu0
  %v314 = vpop.f32.mrb[0].mxu0
  %v315 = vadd.f32 0.0, %v314
  %v316 = vpop.f32.mrb[0].mxu0
  %317 = vmatprep.mubr.bf16.mxu0 %v152
  %318 = vmatmul.mubr.bf16.gmra.mrb[0].mxu0 %v151
  %v319 = vpop.f32.mrb[0].mxu0
  %v320 = vadd.f32 0.0, %v319
  %v321 = vpop.f32.mrb[0].mxu0
  %v322 = vpop.f32.mrb[0].mxu0
  %v323 = vadd.f32 0.0, %v322
  %v324 = vpop.f32.mrb[0].mxu0
  %325 = vmatprep.mubr.bf16.mxu0 %v154
  %326 = vmatmul.mubr.bf16.gmra.mrb[0].mxu0 %v153
  %v327 = vpop.f32.mrb[0].mxu0
  %v328 = vadd.f32 0.0, %v327
  %v329 = vpop.f32.mrb[0].mxu0
  %v330 = vpop.f32.mrb[0].mxu0
  %v331 = vadd.f32 0.0, %v330
  %v332 = vpop.f32.mrb[0].mxu0
  %333 = vmatprep.mubr.bf16.mxu0 %v156
  %334 = vmatmul.mubr.bf16.gmra.mrb[0].mxu0 %v155
  %v335 = vpop.f32.mrb[0].mxu0
  %v336 = vadd.f32 0.0, %v335
  %v337 = vpop.f32.mrb[0].mxu0
  %v338 = vpop.f32.mrb[0].mxu0
  %v339 = vadd.f32 0.0, %v338
  %v340 = vpop.f32.mrb[0].mxu0
  %341 = vmatprep.mubr.bf16.mxu0 %v158
  %342 = vmatmul.mubr.bf16.gmra.mrb[0].mxu0 %v157
  %v343 = vpop.f32.mrb[0].mxu0
  %v344 = vadd.f32 0.0, %v343
  %v345 = vpop.f32.mrb[0].mxu0
  %v346 = vpop.f32.mrb[0].mxu0
  %v347 = vadd.f32 0.0, %v346
  %v348 = vpop.f32.mrb[0].mxu0
  %349 = vmatprep.mubr.bf16.mxu0 %v160
  %350 = vmatmul.mubr.bf16.gmra.mrb[0].mxu0 %v159
  %v351 = vpop.f32.mrb[0].mxu0
  %v352 = vadd.f32 0.0, %v351
  %v353 = vpop.f32.mrb[0].mxu0
  %v354 = vpop.f32.mrb[0].mxu0
  %v355 = vadd.f32 0.0, %v354
  %v356 = vpop.f32.mrb[0].mxu0
  %357 = vmatprep.mubr.bf16.mxu0 %v162
  %358 = vmatmul.mubr.bf16.gmra.mrb[0].mxu0 %v161
  %v359 = vpop.f32.mrb[0].mxu0
  %v360 = vadd.f32 0.0, %v359
  %v361 = vpop.f32.mrb[0].mxu0
  %v362 = vpop.f32.mrb[0].mxu0
  %v363 = vadd.f32 0.0, %v362
  %v364 = vpop.f32.mrb[0].mxu0
  %365 = vmatprep.mubr.bf16.mxu0 %v164
  %366 = vmatmul.mubr.bf16.gmra.mrb[0].mxu0 %v163
  %v367 = vpop.f32.mrb[0].mxu0
  %v368 = vadd.f32 0.0, %v367
  %v369 = vpop.f32.mrb[0].mxu0
  %v370 = vpop.f32.mrb[0].mxu0
  %v371 = vadd.f32 0.0, %v370
  %v372 = vpop.f32.mrb[0].mxu0
  %373 = vdwg.mxu0
  %v374 = vadd.f32 %v37, %v312
  %v375 = vadd.f32 %v38, %v315
  %v376 = vadd.f32 %v39, %v320
  %v377 = vadd.f32 %v40, %v323
  %v378 = vadd.f32 %v41, %v328
  %v379 = vadd.f32 %v42, %v331
  %v380 = vadd.f32 %v43, %v336
  %v381 = vadd.f32 %v44, %v339
  %v382 = vadd.f32 %v45, %v344
  %v383 = vadd.f32 %v46, %v347
  %v384 = vadd.f32 %v47, %v352
  %v385 = vadd.f32 %v48, %v355
  %v386 = vadd.f32 %v49, %v360
  %v387 = vadd.f32 %v50, %v363
  %v388 = vadd.f32 %v51, %v368
  %v389 = vadd.f32 %v52, %v371
  %390 = vst [vmem:[#allocation2] sm:$0xff] %v374
  %391 = vst [vmem:[#allocation2 + $0x8] sm:$0xff] %v375
  %392 = vst [vmem:[#allocation2 + $0x10] sm:$0xff] %v376
  %393 = vst [vmem:[#allocation2 + $0x18] sm:$0xff] %v377
  %394 = vst [vmem:[#allocation2 + $0x20] sm:$0xff] %v378
  %395 = vst [vmem:[#allocation2 + $0x28] sm:$0xff] %v379
  %396 = vst [vmem:[#allocation2 + $0x30] sm:$0xff] %v380
  %397 = vst [vmem:[#allocation2 + $0x38] sm:$0xff] %v381
  %398 = vst [vmem:[#allocation2 + $0x40] sm:$0xff] %v382
  %399 = vst [vmem:[#allocation2 + $0x48] sm:$0xff] %v383
  %400 = vst [vmem:[#allocation2 + $0x50] sm:$0xff] %v384
  %401 = vst [vmem:[#allocation2 + $0x58] sm:$0xff] %v385
  %402 = vst [vmem:[#allocation2 + $0x60] sm:$0xff] %v386
  %403 = vst [vmem:[#allocation2 + $0x68] sm:$0xff] %v387
  %404 = vst [vmem:[#allocation2 + $0x70] sm:$0xff] %v388
  %405 = vst [vmem:[#allocation2 + $0x78] sm:$0xff] %v389
  // Predicated region
  $region18: #{_lambda_.9} parent=0 // pred_check
    %p406 = pneg %p17
  $region19: #{_lambda_.9} parent=0 // pred_check_branch
    %408 = sbr.rel (%p406) target = $region21
  $region20: #{_lambda_.9} parent=0 // pred_region
    %v409 = vld [vmem:[#allocation2] sm:$0xff]
    %v410 = vld [vmem:[#allocation2 + $0x8] sm:$0xff]
    %v411 = vld [vmem:[#allocation2 + $0x10] sm:$0xff]
    %v412 = vld [vmem:[#allocation2 + $0x18] sm:$0xff]
    %v413 = vld [vmem:[#allocation2 + $0x20] sm:$0xff]
    %v414 = vld [vmem:[#allocation2 + $0x28] sm:$0xff]
    %v415 = vld [vmem:[#allocation2 + $0x30] sm:$0xff]
    %v416 = vld [vmem:[#allocation2 + $0x38] sm:$0xff]
    %v417 = vld [vmem:[#allocation2 + $0x40] sm:$0xff]
    %v418 = vld [vmem:[#allocation2 + $0x48] sm:$0xff]
    %v419 = vld [vmem:[#allocation2 + $0x50] sm:$0xff]
    %v420 = vld [vmem:[#allocation2 + $0x58] sm:$0xff]
    %v421 = vld [vmem:[#allocation2 + $0x60] sm:$0xff]
    %v422 = vld [vmem:[#allocation2 + $0x68] sm:$0xff]
    %v423 = vld [vmem:[#allocation2 + $0x70] sm:$0xff]
    %v424 = vld [vmem:[#allocation2 + $0x78] sm:$0xff]
    %v425 = vld [vmem:[%s2] sm:$0x1]
    %v427 = vlaneseq
    %v428 = vshrl.u32 %v427, 7
    %v429 = vsub.s32 0, %v428
    %v430 = vrot.slane %v425, %v429
    %v432 = vadd.f32 %v409, %v430
    %v433 = vadd.f32 %v410, %v430
    %v434 = vadd.f32 %v411, %v430
    %v435 = vadd.f32 %v412, %v430
    %v436 = vadd.f32 %v413, %v430
    %v437 = vadd.f32 %v414, %v430
    %v438 = vadd.f32 %v415, %v430
    %v439 = vadd.f32 %v416, %v430
    %v440 = vadd.f32 %v417, %v430
    %v441 = vadd.f32 %v418, %v430
    %v442 = vadd.f32 %v419, %v430
    %v443 = vadd.f32 %v420, %v430
    %v444 = vadd.f32 %v421, %v430
    %v445 = vadd.f32 %v422, %v430
    %v446 = vadd.f32 %v423, %v430
    %v447 = vadd.f32 %v424, %v430
    %v448 = vpack.c.bf16 %v433, %v432
    %v449 = vpack.c.bf16 %v435, %v434
    %v450 = vpack.c.bf16 %v437, %v436
    %v451 = vpack.c.bf16 %v439, %v438
    %v452 = vpack.c.bf16 %v441, %v440
    %v453 = vpack.c.bf16 %v443, %v442
    %v454 = vpack.c.bf16 %v445, %v444
    %v455 = vpack.c.bf16 %v447, %v446
    %v464 = vunpack.c.l.b16 %v448
    %v465 = vunpack.c.h.b16 %v448
    %v466 = vunpack.c.l.b16 %v449
    %v467 = vunpack.c.h.b16 %v449
    %v468 = vunpack.c.l.b16 %v450
    %v469 = vunpack.c.h.b16 %v450
    %v470 = vunpack.c.l.b16 %v451
    %v471 = vunpack.c.h.b16 %v451
    %v472 = vunpack.c.l.b16 %v452
    %v473 = vunpack.c.h.b16 %v452
    %v474 = vunpack.c.l.b16 %v453
    %v475 = vunpack.c.h.b16 %v453
    %v476 = vunpack.c.l.b16 %v454
    %v477 = vunpack.c.h.b16 %v454
    %v478 = vunpack.c.l.b16 %v455
    %v479 = vunpack.c.h.b16 %v455
    %v480 = vpack.c.b16 %v464, %v464
    %v481 = vpack.c.b16 %v465, %v465
    %v482 = vpack.c.b16 %v466, %v466
    %v483 = vpack.c.b16 %v467, %v467
    %v484 = vpack.c.b16 %v468, %v468
    %v485 = vpack.c.b16 %v469, %v469
    %v486 = vpack.c.b16 %v470, %v470
    %v487 = vpack.c.b16 %v471, %v471
    %v488 = vpack.c.b16 %v472, %v472
    %v489 = vpack.c.b16 %v473, %v473
    %v490 = vpack.c.b16 %v474, %v474
    %v491 = vpack.c.b16 %v475, %v475
    %v492 = vpack.c.b16 %v476, %v476
    %v493 = vpack.c.b16 %v477, %v477
    %v494 = vpack.c.b16 %v478, %v478
    %v495 = vpack.c.b16 %v479, %v479
    %512 = vst [vmem:[%s3] sm:$0xf] %v480
    %513 = vst [vmem:[%s3 + $0x4] sm:$0xf] %v481
    %514 = vst [vmem:[%s3 + $0x8] sm:$0xf] %v482
    %515 = vst [vmem:[%s3 + $0xc] sm:$0xf] %v483
    %516 = vst [vmem:[%s3 + $0x10] sm:$0xf] %v484
    %517 = vst [vmem:[%s3 + $0x14] sm:$0xf] %v485
    %518 = vst [vmem:[%s3 + $0x18] sm:$0xf] %v486
    %519 = vst [vmem:[%s3 + $0x1c] sm:$0xf] %v487
    %520 = vst [vmem:[%s3 + $0x20] sm:$0xf] %v488
    %521 = vst [vmem:[%s3 + $0x24] sm:$0xf] %v489
    %522 = vst [vmem:[%s3 + $0x28] sm:$0xf] %v490
    %523 = vst [vmem:[%s3 + $0x2c] sm:$0xf] %v491
    %524 = vst [vmem:[%s3 + $0x30] sm:$0xf] %v492
    %525 = vst [vmem:[%s3 + $0x34] sm:$0xf] %v493
    %526 = vst [vmem:[%s3 + $0x38] sm:$0xf] %v494
    %527 = vst [vmem:[%s3 + $0x3c] sm:$0xf] %v495
    %v528 = vadd.f32 %v432, %v433
    %v529 = vadd.f32 %v528, %v434
    %v530 = vadd.f32 %v529, %v435
    %v531 = vadd.f32 %v530, %v436
    %v532 = vadd.f32 %v531, %v437
    %v533 = vadd.f32 %v532, %v438
    %v534 = vadd.f32 %v533, %v439
    %v535 = vadd.f32 %v534, %v440
    %v536 = vadd.f32 %v535, %v441
    %v537 = vadd.f32 %v536, %v442
    %v538 = vadd.f32 %v537, %v443
    %v539 = vadd.f32 %v538, %v444
    %v540 = vadd.f32 %v539, %v445
    %v541 = vadd.f32 %v540, %v446
    %v542 = vadd.f32 %v541, %v447
    %v543 = vrot.slane %v542, 4
    %v544 = vadd.f32 %v542, %v543
    %v545 = vrot.slane %v544, 2
    %v546 = vadd.f32 %v544, %v545
    %v547 = vrot.slane %v546, 1
    %v548 = vadd.f32 %v546, %v547
    %v549 = vmul.f32 %v432, %v432
    %v550 = vmul.f32 %v433, %v433
    %v551 = vmul.f32 %v434, %v434
    %v552 = vmul.f32 %v435, %v435
    %v553 = vmul.f32 %v436, %v436
    %v554 = vmul.f32 %v437, %v437
    %v555 = vmul.f32 %v438, %v438
    %v556 = vmul.f32 %v439, %v439
    %v557 = vmul.f32 %v440, %v440
    %v558 = vmul.f32 %v441, %v441
    %v559 = vmul.f32 %v442, %v442
    %v560 = vmul.f32 %v443, %v443
    %v561 = vmul.f32 %v444, %v444
    %v562 = vmul.f32 %v445, %v445
    %v563 = vmul.f32 %v446, %v446
    %v564 = vmul.f32 %v447, %v447
    %v565 = vadd.f32 %v549, %v550
    %v566 = vadd.f32 %v565, %v551
    %v567 = vadd.f32 %v566, %v552
    %v568 = vadd.f32 %v567, %v553
    %v569 = vadd.f32 %v568, %v554
    %v570 = vadd.f32 %v569, %v555
    %v571 = vadd.f32 %v570, %v556
    %v572 = vadd.f32 %v571, %v557
    %v573 = vadd.f32 %v572, %v558
    %v574 = vadd.f32 %v573, %v559
    %v575 = vadd.f32 %v574, %v560
    %v576 = vadd.f32 %v575, %v561
    %v577 = vadd.f32 %v576, %v562
    %v578 = vadd.f32 %v577, %v563
    %v579 = vadd.f32 %v578, %v564
    %v580 = vrot.slane %v579, 4
    %v581 = vadd.f32 %v579, %v580
    %v582 = vrot.slane %v581, 2
    %v583 = vadd.f32 %v581, %v582
    %v584 = vrot.slane %v583, 1
    %v585 = vadd.f32 %v583, %v584
    %v586 = vlaneseq
    %v587 = vshrl.u32 %v586, 7
    %vm588 = vcmp.eq.s32.totalorder %v587, 0
    %v589 = vsel %vm588, %v548, 0.0
    %vm590 = vcmp.eq.s32.totalorder %v587, 1
    %v591 = vsel %vm590, %v585, 0.0
    %v592 = vadd.f32 %v589, %v591
    %593 = vst [vmem:[%s4] sm:$0xff] %v592
  $region21: #{_lambda_.9} parent=0 // pred_fallthru
    _
  // Predicated region
  $region22: #{_lambda_.9} parent=0 // pred_check
    _
  $region23: #{_lambda_.9} parent=0 // pred_check_branch
    %595 = sbr.rel (0) target = $region25
  $region24: #{_lambda_.9} parent=0 // pred_region
    _
  $region25: #{_lambda_.9} parent=0 // pred_fallthru
    _
  // Predicated region
  $region26: #{_lambda_.9} parent=0 // pred_check
    _
  $region27: #{_lambda_.9} parent=0 // pred_check_branch
    %597 = sbr.rel (0) target = $region29
  $region28: #{_lambda_.9} parent=0 // pred_region
    _
  $region29: #{_lambda_.9} parent=0 // pred_fallthru
    _
  // Predicated region
  $region30: #{_lambda_.9} parent=0 // pred_check
    _
  $region31: #{_lambda_.9} parent=0 // pred_check_branch
    %599 = sbr.rel (0) target = $region33
  $region32: #{_lambda_.9} parent=0 // pred_region
    _
  $region33: #{_lambda_.9} parent=0 // pred_fallthru
    _
  // Predicated region
  $region34: #{_lambda_.9} parent=0 // pred_check
    _
  $region35: #{_lambda_.9} parent=0 // pred_check_branch
    %601 = sbr.rel (0) target = $region37
  $region36: #{_lambda_.9} parent=0 // pred_region
    _
  $region37: #{_lambda_.9} parent=0 // pred_fallthru
    _

// kernel: _lambda_.12
$region0: #{_lambda_.12}
  #allocation0 [shape = 'u32[]', space=smem, size = 0x4, offset = 0x4, fixed_abs, tag = 'smem constant byte address 0x4 - core index']
  #allocation1 [shape = 'u32[144,128]{1,0:T(1,128)}', space=vmem, size = 0x12000, scoped, tag = 'internal scratch']
  %s0 = inlined_call_operand.vmem [shape: bf16[32,128], index: 0, kind: input, shape index: {}]
  %s1 = inlined_call_operand.vmem [shape: f32[1,128], index: 1, kind: input, shape index: {}]
  %s2 = inlined_call_operand.vmem [shape: f32[1,128], index: 2, kind: input, shape index: {}]
  %s3 = inlined_call_operand.vmem [shape: bf16[32,128], index: 3, kind: output, shape index: {}]
  %s4 = sld [smem:[#allocation0]]
  $region22: #{_lambda_.12} parent=0
    _
  %s6 = ssub.s32 1, %s4
  %s7 = scalar_select 0, %s6, %s4
  // Predicated region
  $region2: #{_lambda_.12} parent=0 // pred_check
    _
  $region3: #{_lambda_.12} parent=0 // pred_check_branch
    %9 = sbr.rel (0) target = $region5
  $region4: #{_lambda_.12} parent=0 // pred_region
    _
  $region5: #{_lambda_.12} parent=0 // pred_fallthru
    _
  // Predicated region
  $region6: #{_lambda_.12} parent=0 // pred_check
    _
  $region7: #{_lambda_.12} parent=0 // pred_check_branch
    %11 = sbr.rel (0) target = $region9
  $region8: #{_lambda_.12} parent=0 // pred_region
    _
  $region9: #{_lambda_.12} parent=0 // pred_fallthru
    _
  // Predicated region
  $region10: #{_lambda_.12} parent=0 // pred_check
    _
  $region11: #{_lambda_.12} parent=0 // pred_check_branch
    %13 = sbr.rel (0) target = $region13
  $region12: #{_lambda_.12} parent=0 // pred_region
    _
  $region13: #{_lambda_.12} parent=0 // pred_fallthru
    _
  %v14 = vld [vmem:[%s0] sm:$0xf]
  %v15 = vld [vmem:[%s0 + $0x4] sm:$0xf]
  %v16 = vld [vmem:[%s0 + $0x8] sm:$0xf]
  %v17 = vld [vmem:[%s0 + $0xc] sm:$0xf]
  %v18 = vunpack.c.l.bf16 %v14
  %v19 = vunpack.c.l.bf16 %v15
  %v20 = vunpack.c.l.bf16 %v16
  %v21 = vunpack.c.l.bf16 %v17
  %v22 = vld [vmem:[%s1] sm:$0x1]
  %v24 = vlaneseq
  %v25 = vshrl.u32 %v24, 7
  %v26 = vsub.s32 0, %v25
  %v27 = vrot.slane %v22, %v26
  %v29 = vmul.f32 %v18, %v27
  %v30 = vmul.f32 %v19, %v27
  %v31 = vmul.f32 %v20, %v27
  %v32 = vmul.f32 %v21, %v27
  %v33 = vld [vmem:[%s2] sm:$0x1]
  %v35 = vlaneseq
  %v36 = vshrl.u32 %v35, 7
  %v37 = vsub.s32 0, %v36
  %v38 = vrot.slane %v33, %v37
  %v40 = vadd.f32 %v29, %v38
  %v41 = vadd.f32 %v30, %v38
  %v42 = vadd.f32 %v31, %v38
  %v43 = vadd.f32 %v32, %v38
  %vm44 = vcmp.ge.f32.partialorder %v40, 0.0
  %vm45 = vcmp.ge.f32.partialorder %v41, 0.0
  %vm46 = vcmp.ge.f32.partialorder %v42, 0.0
  %vm47 = vcmp.ge.f32.partialorder %v43, 0.0
  %v48 = vmul.f32 %v40, 0.2
  %v49 = vmul.f32 %v41, 0.2
  %v50 = vmul.f32 %v42, 0.2
  %v51 = vmul.f32 %v43, 0.2
  %v52 = vsel %vm44, %v40, %v48
  %v53 = vsel %vm45, %v41, %v49
  %v54 = vsel %vm46, %v42, %v50
  %v55 = vsel %vm47, %v43, %v51
  %v56 = vpack.c.bf16 %v53, %v52
  %v57 = vpack.c.bf16 %v55, %v54
  %v60 = vunpack.c.l.b16 %v56
  %v61 = vunpack.c.h.b16 %v56
  %v62 = vunpack.c.l.b16 %v57
  %v63 = vunpack.c.h.b16 %v57
  %v64 = vpack.c.b16 %v60, %v60
  %v65 = vpack.c.b16 %v61, %v61
  %v66 = vpack.c.b16 %v62, %v62
  %v67 = vpack.c.b16 %v63, %v63
  %72 = vst [vmem:[%s3] sm:$0xf] %v64
  %73 = vst [vmem:[%s3 + $0x4] sm:$0xf] %v65
  %74 = vst [vmem:[%s3 + $0x8] sm:$0xf] %v66
  %75 = vst [vmem:[%s3 + $0xc] sm:$0xf] %v67
  // Predicated region
  $region14: #{_lambda_.12} parent=0 // pred_check
    _
  $region15: #{_lambda_.12} parent=0 // pred_check_branch
    %77 = sbr.rel (0) target = $region17
  $region16: #{_lambda_.12} parent=0 // pred_region
    _
  $region17: #{_lambda_.12} parent=0 // pred_fallthru
    _
  // Predicated region
  $region18: #{_lambda_.12} parent=0 // pred_check
    _
  $region19: #{_lambda_.12} parent=0 // pred_check_branch
    %79 = sbr.rel (0) target = $region21
  $region20: #{_lambda_.12} parent=0 // pred_region
    _
  $region21: #{_lambda_.12} parent=0 // pred_fallthru
    _

// kernel: _lambda_.11
$region0: #{_lambda_.11}
  #allocation0 [shape = 'u32[]', space=smem, size = 0x4, offset = 0x4, fixed_abs, tag = 'smem constant byte address 0x4 - core index']
  #allocation1 [shape = 'u32[144,128]{1,0:T(1,128)}', space=vmem, size = 0x12000, scoped, tag = 'internal scratch']
  #allocation2 [shape = 'f32[32,128]{1,0:T(8,128)}', space=vmem, size = 0x4000, scoped, tag = 'scratch operand']
  %s0 = inlined_call_operand.vmem [shape: bf16[32,512], index: 0, kind: input, shape index: {}]
  %s1 = inlined_call_operand.vmem [shape: bf16[512,128], index: 1, kind: input, shape index: {}]
  %s2 = inlined_call_operand.vmem [shape: f32[1,128], index: 2, kind: input, shape index: {}]
  %s3 = inlined_call_operand.vmem [shape: bf16[32,128], index: 3, kind: output, shape index: {0}]
  %s4 = inlined_call_operand.vmem [shape: f32[8,128], index: 4, kind: output, shape index: {1}]
  %5 = xla_tuple %s3, %s4
  %s6 = sld [smem:[#allocation0]]
  $region38: #{_lambda_.11} parent=0
    _
  %s8 = ssub.s32 1, %s6
  %s9 = scalar_select 0, %s8, %s6
  // Predicated region
  $region2: #{_lambda_.11} parent=0 // pred_check
    _
  $region3: #{_lambda_.11} parent=0 // pred_check_branch
    %11 = sbr.rel (0) target = $region5
  $region4: #{_lambda_.11} parent=0 // pred_region
    _
  $region5: #{_lambda_.11} parent=0 // pred_fallthru
    _
  // Predicated region
  $region6: #{_lambda_.11} parent=0 // pred_check
    _
  $region7: #{_lambda_.11} parent=0 // pred_check_branch
    %13 = sbr.rel (0) target = $region9
  $region8: #{_lambda_.11} parent=0 // pred_region
    _
  $region9: #{_lambda_.11} parent=0 // pred_fallthru
    _
  // Predicated region
  $region10: #{_lambda_.11} parent=0 // pred_check
    _
  $region11: #{_lambda_.11} parent=0 // pred_check_branch
    %15 = sbr.rel (0) target = $region13
  $region12: #{_lambda_.11} parent=0 // pred_region
    _
  $region13: #{_lambda_.11} parent=0 // pred_fallthru
    _
  %p17 = scmp.eq.s32.totalorder 0, 0
  // Predicated region
  $region14: #{_lambda_.11} parent=0 // pred_check
    %p18 = pneg %p17
  $region15: #{_lambda_.11} parent=0 // pred_check_branch
    %20 = sbr.rel (%p18) target = $region17
  $region16: #{_lambda_.11} parent=0 // pred_region
    %21 = vst [vmem:[#allocation2] sm:$0xff] 0.0
    %22 = vst [vmem:[#allocation2 + $0x8] sm:$0xff] 0.0
    %23 = vst [vmem:[#allocation2 + $0x10] sm:$0xff] 0.0
    %24 = vst [vmem:[#allocation2 + $0x18] sm:$0xff] 0.0
  $region17: #{_lambda_.11} parent=0 // pred_fallthru
    _
  %v25 = vld [vmem:[#allocation2] sm:$0xff]
  %v26 = vld [vmem:[#allocation2 + $0x8] sm:$0xff]
  %v27 = vld [vmem:[#allocation2 + $0x10] sm:$0xff]
  %v28 = vld [vmem:[#allocation2 + $0x18] sm:$0xff]
  %v29 = vld [vmem:[%s0] sm:$0xff]
  %v30 = vld [vmem:[%s0 + $0x8] sm:$0xff]
  %v31 = vld [vmem:[%s0 + $0x10] sm:$0xff]
  %v32 = vld [vmem:[%s0 + $0x18] sm:$0xff]
  %v33 = vld [vmem:[%s0 + $0x20] sm:$0xff]
  %v34 = vld [vmem:[%s0 + $0x28] sm:$0xff]
  %v35 = vld [vmem:[%s0 + $0x30] sm:$0xff]
  %v36 = vld [vmem:[%s0 + $0x38] sm:$0xff]
  %v37 = vld [vmem:[%s1] sm:$0xf]
  %v38 = vld [vmem:[%s1 + $0x4] sm:$0xf]
  %v39 = vld [vmem:[%s1 + $0x8] sm:$0xf]
  %v40 = vld [vmem:[%s1 + $0xc] sm:$0xf]
  %v41 = vld [vmem:[%s1 + $0x10] sm:$0xf]
  %v42 = vld [vmem:[%s1 + $0x14] sm:$0xf]
  %v43 = vld [vmem:[%s1 + $0x18] sm:$0xf]
  %v44 = vld [vmem:[%s1 + $0x1c] sm:$0xf]
  %v45 = vld [vmem:[%s1 + $0x20] sm:$0xf]
  %v46 = vld [vmem:[%s1 + $0x24] sm:$0xf]
  %v47 = vld [vmem:[%s1 + $0x28] sm:$0xf]
  %v48 = vld [vmem:[%s1 + $0x2c] sm:$0xf]
  %v49 = vld [vmem:[%s1 + $0x30] sm:$0xf]
  %v50 = vld [vmem:[%s1 + $0x34] sm:$0xf]
  %v51 = vld [vmem:[%s1 + $0x38] sm:$0xf]
  %v52 = vld [vmem:[%s1 + $0x3c] sm:$0xf]
  %v53 = vld [vmem:[%s1 + $0x40] sm:$0xf]
  %v54 = vld [vmem:[%s1 + $0x44] sm:$0xf]
  %v55 = vld [vmem:[%s1 + $0x48] sm:$0xf]
  %v56 = vld [vmem:[%s1 + $0x4c] sm:$0xf]
  %v57 = vld [vmem:[%s1 + $0x50] sm:$0xf]
  %v58 = vld [vmem:[%s1 + $0x54] sm:$0xf]
  %v59 = vld [vmem:[%s1 + $0x58] sm:$0xf]
  %v60 = vld [vmem:[%s1 + $0x5c] sm:$0xf]
  %v61 = vld [vmem:[%s1 + $0x60] sm:$0xf]
  %v62 = vld [vmem:[%s1 + $0x64] sm:$0xf]
  %v63 = vld [vmem:[%s1 + $0x68] sm:$0xf]
  %v64 = vld [vmem:[%s1 + $0x6c] sm:$0xf]
  %v65 = vld [vmem:[%s1 + $0x70] sm:$0xf]
  %v66 = vld [vmem:[%s1 + $0x74] sm:$0xf]
  %v67 = vld [vmem:[%s1 + $0x78] sm:$0xf]
  %v68 = vld [vmem:[%s1 + $0x7c] sm:$0xf]
  %v69 = vld [vmem:[%s1 + $0x80] sm:$0xf]
  %v70 = vld [vmem:[%s1 + $0x84] sm:$0xf]
  %v71 = vld [vmem:[%s1 + $0x88] sm:$0xf]
  %v72 = vld [vmem:[%s1 + $0x8c] sm:$0xf]
  %v73 = vld [vmem:[%s1 + $0x90] sm:$0xf]
  %v74 = vld [vmem:[%s1 + $0x94] sm:$0xf]
  %v75 = vld [vmem:[%s1 + $0x98] sm:$0xf]
  %v76 = vld [vmem:[%s1 + $0x9c] sm:$0xf]
  %v77 = vld [vmem:[%s1 + $0xa0] sm:$0xf]
  %v78 = vld [vmem:[%s1 + $0xa4] sm:$0xf]
  %v79 = vld [vmem:[%s1 + $0xa8] sm:$0xf]
  %v80 = vld [vmem:[%s1 + $0xac] sm:$0xf]
  %v81 = vld [vmem:[%s1 + $0xb0] sm:$0xf]
  %v82 = vld [vmem:[%s1 + $0xb4] sm:$0xf]
  %v83 = vld [vmem:[%s1 + $0xb8] sm:$0xf]
  %v84 = vld [vmem:[%s1 + $0xbc] sm:$0xf]
  %v85 = vld [vmem:[%s1 + $0xc0] sm:$0xf]
  %v86 = vld [vmem:[%s1 + $0xc4] sm:$0xf]
  %v87 = vld [vmem:[%s1 + $0xc8] sm:$0xf]
  %v88 = vld [vmem:[%s1 + $0xcc] sm:$0xf]
  %v89 = vld [vmem:[%s1 + $0xd0] sm:$0xf]
  %v90 = vld [vmem:[%s1 + $0xd4] sm:$0xf]
  %v91 = vld [vmem:[%s1 + $0xd8] sm:$0xf]
  %v92 = vld [vmem:[%s1 + $0xdc] sm:$0xf]
  %v93 = vld [vmem:[%s1 + $0xe0] sm:$0xf]
  %v94 = vld [vmem:[%s1 + $0xe4] sm:$0xf]
  %v95 = vld [vmem:[%s1 + $0xe8] sm:$0xf]
  %v96 = vld [vmem:[%s1 + $0xec] sm:$0xf]
  %v97 = vld [vmem:[%s1 + $0xf0] sm:$0xf]
  %v98 = vld [vmem:[%s1 + $0xf4] sm:$0xf]
  %v99 = vld [vmem:[%s1 + $0xf8] sm:$0xf]
  %v100 = vld [vmem:[%s1 + $0xfc] sm:$0xf]
  %v109 = vunpack.c.l.b16 %v29
  %v110 = vunpack.c.h.b16 %v29
  %v111 = vunpack.c.l.b16 %v30
  %v112 = vunpack.c.h.b16 %v30
  %v113 = vunpack.c.l.b16 %v31
  %v114 = vunpack.c.h.b16 %v31
  %v115 = vunpack.c.l.b16 %v32
  %v116 = vunpack.c.h.b16 %v32
  %v117 = vunpack.c.l.b16 %v33
  %v118 = vunpack.c.h.b16 %v33
  %v119 = vunpack.c.l.b16 %v34
  %v120 = vunpack.c.h.b16 %v34
  %v121 = vunpack.c.l.b16 %v35
  %v122 = vunpack.c.h.b16 %v35
  %v123 = vunpack.c.l.b16 %v36
  %v124 = vunpack.c.h.b16 %v36
  %v125 = vpack.c.b16 %v113, %v109
  %v126 = vpack.c.b16 %v114, %v110
  %v127 = vpack.c.b16 %v115, %v111
  %v128 = vpack.c.b16 %v116, %v112
  %v129 = vpack.c.b16 %v121, %v117
  %v130 = vpack.c.b16 %v122, %v118
  %v131 = vpack.c.b16 %v123, %v119
  %v132 = vpack.c.b16 %v124, %v120
  %v205 = vunpack.c.l.b16 %v37
  %v206 = vunpack.c.l.b16 %v38
  %v207 = vunpack.c.l.b16 %v39
  %v208 = vunpack.c.l.b16 %v40
  %v209 = vunpack.c.l.b16 %v41
  %v210 = vunpack.c.l.b16 %v42
  %v211 = vunpack.c.l.b16 %v43
  %v212 = vunpack.c.l.b16 %v44
  %v213 = vunpack.c.l.b16 %v45
  %v214 = vunpack.c.l.b16 %v46
  %v215 = vunpack.c.l.b16 %v47
  %v216 = vunpack.c.l.b16 %v48
  %v217 = vunpack.c.l.b16 %v49
  %v218 = vunpack.c.l.b16 %v50
  %v219 = vunpack.c.l.b16 %v51
  %v220 = vunpack.c.l.b16 %v52
  %v221 = vunpack.c.l.b16 %v53
  %v222 = vunpack.c.l.b16 %v54
  %v223 = vunpack.c.l.b16 %v55
  %v224 = vunpack.c.l.b16 %v56
  %v225 = vunpack.c.l.b16 %v57
  %v226 = vunpack.c.l.b16 %v58
  %v227 = vunpack.c.l.b16 %v59
  %v228 = vunpack.c.l.b16 %v60
  %v229 = vunpack.c.l.b16 %v61
  %v230 = vunpack.c.l.b16 %v62
  %v231 = vunpack.c.l.b16 %v63
  %v232 = vunpack.c.l.b16 %v64
  %v233 = vunpack.c.l.b16 %v65
  %v234 = vunpack.c.l.b16 %v66
  %v235 = vunpack.c.l.b16 %v67
  %v236 = vunpack.c.l.b16 %v68
  %v237 = vunpack.c.l.b16 %v69
  %v238 = vunpack.c.l.b16 %v70
  %v239 = vunpack.c.l.b16 %v71
  %v240 = vunpack.c.l.b16 %v72
  %v241 = vunpack.c.l.b16 %v73
  %v242 = vunpack.c.l.b16 %v74
  %v243 = vunpack.c.l.b16 %v75
  %v244 = vunpack.c.l.b16 %v76
  %v245 = vunpack.c.l.b16 %v77
  %v246 = vunpack.c.l.b16 %v78
  %v247 = vunpack.c.l.b16 %v79
  %v248 = vunpack.c.l.b16 %v80
  %v249 = vunpack.c.l.b16 %v81
  %v250 = vunpack.c.l.b16 %v82
  %v251 = vunpack.c.l.b16 %v83
  %v252 = vunpack.c.l.b16 %v84
  %v253 = vunpack.c.l.b16 %v85
  %v254 = vunpack.c.l.b16 %v86
  %v255 = vunpack.c.l.b16 %v87
  %v256 = vunpack.c.l.b16 %v88
  %v257 = vunpack.c.l.b16 %v89
  %v258 = vunpack.c.l.b16 %v90
  %v259 = vunpack.c.l.b16 %v91
  %v260 = vunpack.c.l.b16 %v92
  %v261 = vunpack.c.l.b16 %v93
  %v262 = vunpack.c.l.b16 %v94
  %v263 = vunpack.c.l.b16 %v95
  %v264 = vunpack.c.l.b16 %v96
  %v265 = vunpack.c.l.b16 %v97
  %v266 = vunpack.c.l.b16 %v98
  %v267 = vunpack.c.l.b16 %v99
  %v268 = vunpack.c.l.b16 %v100
  %v269 = vpack.c.b16 %v206, %v205
  %v270 = vpack.c.b16 %v208, %v207
  %v271 = vpack.c.b16 %v210, %v209
  %v272 = vpack.c.b16 %v212, %v211
  %v273 = vpack.c.b16 %v214, %v213
  %v274 = vpack.c.b16 %v216, %v215
  %v275 = vpack.c.b16 %v218, %v217
  %v276 = vpack.c.b16 %v220, %v219
  %v277 = vpack.c.b16 %v222, %v221
  %v278 = vpack.c.b16 %v224, %v223
  %v279 = vpack.c.b16 %v226, %v225
  %v280 = vpack.c.b16 %v228, %v227
  %v281 = vpack.c.b16 %v230, %v229
  %v282 = vpack.c.b16 %v232, %v231
  %v283 = vpack.c.b16 %v234, %v233
  %v284 = vpack.c.b16 %v236, %v235
  %v285 = vpack.c.b16 %v238, %v237
  %v286 = vpack.c.b16 %v240, %v239
  %v287 = vpack.c.b16 %v242, %v241
  %v288 = vpack.c.b16 %v244, %v243
  %v289 = vpack.c.b16 %v246, %v245
  %v290 = vpack.c.b16 %v248, %v247
  %v291 = vpack.c.b16 %v250, %v249
  %v292 = vpack.c.b16 %v252, %v251
  %v293 = vpack.c.b16 %v254, %v253
  %v294 = vpack.c.b16 %v256, %v255
  %v295 = vpack.c.b16 %v258, %v257
  %v296 = vpack.c.b16 %v260, %v259
  %v297 = vpack.c.b16 %v262, %v261
  %v298 = vpack.c.b16 %v264, %v263
  %v299 = vpack.c.b16 %v266, %v265
  %v300 = vpack.c.b16 %v268, %v267
  %333 = vmatprep.subr.bf16.mxu0 0
  %334 = vmatpush1.bf16.msra.mxu0 %v269
  %335 = vmatprep.subr.bf16.mxu0 0
  %336 = vmatpush1.bf16.msra.mxu0 %v270
  %337 = vmatprep.subr.bf16.mxu0 0
  %338 = vmatpush1.bf16.msra.mxu0 %v271
  %339 = vmatprep.subr.bf16.mxu0 0
  %340 = vmatpush1.bf16.msra.mxu0 %v272
  %341 = vmatprep.subr.bf16.mxu0 0
  %342 = vmatpush1.bf16.msra.mxu0 %v273
  %343 = vmatprep.subr.bf16.mxu0 0
  %344 = vmatpush1.bf16.msra.mxu0 %v274
  %345 = vmatprep.subr.bf16.mxu0 0
  %346 = vmatpush1.bf16.msra.mxu0 %v275
  %347 = vmatprep.subr.bf16.mxu0 0
  %348 = vmatpush1.bf16.msra.mxu0 %v276
  %349 = vmatprep.subr.bf16.mxu0 0
  %350 = vmatpush1.bf16.msra.mxu0 %v277
  %351 = vmatprep.subr.bf16.mxu0 0
  %352 = vmatpush1.bf16.msra.mxu0 %v278
  %353 = vmatprep.subr.bf16.mxu0 0
  %354 = vmatpush1.bf16.msra.mxu0 %v279
  %355 = vmatprep.subr.bf16.mxu0 0
  %356 = vmatpush1.bf16.msra.mxu0 %v280
  %357 = vmatprep.subr.bf16.mxu0 0
  %358 = vmatpush1.bf16.msra.mxu0 %v281
  %359 = vmatprep.subr.bf16.mxu0 0
  %360 = vmatpush1.bf16.msra.mxu0 %v282
  %361 = vmatprep.subr.bf16.mxu0 0
  %362 = vmatpush1.bf16.msra.mxu0 %v283
  %363 = vmatprep.subr.bf16.mxu0 0
  %364 = vmatpush1.bf16.msra.mxu0 %v284
  %365 = vmatprep.mubr.bf16.mxu0 %v126
  %366 = vmatmul.mubr.bf16.gmra.mrb[0].mxu0 %v125
  %v367 = vpop.f32.mrb[0].mxu0
  %v368 = vadd.f32 0.0, %v367
  %v369 = vpop.f32.mrb[0].mxu0
  %v370 = vpop.f32.mrb[0].mxu0
  %v371 = vadd.f32 0.0, %v370
  %v372 = vpop.f32.mrb[0].mxu0
  %373 = vmatprep.mubr.bf16.mxu0 %v130
  %374 = vmatmul.mubr.bf16.gmra.mrb[0].mxu0 %v129
  %v375 = vpop.f32.mrb[0].mxu0
  %v376 = vadd.f32 0.0, %v375
  %v377 = vpop.f32.mrb[0].mxu0
  %v378 = vpop.f32.mrb[0].mxu0
  %v379 = vadd.f32 0.0, %v378
  %v380 = vpop.f32.mrb[0].mxu0
  %381 = vdwg.mxu0
  %382 = vmatprep.subr.bf16.mxu0 0
  %383 = vmatpush1.bf16.msra.mxu0 %v285
  %384 = vmatprep.subr.bf16.mxu0 0
  %385 = vmatpush1.bf16.msra.mxu0 %v286
  %386 = vmatprep.subr.bf16.mxu0 0
  %387 = vmatpush1.bf16.msra.mxu0 %v287
  %388 = vmatprep.subr.bf16.mxu0 0
  %389 = vmatpush1.bf16.msra.mxu0 %v288
  %390 = vmatprep.subr.bf16.mxu0 0
  %391 = vmatpush1.bf16.msra.mxu0 %v289
  %392 = vmatprep.subr.bf16.mxu0 0
  %393 = vmatpush1.bf16.msra.mxu0 %v290
  %394 = vmatprep.subr.bf16.mxu0 0
  %395 = vmatpush1.bf16.msra.mxu0 %v291
  %396 = vmatprep.subr.bf16.mxu0 0
  %397 = vmatpush1.bf16.msra.mxu0 %v292
  %398 = vmatprep.subr.bf16.mxu0 0
  %399 = vmatpush1.bf16.msra.mxu0 %v293
  %400 = vmatprep.subr.bf16.mxu0 0
  %401 = vmatpush1.bf16.msra.mxu0 %v294
  %402 = vmatprep.subr.bf16.mxu0 0
  %403 = vmatpush1.bf16.msra.mxu0 %v295
  %404 = vmatprep.subr.bf16.mxu0 0
  %405 = vmatpush1.bf16.msra.mxu0 %v296
  %406 = vmatprep.subr.bf16.mxu0 0
  %407 = vmatpush1.bf16.msra.mxu0 %v297
  %408 = vmatprep.subr.bf16.mxu0 0
  %409 = vmatpush1.bf16.msra.mxu0 %v298
  %410 = vmatprep.subr.bf16.mxu0 0
  %411 = vmatpush1.bf16.msra.mxu0 %v299
  %412 = vmatprep.subr.bf16.mxu0 0
  %413 = vmatpush1.bf16.msra.mxu0 %v300
  %414 = vmatprep.mubr.bf16.mxu0 %v128
  %415 = vmatmul.mubr.bf16.gmra.mrb[0].mxu0 %v127
  %v416 = vpop.f32.mrb[0].mxu0
  %v417 = vadd.f32 %v368, %v416
  %v418 = vpop.f32.mrb[0].mxu0
  %v419 = vpop.f32.mrb[0].mxu0
  %v420 = vadd.f32 %v371, %v419
  %v421 = vpop.f32.mrb[0].mxu0
  %422 = vmatprep.mubr.bf16.mxu0 %v132
  %423 = vmatmul.mubr.bf16.gmra.mrb[0].mxu0 %v131
  %v424 = vpop.f32.mrb[0].mxu0
  %v425 = vadd.f32 %v376, %v424
  %v426 = vpop.f32.mrb[0].mxu0
  %v427 = vpop.f32.mrb[0].mxu0
  %v428 = vadd.f32 %v379, %v427
  %v429 = vpop.f32.mrb[0].mxu0
  %430 = vdwg.mxu0
  %v431 = vadd.f32 %v25, %v417
  %v432 = vadd.f32 %v26, %v420
  %v433 = vadd.f32 %v27, %v425
  %v434 = vadd.f32 %v28, %v428
  %435 = vst [vmem:[#allocation2] sm:$0xff] %v431
  %436 = vst [vmem:[#allocation2 + $0x8] sm:$0xff] %v432
  %437 = vst [vmem:[#allocation2 + $0x10] sm:$0xff] %v433
  %438 = vst [vmem:[#allocation2 + $0x18] sm:$0xff] %v434
  // Predicated region
  $region18: #{_lambda_.11} parent=0 // pred_check
    %p439 = pneg %p17
  $region19: #{_lambda_.11} parent=0 // pred_check_branch
    %441 = sbr.rel (%p439) target = $region21
  $region20: #{_lambda_.11} parent=0 // pred_region
    %v442 = vld [vmem:[#allocation2] sm:$0xff]
    %v443 = vld [vmem:[#allocation2 + $0x8] sm:$0xff]
    %v444 = vld [vmem:[#allocation2 + $0x10] sm:$0xff]
    %v445 = vld [vmem:[#allocation2 + $0x18] sm:$0xff]
    %v446 = vld [vmem:[%s2] sm:$0x1]
    %v448 = vlaneseq
    %v449 = vshrl.u32 %v448, 7
    %v450 = vsub.s32 0, %v449
    %v451 = vrot.slane %v446, %v450
    %v453 = vadd.f32 %v442, %v451
    %v454 = vadd.f32 %v443, %v451
    %v455 = vadd.f32 %v444, %v451
    %v456 = vadd.f32 %v445, %v451
    %v457 = vpack.c.bf16 %v454, %v453
    %v458 = vpack.c.bf16 %v456, %v455
    %v461 = vunpack.c.l.b16 %v457
    %v462 = vunpack.c.h.b16 %v457
    %v463 = vunpack.c.l.b16 %v458
    %v464 = vunpack.c.h.b16 %v458
    %v465 = vpack.c.b16 %v461, %v461
    %v466 = vpack.c.b16 %v462, %v462
    %v467 = vpack.c.b16 %v463, %v463
    %v468 = vpack.c.b16 %v464, %v464
    %473 = vst [vmem:[%s3] sm:$0xf] %v465
    %474 = vst [vmem:[%s3 + $0x4] sm:$0xf] %v466
    %475 = vst [vmem:[%s3 + $0x8] sm:$0xf] %v467
    %476 = vst [vmem:[%s3 + $0xc] sm:$0xf] %v468
    %v477 = vadd.f32 %v453, %v454
    %v478 = vadd.f32 %v477, %v455
    %v479 = vadd.f32 %v478, %v456
    %v480 = vrot.slane %v479, 4
    %v481 = vadd.f32 %v479, %v480
    %v482 = vrot.slane %v481, 2
    %v483 = vadd.f32 %v481, %v482
    %v484 = vrot.slane %v483, 1
    %v485 = vadd.f32 %v483, %v484
    %v486 = vmul.f32 %v453, %v453
    %v487 = vmul.f32 %v454, %v454
    %v488 = vmul.f32 %v455, %v455
    %v489 = vmul.f32 %v456, %v456
    %v490 = vadd.f32 %v486, %v487
    %v491 = vadd.f32 %v490, %v488
    %v492 = vadd.f32 %v491, %v489
    %v493 = vrot.slane %v492, 4
    %v494 = vadd.f32 %v492, %v493
    %v495 = vrot.slane %v494, 2
    %v496 = vadd.f32 %v494, %v495
    %v497 = vrot.slane %v496, 1
    %v498 = vadd.f32 %v496, %v497
    %v499 = vlaneseq
    %v500 = vshrl.u32 %v499, 7
    %vm501 = vcmp.eq.s32.totalorder %v500, 0
    %v502 = vsel %vm501, %v485, 0.0
    %vm503 = vcmp.eq.s32.totalorder %v500, 1
    %v504 = vsel %vm503, %v498, 0.0
    %v505 = vadd.f32 %v502, %v504
    %506 = vst [vmem:[%s4] sm:$0xff] %v505
  $region21: #{_lambda_.11} parent=0 // pred_fallthru
    _
  // Predicated region
  $region22: #{_lambda_.11} parent=0 // pred_check
    _
  $region23: #{_lambda_.11} parent=0 // pred_check_branch
    %508 = sbr.rel (0) target = $region25
  $region24: #{_lambda_.11} parent=0 // pred_region
    _
  $region25: #{_lambda_.11} parent=0 // pred_fallthru
    _
  // Predicated region
  $region26: #{_lambda_.11} parent=0 // pred_check
    _
  $region27: #{_lambda_.11} parent=0 // pred_check_branch
    %510 = sbr.rel (0) target = $region29
  $region28: #{_lambda_.11} parent=0 // pred_region
    _
  $region29: #{_lambda_.11} parent=0 // pred_fallthru
    _
  // Predicated region
  $region30: #{_lambda_.11} parent=0 // pred_check
    _
  $region31: #{_lambda_.11} parent=0 // pred_check_branch
    %512 = sbr.rel (0) target = $region33
  $region32: #{_lambda_.11} parent=0 // pred_region
    _
  $region33: #{_lambda_.11} parent=0 // pred_fallthru
    _
  // Predicated region
  $region34: #{_lambda_.11} parent=0 // pred_check
    _
  $region35: #{_lambda_.11} parent=0 // pred_check_branch
    %514 = sbr.rel (0) target = $region37
  $region36: #{_lambda_.11} parent=0 // pred_region
    _
  $region37: #{_lambda_.11} parent=0 // pred_fallthru
    _

// kernel: _lambda_.14
$region0: #{_lambda_.14}
  #allocation0 [shape = 'u32[]', space=smem, size = 0x4, offset = 0x4, fixed_abs, tag = 'smem constant byte address 0x4 - core index']
  #allocation1 [shape = 'u32[144,128]{1,0:T(1,128)}', space=vmem, size = 0x12000, scoped, tag = 'internal scratch']
  %s0 = inlined_call_operand.vmem [shape: bf16[24,128], index: 0, kind: input, shape index: {}]
  %s1 = inlined_call_operand.vmem [shape: f32[1,128], index: 1, kind: input, shape index: {}]
  %s2 = inlined_call_operand.vmem [shape: f32[1,128], index: 2, kind: input, shape index: {}]
  %s3 = inlined_call_operand.vmem [shape: bf16[24,128], index: 3, kind: output, shape index: {}]
  %s4 = sld [smem:[#allocation0]]
  $region22: #{_lambda_.14} parent=0
    _
  %s6 = ssub.s32 1, %s4
  %s7 = scalar_select 0, %s6, %s4
  // Predicated region
  $region2: #{_lambda_.14} parent=0 // pred_check
    _
  $region3: #{_lambda_.14} parent=0 // pred_check_branch
    %9 = sbr.rel (0) target = $region5
  $region4: #{_lambda_.14} parent=0 // pred_region
    _
  $region5: #{_lambda_.14} parent=0 // pred_fallthru
    _
  // Predicated region
  $region6: #{_lambda_.14} parent=0 // pred_check
    _
  $region7: #{_lambda_.14} parent=0 // pred_check_branch
    %11 = sbr.rel (0) target = $region9
  $region8: #{_lambda_.14} parent=0 // pred_region
    _
  $region9: #{_lambda_.14} parent=0 // pred_fallthru
    _
  // Predicated region
  $region10: #{_lambda_.14} parent=0 // pred_check
    _
  $region11: #{_lambda_.14} parent=0 // pred_check_branch
    %13 = sbr.rel (0) target = $region13
  $region12: #{_lambda_.14} parent=0 // pred_region
    _
  $region13: #{_lambda_.14} parent=0 // pred_fallthru
    _
  %v14 = vld [vmem:[%s0] sm:$0xf]
  %v15 = vld [vmem:[%s0 + $0x4] sm:$0xf]
  %v16 = vld [vmem:[%s0 + $0x8] sm:$0xf]
  %v17 = vunpack.c.l.bf16 %v14
  %v18 = vunpack.c.l.bf16 %v15
  %v19 = vunpack.c.l.bf16 %v16
  %v20 = vld [vmem:[%s1] sm:$0x1]
  %v22 = vlaneseq
  %v23 = vshrl.u32 %v22, 7
  %v24 = vsub.s32 0, %v23
  %v25 = vrot.slane %v20, %v24
  %v27 = vmul.f32 %v17, %v25
  %v28 = vmul.f32 %v18, %v25
  %v29 = vmul.f32 %v19, %v25
  %v30 = vld [vmem:[%s2] sm:$0x1]
  %v32 = vlaneseq
  %v33 = vshrl.u32 %v32, 7
  %v34 = vsub.s32 0, %v33
  %v35 = vrot.slane %v30, %v34
  %v37 = vadd.f32 %v27, %v35
  %v38 = vadd.f32 %v28, %v35
  %v39 = vadd.f32 %v29, %v35
  %vm40 = vcmp.ge.f32.partialorder %v37, 0.0
  %vm41 = vcmp.ge.f32.partialorder %v38, 0.0
  %vm42 = vcmp.ge.f32.partialorder %v39, 0.0
  %v43 = vmul.f32 %v37, 0.2
  %v44 = vmul.f32 %v38, 0.2
  %v45 = vmul.f32 %v39, 0.2
  %v46 = vsel %vm40, %v37, %v43
  %v47 = vsel %vm41, %v38, %v44
  %v48 = vsel %vm42, %v39, %v45
  %v49 = vpack.c.bf16 %v47, %v46
  %v50 = vpack.c.bf16 %v48, %v48
  %v53 = vunpack.c.l.b16 %v49
  %v54 = vunpack.c.h.b16 %v49
  %v55 = vunpack.c.l.b16 %v50
  %v56 = vpack.c.b16 %v53, %v53
  %v57 = vpack.c.b16 %v54, %v54
  %v58 = vpack.c.b16 %v55, %v55
  %62 = vst [vmem:[%s3] sm:$0xf] %v56
  %63 = vst [vmem:[%s3 + $0x4] sm:$0xf] %v57
  %64 = vst [vmem:[%s3 + $0x8] sm:$0xf] %v58
  // Predicated region
  $region14: #{_lambda_.14} parent=0 // pred_check
    _
  $region15: #{_lambda_.14} parent=0 // pred_check_branch
    %66 = sbr.rel (0) target = $region17
  $region16: #{_lambda_.14} parent=0 // pred_region
    _
  $region17: #{_lambda_.14} parent=0 // pred_fallthru
    _
  // Predicated region
  $region18: #{_lambda_.14} parent=0 // pred_check
    _
  $region19: #{_lambda_.14} parent=0 // pred_check_branch
    %68 = sbr.rel (0) target = $region21
  $region20: #{_lambda_.14} parent=0 // pred_region
    _
  $region21: #{_lambda_.14} parent=0 // pred_fallthru
    _

// kernel: _lambda_.13
$region0: #{_lambda_.13}
  #allocation0 [shape = 'u32[]', space=smem, size = 0x4, offset = 0x4, fixed_abs, tag = 'smem constant byte address 0x4 - core index']
  #allocation1 [shape = 'u32[144,128]{1,0:T(1,128)}', space=vmem, size = 0x12000, scoped, tag = 'internal scratch']
  #allocation2 [shape = 'f32[24,128]{1,0:T(8,128)}', space=vmem, size = 0x3000, scoped, tag = 'scratch operand']
  %s0 = inlined_call_operand.vmem [shape: bf16[24,1024], index: 0, kind: input, shape index: {}]
  %s1 = inlined_call_operand.vmem [shape: bf16[1024,128], index: 1, kind: input, shape index: {}]
  %s2 = inlined_call_operand.vmem [shape: f32[1,128], index: 2, kind: input, shape index: {}]
  %s3 = inlined_call_operand.vmem [shape: bf16[24,128], index: 3, kind: output, shape index: {0}]
  %s4 = inlined_call_operand.vmem [shape: f32[8,128], index: 4, kind: output, shape index: {1}]
  %5 = xla_tuple %s3, %s4
  %s6 = sld [smem:[#allocation0]]
  $region84: #{_lambda_.13} parent=0
    _
  %s8 = ssub.s32 1, %s6
  %s9 = scalar_select 0, %s8, %s6
  $region1: #{_lambda_.13} parent=0
    #allocation3 [shape = 'u8[49152]{0}', space=vmem, size = 0xc000, scoped, tag = 'input window, operand 0']
    loop: start=0, step=1, limit=4
    $region2: #{_lambda_.13} parent=1 // loop_pre_header
      _
    $region3: #{_lambda_.13} parent=1 // loop_header
      %s11 = sphi 0, %s15
      %p12 = scmp.ge.s32.totalorder %s11, 4
      %s18 = sphi 0, %s30
      %s19 = sphi 0, %s26
      %s20 = sphi 0, %s18
      %s21 = sphi 0, %s19
      %s22 = sphi 0, %s20
      %s23 = sphi 0, %s21
      %s35 = sphi 0, %s37
      %s38 = sphi 0, %s35
      %s39 = sphi 0, %s38
      %s55 = sphi 0, %s39
      %s61 = sphi 0, %s63
      %s64 = sphi 0, %s61
      %s65 = sphi 0, %s64
      %s81 = sphi 0, %s65
      %s85 = sphi 0, %s85
      %s87 = sphi 0, %s85
      %s88 = sphi 0, %s87
      %s102 = sphi 0, %s88
      %s108 = sphi 0, %s110
      %s111 = sphi 0, %s108
      %s112 = sphi 0, %s111
      %s128 = sphi 0, %s112
      %s134 = sphi 0, %s136
      %s137 = sphi 0, %s134
      %s138 = sphi 0, %s137
      %s154 = sphi 0, %s138
    $region4: #{_lambda_.13} parent=1 // loop_header_branch
      %14 = sbr.rel (%p12) target = $region8
    $region5: #{_lambda_.13} parent=1 // loop_body
      %s16 = ssub.s32 %s11, 1
      %s17 = ssub.s32 %s11, 2
      %s24 = sadd.s32 1, %s19
      %p25 = scmp.ge.s32.totalorder %s24, 2
      %s26 = scalar_select %p25, 0, %s24
      %s27 = sadd.s32 1, %s18
      %s28 = scalar_select %p25, %s27, %s18
      %p29 = scmp.ge.s32.totalorder %s28, 1
      %s30 = scalar_select %p29, 0, %s28
      %s31 = ssub.s32 %s18, %s30
      %s32 = ssub.s32 %s19, %s26
      %s33 = sor.u32 %s31, %s32
      %p34 = scmp.eq.s32.totalorder %s33, 0
      %s36 = sadd.s32 %s35, 1
      %s37 = scalar_select %p34, %s35, %s36
      %p40 = pneg %p34
      %p41 = scmp.eq.s32.totalorder %s11, 1
      %p42 = por %p40, %p41
      %p43 = scmp.ne.s32.totalorder %s35, %s38
      %p44 = scmp.eq.s32.totalorder %s11, 0
      %p45 = por %p43, %p44
      %p46 = scmp.ne.s32.totalorder %s35, %s38
      %p47 = scmp.eq.s32.totalorder %s16, 1
      %p48 = por %p46, %p47
      %p49 = scmp.ne.s32.totalorder %s38, %s39
      %p50 = scmp.eq.s32.totalorder %s16, 0
      %p51 = por %p49, %p50
      %p52 = scmp.ne.s32.totalorder %s38, %s39
      %p53 = scmp.eq.s32.totalorder %s17, 1
      %p54 = por %p52, %p53
      %p56 = scmp.ne.s32.totalorder %s39, %s55
      %p57 = scmp.eq.s32.totalorder %s17, 0
      %p58 = por %p56, %p57
      %s59 = ssub.s32 %s19, %s26
      %p60 = scmp.eq.s32.totalorder %s59, 0
      %s62 = sadd.s32 %s61, 1
      %s63 = scalar_select %p60, %s61, %s62
      %p66 = pneg %p60
      %p67 = scmp.eq.s32.totalorder %s11, 1
      %p68 = por %p66, %p67
      %p69 = scmp.ne.s32.totalorder %s61, %s64
      %p70 = scmp.eq.s32.totalorder %s11, 0
      %p71 = por %p69, %p70
      %p72 = scmp.ne.s32.totalorder %s61, %s64
      %p73 = scmp.eq.s32.totalorder %s16, 1
      %p74 = por %p72, %p73
      %p75 = scmp.ne.s32.totalorder %s64, %s65
      %p76 = scmp.eq.s32.totalorder %s16, 0
      %p77 = por %p75, %p76
      %p78 = scmp.ne.s32.totalorder %s64, %s65
      %p79 = scmp.eq.s32.totalorder %s17, 1
      %p80 = por %p78, %p79
      %p82 = scmp.ne.s32.totalorder %s65, %s81
      %p83 = scmp.eq.s32.totalorder %s17, 0
      %p84 = por %p82, %p83
      %s86 = sadd.s32 %s85, 1
      %p89 = scmp.eq.s32.totalorder %s11, 1
      %p90 = scmp.ne.s32.totalorder %s85, %s87
      %p91 = scmp.eq.s32.totalorder %s11, 0
      %p92 = por %p90, %p91
      %p93 = scmp.ne.s32.totalorder %s85, %s87
      %p94 = scmp.eq.s32.totalorder %s16, 1
      %p95 = por %p93, %p94
      %p96 = scmp.ne.s32.totalorder %s87, %s88
      %p97 = scmp.eq.s32.totalorder %s16, 0
      %p98 = por %p96, %p97
      %p99 = scmp.ne.s32.totalorder %s87, %s88
      %p100 = scmp.eq.s32.totalorder %s17, 1
      %p101 = por %p99, %p100
      %p103 = scmp.ne.s32.totalorder %s88, %s102
      %p104 = scmp.eq.s32.totalorder %s17, 0
      %p105 = por %p103, %p104
      %s106 = ssub.s32 %s18, %s30
      %p107 = scmp.eq.s32.totalorder %s106, 0
      %s109 = sadd.s32 %s108, 1
      %s110 = scalar_select %p107, %s108, %s109
      %p113 = pneg %p107
      %p114 = scmp.eq.s32.totalorder %s11, 1
      %p115 = por %p113, %p114
      %p116 = scmp.ne.s32.totalorder %s108, %s111
      %p117 = scmp.eq.s32.totalorder %s11, 0
      %p118 = por %p116, %p117
      %p119 = scmp.ne.s32.totalorder %s108, %s111
      %p120 = scmp.eq.s32.totalorder %s16, 1
      %p121 = por %p119, %p120
      %p122 = scmp.ne.s32.totalorder %s111, %s112
      %p123 = scmp.eq.s32.totalorder %s16, 0
      %p124 = por %p122, %p123
      %p125 = scmp.ne.s32.totalorder %s111, %s112
      %p126 = scmp.eq.s32.totalorder %s17, 1
      %p127 = por %p125, %p126
      %p129 = scmp.ne.s32.totalorder %s112, %s128
      %p130 = scmp.eq.s32.totalorder %s17, 0
      %p131 = por %p129, %p130
      %s132 = ssub.s32 %s18, %s30
      %p133 = scmp.eq.s32.totalorder %s132, 0
      %s135 = sadd.s32 %s134, 1
      %s136 = scalar_select %p133, %s134, %s135
      %p139 = pneg %p133
      %p140 = scmp.eq.s32.totalorder %s11, 1
      %p141 = por %p139, %p140
      %p142 = scmp.ne.s32.totalorder %s134, %s137
      %p143 = scmp.eq.s32.totalorder %s11, 0
      %p144 = por %p142, %p143
      %p145 = scmp.ne.s32.totalorder %s134, %s137
      %p146 = scmp.eq.s32.totalorder %s16, 1
      %p147 = por %p145, %p146
      %p148 = scmp.ne.s32.totalorder %s137, %s138
      %p149 = scmp.eq.s32.totalorder %s16, 0
      %p150 = por %p148, %p149
      %p151 = scmp.ne.s32.totalorder %s137, %s138
      %p152 = scmp.eq.s32.totalorder %s17, 1
      %p153 = por %p151, %p152
      %p155 = scmp.ne.s32.totalorder %s138, %s154
      %p156 = scmp.eq.s32.totalorder %s17, 0
      %p157 = por %p155, %p156
      %p158 = scmp.le.s32.totalorder 1, %s11
      %p159 = scmp.lt.s32.totalorder %s11, 3
      %p160 = pnand %p158, %p159
      %p161 = pneg %p160
      // Predicated region
      $region9: #{_lambda_.13} parent=5 // pred_check
        _
      $region10: #{_lambda_.13} parent=5 // pred_check_branch
        %163 = sbr.rel (%p160) target = $region12
      $region11: #{_lambda_.13} parent=5 // pred_region
        %s164 = ssub.s32 %s11, 1
        // Predicated region
        $region13: #{_lambda_.13} parent=11 // pred_check
          %p165 = pneg %p98
        $region14: #{_lambda_.13} parent=11 // pred_check_branch
          %167 = sbr.rel (%p165) target = $region16
        $region15: #{_lambda_.13} parent=11 // pred_region
          _
        $region16: #{_lambda_.13} parent=11 // pred_fallthru
          _
      $region12: #{_lambda_.13} parent=5 // pred_fallthru
        _
      %p168 = scmp.lt.s32.totalorder %s11, 2
      // Predicated region
      $region17: #{_lambda_.13} parent=5 // pred_check
        %p169 = pneg %p168
      $region18: #{_lambda_.13} parent=5 // pred_check_branch
        %171 = sbr.rel (%p169) target = $region20
      $region19: #{_lambda_.13} parent=5 // pred_region
        // Predicated region
        $region21: #{_lambda_.13} parent=19 // pred_check
          %p172 = pneg %p45
        $region22: #{_lambda_.13} parent=19 // pred_check_branch
          %174 = sbr.rel (%p172) target = $region24
        $region23: #{_lambda_.13} parent=19 // pred_region
          %s175 = sand.u32 %s35, 1
          %s176 = sand.u32 %s35, 1
          %s177 = smul.addr %s176, 48
          %s178 = scalar_lea.vmem [#allocation3], %s177
          %s179 = smul.u32 3, %s18
          %s180 = smul.u32 4, %s19
          %s181 = smul.addr %s179, 8
          %s182 = sadd.s32 %s180, %s181
          %s183 = smul.addr %s182, 4
          %s184 = scalar_lea.vmem %s0, %s183
          // Predicated region
          $region25: #{_lambda_.13} parent=23 // pred_check
            _
          $region26: #{_lambda_.13} parent=23 // pred_check_branch
            %186 = sbr.rel (0) target = $region28
          $region27: #{_lambda_.13} parent=23 // pred_region
            // Predicated region
            $region29: #{_lambda_.13} parent=27 // pred_check
              _
            $region30: #{_lambda_.13} parent=27 // pred_check_branch
              %188 = sbr.rel (0) target = $region32
            $region31: #{_lambda_.13} parent=27 // pred_region
              loop: start=0, step=1, limit=1
              $region33: #{_lambda_.13} parent=31 // loop_pre_header
                _
              $region34: #{_lambda_.13} parent=31 // loop_header
                %s190 = sphi 0, %s194
                %p191 = scmp.ge.s32.totalorder %s190, 1
                %s195 = sphi %s184, %s184
                %s196 = sphi %s178, %s178
              $region35: #{_lambda_.13} parent=31 // loop_header_branch
                %193 = sbr.rel (%p191) target = $region39
              $region36: #{_lambda_.13} parent=31 // loop_body
                %v197 = vld [vmem:[%s195] sm:$0xff]
                %198 = vst [vmem:[%s196] sm:$0xff] %v197
                %v199 = vld [vmem:[%s195 + $0x8] sm:$0xff]
                %200 = vst [vmem:[%s196 + $0x8] sm:$0xff] %v199
                %v201 = vld [vmem:[%s195 + $0x20] sm:$0xff]
                %202 = vst [vmem:[%s196 + $0x10] sm:$0xff] %v201
                %v203 = vld [vmem:[%s195 + $0x28] sm:$0xff]
                %204 = vst [vmem:[%s196 + $0x18] sm:$0xff] %v203
                %v205 = vld [vmem:[%s195 + $0x40] sm:$0xff]
                %206 = vst [vmem:[%s196 + $0x20] sm:$0xff] %v205
                %v207 = vld [vmem:[%s195 + $0x48] sm:$0xff]
                %208 = vst [vmem:[%s196 + $0x28] sm:$0xff] %v207
              $region37: #{_lambda_.13} parent=31 // loop_footer
                %s194 = sadd.s32 1, %s190
              $region38: #{_lambda_.13} parent=31 // loop_footer_branch
                %189 = sbr.rel target = $region34
              $region39: #{_lambda_.13} parent=31 // loop_exit
                _
            $region32: #{_lambda_.13} parent=27 // pred_fallthru
              _
            // Predicated region
            $region40: #{_lambda_.13} parent=27 // pred_check
              _
            $region41: #{_lambda_.13} parent=27 // pred_check_branch
              %210 = sbr.rel target = $region43
            $region42: #{_lambda_.13} parent=27 // pred_region
              _
            $region43: #{_lambda_.13} parent=27 // pred_fallthru
              _
          $region28: #{_lambda_.13} parent=23 // pred_fallthru
            _
          %211 = vnop
        $region24: #{_lambda_.13} parent=19 // pred_fallthru
          _
        // Predicated region
        $region44: #{_lambda_.13} parent=19 // pred_check
          %p212 = pneg %p71
        $region45: #{_lambda_.13} parent=19 // pred_check_branch
          %214 = sbr.rel (%p212) target = $region47
        $region46: #{_lambda_.13} parent=19 // pred_region
          %s215 = smul.u32 64, %s19
          %p216 = scmp.lt.s32.totalorder %s215, 127
          %s217 = scalar_select %p216, %s215, 127
          %s218 = smul.addr %s217, 4
          %s219 = scalar_lea.vmem %s1, %s218
          %s220 = smul.u32 64, %s19
        $region47: #{_lambda_.13} parent=19 // pred_fallthru
          _
      $region20: #{_lambda_.13} parent=5 // pred_fallthru
        _
      %p221 = scmp.le.s32.totalorder 1, %s11
      %p222 = scmp.lt.s32.totalorder %s11, 3
      %p223 = pnand %p221, %p222
      %p224 = pneg %p223
      // Predicated region
      $region48: #{_lambda_.13} parent=5 // pred_check
        _
      $region49: #{_lambda_.13} parent=5 // pred_check_branch
        %226 = sbr.rel (%p223) target = $region51
      $region50: #{_lambda_.13} parent=5 // pred_region
        %s227 = ssub.s32 %s11, 1
        %s228 = sand.u32 %s38, 1
        %s229 = sand.u32 %s38, 1
        %s230 = smul.addr %s229, 48
        %s231 = scalar_lea.vmem [#allocation3], %s230
        // Predicated region
        $region52: #{_lambda_.13} parent=50 // pred_check
          %p232 = pneg %p51
        $region53: #{_lambda_.13} parent=50 // pred_check_branch
          %234 = sbr.rel (%p232) target = $region55
        $region54: #{_lambda_.13} parent=50 // pred_region
          _
        $region55: #{_lambda_.13} parent=50 // pred_fallthru
          _
        %s235 = sand.u32 %s38, 1
        %s236 = sand.u32 %s38, 1
        %s237 = smul.addr %s236, 48
        %s238 = scalar_lea.vmem [#allocation3], %s237
        %p239 = pneg %p51
        %p240 = pneg %p48
        %s241 = smul.u32 64, %s21
        %p242 = scmp.lt.s32.totalorder %s241, 127
        %s243 = scalar_select %p242, %s241, 127
        %s244 = smul.addr %s243, 4
        %s245 = scalar_lea.vmem %s1, %s244
        %p246 = pneg %p77
        %p247 = pneg %p74
        %p248 = pneg %p98
        %p249 = pneg %p95
        %p250 = pneg %p124
        %p251 = pneg %p121
        %s252 = smul.u32 3, %s20
        %p253 = scmp.lt.s32.totalorder %s252, 2
        %s254 = scalar_select %p253, %s252, 2
        %s255 = smul.addr %s254, 4
        %s256 = scalar_lea.vmem %s3, %s255
        %p257 = pneg %p150
        %p258 = pneg %p147
        %p259 = scmp.lt.s32.totalorder %s20, 0
        %s260 = scalar_select %p259, %s20, 0
        %s261 = smul.addr %s260, 8
        %s262 = scalar_lea.vmem %s4, %s261
        %s263 = smul.u32 3, %s20
        %s264 = smul.u32 4, %s21
        %s265 = smul.u32 64, %s21
        %p266 = scmp.lt.s32.totalorder %s265, 127
        %s267 = scalar_select %p266, %s265, 127
        %s268 = smul.addr %s267, 4
        %s269 = scalar_lea.vmem %s1, %s268
        %s270 = smul.u32 64, %s21
        %s271 = smul.u32 3, %s20
        %p272 = scmp.lt.s32.totalorder %s271, 2
        %s273 = scalar_select %p272, %s271, 2
        %s274 = smul.addr %s273, 4
        %s275 = scalar_lea.vmem %s3, %s274
        %s276 = smul.u32 3, %s20
        %p277 = scmp.lt.s32.totalorder %s20, 0
        %s278 = scalar_select %p277, %s20, 0
        %s279 = smul.addr %s278, 8
        %s280 = scalar_lea.vmem %s4, %s279
        %p282 = scmp.eq.s32.totalorder %s21, 0
        // Predicated region
        $region56: #{_lambda_.13} parent=50 // pred_check
          %p283 = pneg %p282
        $region57: #{_lambda_.13} parent=50 // pred_check_branch
          %285 = sbr.rel (%p283) target = $region59
        $region58: #{_lambda_.13} parent=50 // pred_region
          %286 = vst [vmem:[#allocation2] sm:$0xff] 0.0
          %287 = vst [vmem:[#allocation2 + $0x8] sm:$0xff] 0.0
          %288 = vst [vmem:[#allocation2 + $0x10] sm:$0xff] 0.0
        $region59: #{_lambda_.13} parent=50 // pred_fallthru
          _
        %v289 = vld [vmem:[#allocation2] sm:$0xff]
        %v290 = vld [vmem:[#allocation2 + $0x8] sm:$0xff]
        %v291 = vld [vmem:[#allocation2 + $0x10] sm:$0xff]
        %v292 = vld [vmem:[%s231] sm:$0xff]
        %v293 = vld [vmem:[%s231 + $0x8] sm:$0xff]
        %v294 = vld [vmem:[%s231 + $0x10] sm:$0xff]
        %v295 = vld [vmem:[%s231 + $0x18] sm:$0xff]
        %v296 = vld [vmem:[%s231 + $0x20] sm:$0xff]
        %v297 = vld [vmem:[%s231 + $0x28] sm:$0xff]
        %v298 = vld [vmem:[%s269] sm:$0xf]
        %v299 = vld [vmem:[%s269 + $0x4] sm:$0xf]
        %v300 = vld [vmem:[%s269 + $0x8] sm:$0xf]
        %v301 = vld [vmem:[%s269 + $0xc] sm:$0xf]
        %v302 = vld [vmem:[%s269 + $0x10] sm:$0xf]
        %v303 = vld [vmem:[%s269 + $0x14] sm:$0xf]
        %v304 = vld [vmem:[%s269 + $0x18] sm:$0xf]
        %v305 = vld [vmem:[%s269 + $0x1c] sm:$0xf]
        %v306 = vld [vmem:[%s269 + $0x20] sm:$0xf]
        %v307 = vld [vmem:[%s269 + $0x24] sm:$0xf]
        %v308 = vld [vmem:[%s269 + $0x28] sm:$0xf]
        %v309 = vld [vmem:[%s269 + $0x2c] sm:$0xf]
        %v310 = vld [vmem:[%s269 + $0x30] sm:$0xf]
        %v311 = vld [vmem:[%s269 + $0x34] sm:$0xf]
        %v312 = vld [vmem:[%s269 + $0x38] sm:$0xf]
        %v313 = vld [vmem:[%s269 + $0x3c] sm:$0xf]
        %v314 = vld [vmem:[%s269 + $0x40] sm:$0xf]
        %v315 = vld [vmem:[%s269 + $0x44] sm:$0xf]
        %v316 = vld [vmem:[%s269 + $0x48] sm:$0xf]
        %v317 = vld [vmem:[%s269 + $0x4c] sm:$0xf]
        %v318 = vld [vmem:[%s269 + $0x50] sm:$0xf]
        %v319 = vld [vmem:[%s269 + $0x54] sm:$0xf]
        %v320 = vld [vmem:[%s269 + $0x58] sm:$0xf]
        %v321 = vld [vmem:[%s269 + $0x5c] sm:$0xf]
        %v322 = vld [vmem:[%s269 + $0x60] sm:$0xf]
        %v323 = vld [vmem:[%s269 + $0x64] sm:$0xf]
        %v324 = vld [vmem:[%s269 + $0x68] sm:$0xf]
        %v325 = vld [vmem:[%s269 + $0x6c] sm:$0xf]
        %v326 = vld [vmem:[%s269 + $0x70] sm:$0xf]
        %v327 = vld [vmem:[%s269 + $0x74] sm:$0xf]
        %v328 = vld [vmem:[%s269 + $0x78] sm:$0xf]
        %v329 = vld [vmem:[%s269 + $0x7c] sm:$0xf]
        %v330 = vld [vmem:[%s269 + $0x80] sm:$0xf]
        %v331 = vld [vmem:[%s269 + $0x84] sm:$0xf]
        %v332 = vld [vmem:[%s269 + $0x88] sm:$0xf]
        %v333 = vld [vmem:[%s269 + $0x8c] sm:$0xf]
        %v334 = vld [vmem:[%s269 + $0x90] sm:$0xf]
        %v335 = vld [vmem:[%s269 + $0x94] sm:$0xf]
        %v336 = vld [vmem:[%s269 + $0x98] sm:$0xf]
        %v337 = vld [vmem:[%s269 + $0x9c] sm:$0xf]
        %v338 = vld [vmem:[%s269 + $0xa0] sm:$0xf]
        %v339 = vld [vmem:[%s269 + $0xa4] sm:$0xf]
        %v340 = vld [vmem:[%s269 + $0xa8] sm:$0xf]
        %v341 = vld [vmem:[%s269 + $0xac] sm:$0xf]
        %v342 = vld [vmem:[%s269 + $0xb0] sm:$0xf]
        %v343 = vld [vmem:[%s269 + $0xb4] sm:$0xf]
        %v344 = vld [vmem:[%s269 + $0xb8] sm:$0xf]
        %v345 = vld [vmem:[%s269 + $0xbc] sm:$0xf]
        %v346 = vld [vmem:[%s269 + $0xc0] sm:$0xf]
        %v347 = vld [vmem:[%s269 + $0xc4] sm:$0xf]
        %v348 = vld [vmem:[%s269 + $0xc8] sm:$0xf]
        %v349 = vld [vmem:[%s269 + $0xcc] sm:$0xf]
        %v350 = vld [vmem:[%s269 + $0xd0] sm:$0xf]
        %v351 = vld [vmem:[%s269 + $0xd4] sm:$0xf]
        %v352 = vld [vmem:[%s269 + $0xd8] sm:$0xf]
        %v353 = vld [vmem:[%s269 + $0xdc] sm:$0xf]
        %v354 = vld [vmem:[%s269 + $0xe0] sm:$0xf]
        %v355 = vld [vmem:[%s269 + $0xe4] sm:$0xf]
        %v356 = vld [vmem:[%s269 + $0xe8] sm:$0xf]
        %v357 = vld [vmem:[%s269 + $0xec] sm:$0xf]
        %v358 = vld [vmem:[%s269 + $0xf0] sm:$0xf]
        %v359 = vld [vmem:[%s269 + $0xf4] sm:$0xf]
        %v360 = vld [vmem:[%s269 + $0xf8] sm:$0xf]
        %v361 = vld [vmem:[%s269 + $0xfc] sm:$0xf]
        %v368 = vunpack.c.l.b16 %v292
        %v369 = vunpack.c.h.b16 %v292
        %v370 = vunpack.c.l.b16 %v293
        %v371 = vunpack.c.h.b16 %v293
        %v372 = vunpack.c.l.b16 %v294
        %v373 = vunpack.c.h.b16 %v294
        %v374 = vunpack.c.l.b16 %v295
        %v375 = vunpack.c.h.b16 %v295
        %v376 = vunpack.c.l.b16 %v296
        %v377 = vunpack.c.h.b16 %v296
        %v378 = vunpack.c.l.b16 %v297
        %v379 = vunpack.c.h.b16 %v297
        %v380 = vpack.c.b16 %v372, %v368
        %v381 = vpack.c.b16 %v373, %v369
        %v382 = vpack.c.b16 %v374, %v370
        %v383 = vpack.c.b16 %v375, %v371
        %v384 = vpack.c.b16 %v376, %v376
        %v385 = vpack.c.b16 %v377, %v377
        %v386 = vpack.c.b16 %v378, %v378
        %v387 = vpack.c.b16 %v379, %v379
        %v460 = vunpack.c.l.b16 %v298
        %v461 = vunpack.c.l.b16 %v299
        %v462 = vunpack.c.l.b16 %v300
        %v463 = vunpack.c.l.b16 %v301
        %v464 = vunpack.c.l.b16 %v302
        %v465 = vunpack.c.l.b16 %v303
        %v466 = vunpack.c.l.b16 %v304
        %v467 = vunpack.c.l.b16 %v305
        %v468 = vunpack.c.l.b16 %v306
        %v469 = vunpack.c.l.b16 %v307
        %v470 = vunpack.c.l.b16 %v308
        %v471 = vunpack.c.l.b16 %v309
        %v472 = vunpack.c.l.b16 %v310
        %v473 = vunpack.c.l.b16 %v311
        %v474 = vunpack.c.l.b16 %v312
        %v475 = vunpack.c.l.b16 %v313
        %v476 = vunpack.c.l.b16 %v314
        %v477 = vunpack.c.l.b16 %v315
        %v478 = vunpack.c.l.b16 %v316
        %v479 = vunpack.c.l.b16 %v317
        %v480 = vunpack.c.l.b16 %v318
        %v481 = vunpack.c.l.b16 %v319
        %v482 = vunpack.c.l.b16 %v320
        %v483 = vunpack.c.l.b16 %v321
        %v484 = vunpack.c.l.b16 %v322
        %v485 = vunpack.c.l.b16 %v323
        %v486 = vunpack.c.l.b16 %v324
        %v487 = vunpack.c.l.b16 %v325
        %v488 = vunpack.c.l.b16 %v326
        %v489 = vunpack.c.l.b16 %v327
        %v490 = vunpack.c.l.b16 %v328
        %v491 = vunpack.c.l.b16 %v329
        %v492 = vunpack.c.l.b16 %v330
        %v493 = vunpack.c.l.b16 %v331
        %v494 = vunpack.c.l.b16 %v332
        %v495 = vunpack.c.l.b16 %v333
        %v496 = vunpack.c.l.b16 %v334
        %v497 = vunpack.c.l.b16 %v335
        %v498 = vunpack.c.l.b16 %v336
        %v499 = vunpack.c.l.b16 %v337
        %v500 = vunpack.c.l.b16 %v338
        %v501 = vunpack.c.l.b16 %v339
        %v502 = vunpack.c.l.b16 %v340
        %v503 = vunpack.c.l.b16 %v341
        %v504 = vunpack.c.l.b16 %v342
        %v505 = vunpack.c.l.b16 %v343
        %v506 = vunpack.c.l.b16 %v344
        %v507 = vunpack.c.l.b16 %v345
        %v508 = vunpack.c.l.b16 %v346
        %v509 = vunpack.c.l.b16 %v347
        %v510 = vunpack.c.l.b16 %v348
        %v511 = vunpack.c.l.b16 %v349
        %v512 = vunpack.c.l.b16 %v350
        %v513 = vunpack.c.l.b16 %v351
        %v514 = vunpack.c.l.b16 %v352
        %v515 = vunpack.c.l.b16 %v353
        %v516 = vunpack.c.l.b16 %v354
        %v517 = vunpack.c.l.b16 %v355
        %v518 = vunpack.c.l.b16 %v356
        %v519 = vunpack.c.l.b16 %v357
        %v520 = vunpack.c.l.b16 %v358
        %v521 = vunpack.c.l.b16 %v359
        %v522 = vunpack.c.l.b16 %v360
        %v523 = vunpack.c.l.b16 %v361
        %v524 = vpack.c.b16 %v461, %v460
        %v525 = vpack.c.b16 %v463, %v462
        %v526 = vpack.c.b16 %v465, %v464
        %v527 = vpack.c.b16 %v467, %v466
        %v528 = vpack.c.b16 %v469, %v468
        %v529 = vpack.c.b16 %v471, %v470
        %v530 = vpack.c.b16 %v473, %v472
        %v531 = vpack.c.b16 %v475, %v474
        %v532 = vpack.c.b16 %v477, %v476
        %v533 = vpack.c.b16 %v479, %v478
        %v534 = vpack.c.b16 %v481, %v480
        %v535 = vpack.c.b16 %v483, %v482
        %v536 = vpack.c.b16 %v485, %v484
        %v537 = vpack.c.b16 %v487, %v486
        %v538 = vpack.c.b16 %v489, %v488
        %v539 = vpack.c.b16 %v491, %v490
        %v540 = vpack.c.b16 %v493, %v492
        %v541 = vpack.c.b16 %v495, %v494
        %v542 = vpack.c.b16 %v497, %v496
        %v543 = vpack.c.b16 %v499, %v498
        %v544 = vpack.c.b16 %v501, %v500
        %v545 = vpack.c.b16 %v503, %v502
        %v546 = vpack.c.b16 %v505, %v504
        %v547 = vpack.c.b16 %v507, %v506
        %v548 = vpack.c.b16 %v509, %v508
        %v549 = vpack.c.b16 %v511, %v510
        %v550 = vpack.c.b16 %v513, %v512
        %v551 = vpack.c.b16 %v515, %v514
        %v552 = vpack.c.b16 %v517, %v516
        %v553 = vpack.c.b16 %v519, %v518
        %v554 = vpack.c.b16 %v521, %v520
        %v555 = vpack.c.b16 %v523, %v522
        %588 = vmatprep.subr.bf16.mxu0 0
        %589 = vmatpush1.bf16.msra.mxu0 %v524
        %590 = vmatprep.subr.bf16.mxu0 0
        %591 = vmatpush1.bf16.msra.mxu0 %v525
        %592 = vmatprep.subr.bf16.mxu0 0
        %593 = vmatpush1.bf16.msra.mxu0 %v526
        %594 = vmatprep.subr.bf16.mxu0 0
        %595 = vmatpush1.bf16.msra.mxu0 %v527
        %596 = vmatprep.subr.bf16.mxu0 0
        %597 = vmatpush1.bf16.msra.mxu0 %v528
        %598 = vmatprep.subr.bf16.mxu0 0
        %599 = vmatpush1.bf16.msra.mxu0 %v529
        %600 = vmatprep.subr.bf16.mxu0 0
        %601 = vmatpush1.bf16.msra.mxu0 %v530
        %602 = vmatprep.subr.bf16.mxu0 0
        %603 = vmatpush1.bf16.msra.mxu0 %v531
        %604 = vmatprep.subr.bf16.mxu0 0
        %605 = vmatpush1.bf16.msra.mxu0 %v532
        %606 = vmatprep.subr.bf16.mxu0 0
        %607 = vmatpush1.bf16.msra.mxu0 %v533
        %608 = vmatprep.subr.bf16.mxu0 0
        %609 = vmatpush1.bf16.msra.mxu0 %v534
        %610 = vmatprep.subr.bf16.mxu0 0
        %611 = vmatpush1.bf16.msra.mxu0 %v535
        %612 = vmatprep.subr.bf16.mxu0 0
        %613 = vmatpush1.bf16.msra.mxu0 %v536
        %614 = vmatprep.subr.bf16.mxu0 0
        %615 = vmatpush1.bf16.msra.mxu0 %v537
        %616 = vmatprep.subr.bf16.mxu0 0
        %617 = vmatpush1.bf16.msra.mxu0 %v538
        %618 = vmatprep.subr.bf16.mxu0 0
        %619 = vmatpush1.bf16.msra.mxu0 %v539
        %620 = vmatprep.mubr.bf16.mxu0 %v381
        %621 = vmatmul.mubr.bf16.gmra.mrb[0].mxu0 %v380
        %v622 = vpop.f32.mrb[0].mxu0
        %v623 = vadd.f32 0.0, %v622
        %v624 = vpop.f32.mrb[0].mxu0
        %v625 = vpop.f32.mrb[0].mxu0
        %v626 = vadd.f32 0.0, %v625
        %v627 = vpop.f32.mrb[0].mxu0
        %628 = vmatprep.mubr.bf16.mxu0 %v385
        %629 = vmatmul.mubr.bf16.gmra.mrb[0].mxu0 %v384
        %v630 = vpop.f32.mrb[0].mxu0
        %v631 = vadd.f32 0.0, %v630
        %v632 = vpop.f32.mrb[0].mxu0
        %v633 = vpop.f32.mrb[0].mxu0
        %v634 = vpop.f32.mrb[0].mxu0
        %635 = vdwg.mxu0
        %636 = vmatprep.subr.bf16.mxu0 0
        %637 = vmatpush1.bf16.msra.mxu0 %v540
        %638 = vmatprep.subr.bf16.mxu0 0
        %639 = vmatpush1.bf16.msra.mxu0 %v541
        %640 = vmatprep.subr.bf16.mxu0 0
        %641 = vmatpush1.bf16.msra.mxu0 %v542
        %642 = vmatprep.subr.bf16.mxu0 0
        %643 = vmatpush1.bf16.msra.mxu0 %v543
        %644 = vmatprep.subr.bf16.mxu0 0
        %645 = vmatpush1.bf16.msra.mxu0 %v544
        %646 = vmatprep.subr.bf16.mxu0 0
        %647 = vmatpush1.bf16.msra.mxu0 %v545
        %648 = vmatprep.subr.bf16.mxu0 0
        %649 = vmatpush1.bf16.msra.mxu0 %v546
        %650 = vmatprep.subr.bf16.mxu0 0
        %651 = vmatpush1.bf16.msra.mxu0 %v547
        %652 = vmatprep.subr.bf16.mxu0 0
        %653 = vmatpush1.bf16.msra.mxu0 %v548
        %654 = vmatprep.subr.bf16.mxu0 0
        %655 = vmatpush1.bf16.msra.mxu0 %v549
        %656 = vmatprep.subr.bf16.mxu0 0
        %657 = vmatpush1.bf16.msra.mxu0 %v550
        %658 = vmatprep.subr.bf16.mxu0 0
        %659 = vmatpush1.bf16.msra.mxu0 %v551
        %660 = vmatprep.subr.bf16.mxu0 0
        %661 = vmatpush1.bf16.msra.mxu0 %v552
        %662 = vmatprep.subr.bf16.mxu0 0
        %663 = vmatpush1.bf16.msra.mxu0 %v553
        %664 = vmatprep.subr.bf16.mxu0 0
        %665 = vmatpush1.bf16.msra.mxu0 %v554
        %666 = vmatprep.subr.bf16.mxu0 0
        %667 = vmatpush1.bf16.msra.mxu0 %v555
        %668 = vmatprep.mubr.bf16.mxu0 %v383
        %669 = vmatmul.mubr.bf16.gmra.mrb[0].mxu0 %v382
        %v670 = vpop.f32.mrb[0].mxu0
        %v671 = vadd.f32 %v623, %v670
        %v672 = vpop.f32.mrb[0].mxu0
        %v673 = vpop.f32.mrb[0].mxu0
        %v674 = vadd.f32 %v626, %v673
        %v675 = vpop.f32.mrb[0].mxu0
        %676 = vmatprep.mubr.bf16.mxu0 %v387
        %677 = vmatmul.mubr.bf16.gmra.mrb[0].mxu0 %v386
        %v678 = vpop.f32.mrb[0].mxu0
        %v679 = vadd.f32 %v631, %v678
        %v680 = vpop.f32.mrb[0].mxu0
        %v681 = vpop.f32.mrb[0].mxu0
        %v682 = vpop.f32.mrb[0].mxu0
        %683 = vdwg.mxu0
        %v684 = vadd.f32 %v289, %v671
        %v685 = vadd.f32 %v290, %v674
        %v686 = vadd.f32 %v291, %v679
        %687 = vst [vmem:[#allocation2] sm:$0xff] %v684
        %688 = vst [vmem:[#allocation2 + $0x8] sm:$0xff] %v685
        %689 = vst [vmem:[#allocation2 + $0x10] sm:$0xff] %v686
        %p690 = scmp.eq.s32.totalorder %s21, 1
        // Predicated region
        $region60: #{_lambda_.13} parent=50 // pred_check
          %p691 = pneg %p690
        $region61: #{_lambda_.13} parent=50 // pred_check_branch
          %693 = sbr.rel (%p691) target = $region63
        $region62: #{_lambda_.13} parent=50 // pred_region
          %v694 = vld [vmem:[#allocation2] sm:$0xff]
          %v695 = vld [vmem:[#allocation2 + $0x8] sm:$0xff]
          %v696 = vld [vmem:[#allocation2 + $0x10] sm:$0xff]
          %v697 = vld [vmem:[%s2] sm:$0x1]
          %v699 = vlaneseq
          %v700 = vshrl.u32 %v699, 7
          %v701 = vsub.s32 0, %v700
          %v702 = vrot.slane %v697, %v701
          %v704 = vadd.f32 %v694, %v702
          %v705 = vadd.f32 %v695, %v702
          %v706 = vadd.f32 %v696, %v702
          %v707 = vpack.c.bf16 %v705, %v704
          %v708 = vpack.c.bf16 %v706, %v706
          %v711 = vunpack.c.l.b16 %v707
          %v712 = vunpack.c.h.b16 %v707
          %v713 = vunpack.c.l.b16 %v708
          %v714 = vpack.c.b16 %v711, %v711
          %v715 = vpack.c.b16 %v712, %v712
          %v716 = vpack.c.b16 %v713, %v713
          %720 = vst [vmem:[%s275] sm:$0xf] %v714
          %721 = vst [vmem:[%s275 + $0x4] sm:$0xf] %v715
          %722 = vst [vmem:[%s275 + $0x8] sm:$0xf] %v716
          %v723 = vadd.f32 %v704, %v705
          %v724 = vadd.f32 %v723, %v706
          %v725 = vrot.slane %v724, 4
          %v726 = vadd.f32 %v724, %v725
          %v727 = vrot.slane %v726, 2
          %v728 = vadd.f32 %v726, %v727
          %v729 = vrot.slane %v728, 1
          %v730 = vadd.f32 %v728, %v729
          %v731 = vmul.f32 %v704, %v704
          %v732 = vmul.f32 %v705, %v705
          %v733 = vmul.f32 %v706, %v706
          %v734 = vadd.f32 %v731, %v732
          %v735 = vadd.f32 %v734, %v733
          %v736 = vrot.slane %v735, 4
          %v737 = vadd.f32 %v735, %v736
          %v738 = vrot.slane %v737, 2
          %v739 = vadd.f32 %v737, %v738
          %v740 = vrot.slane %v739, 1
          %v741 = vadd.f32 %v739, %v740
          %v742 = vlaneseq
          %v743 = vshrl.u32 %v742, 7
          %vm744 = vcmp.eq.s32.totalorder %v743, 0
          %v745 = vsel %vm744, %v730, 0.0
          %vm746 = vcmp.eq.s32.totalorder %v743, 1
          %v747 = vsel %vm746, %v741, 0.0
          %v748 = vadd.f32 %v745, %v747
          %749 = vst [vmem:[%s280] sm:$0xff] %v748
        $region63: #{_lambda_.13} parent=50 // pred_fallthru
          _
        %s750 = smul.u32 3, %s20
        %p751 = scmp.lt.s32.totalorder %s750, 2
        %s752 = scalar_select %p751, %s750, 2
        %s753 = smul.addr %s752, 4
        %s754 = scalar_lea.vmem %s3, %s753
        %p755 = scmp.lt.s32.totalorder %s20, 0
        %s756 = scalar_select %p755, %s20, 0
        %s757 = smul.addr %s756, 8
        %s758 = scalar_lea.vmem %s4, %s757
        // Predicated region
        $region64: #{_lambda_.13} parent=50 // pred_check
          %p759 = pneg %p121
        $region65: #{_lambda_.13} parent=50 // pred_check_branch
          %761 = sbr.rel (%p759) target = $region67
        $region66: #{_lambda_.13} parent=50 // pred_region
          %s762 = smul.u32 3, %s20
        $region67: #{_lambda_.13} parent=50 // pred_fallthru
          _
        // Predicated region
        $region68: #{_lambda_.13} parent=50 // pred_check
          %p763 = pneg %p147
        $region69: #{_lambda_.13} parent=50 // pred_check_branch
          %765 = sbr.rel (%p763) target = $region71
        $region70: #{_lambda_.13} parent=50 // pred_region
          _
        $region71: #{_lambda_.13} parent=50 // pred_fallthru
          _
        // Predicated region
        $region72: #{_lambda_.13} parent=50 // pred_check
          %p766 = pneg %p121
        $region73: #{_lambda_.13} parent=50 // pred_check_branch
          %768 = sbr.rel (%p766) target = $region75
        $region74: #{_lambda_.13} parent=50 // pred_region
          %s769 = smul.u32 3, %s20
          %p770 = scmp.lt.s32.totalorder %s769, 2
          %s771 = scalar_select %p770, %s769, 2
          %s772 = smul.addr %s771, 4
          %s773 = scalar_lea.vmem %s3, %s772
        $region75: #{_lambda_.13} parent=50 // pred_fallthru
          _
        // Predicated region
        $region76: #{_lambda_.13} parent=50 // pred_check
          %p774 = pneg %p147
        $region77: #{_lambda_.13} parent=50 // pred_check_branch
          %776 = sbr.rel (%p774) target = $region79
        $region78: #{_lambda_.13} parent=50 // pred_region
          %p777 = scmp.lt.s32.totalorder %s20, 0
          %s778 = scalar_select %p777, %s20, 0
          %s779 = smul.addr %s778, 8
          %s780 = scalar_lea.vmem %s4, %s779
        $region79: #{_lambda_.13} parent=50 // pred_fallthru
          _
      $region51: #{_lambda_.13} parent=5 // pred_fallthru
        _
      %p781 = scmp.le.s32.totalorder 2, %s11
      // Predicated region
      $region80: #{_lambda_.13} parent=5 // pred_check
        %p782 = pneg %p781
      $region81: #{_lambda_.13} parent=5 // pred_check_branch
        %784 = sbr.rel (%p782) target = $region83
      $region82: #{_lambda_.13} parent=5 // pred_region
        %s785 = ssub.s32 %s11, 2
      $region83: #{_lambda_.13} parent=5 // pred_fallthru
        _
    $region6: #{_lambda_.13} parent=1 // loop_footer
      %s15 = sadd.s32 1, %s11
    $region7: #{_lambda_.13} parent=1 // loop_footer_branch
      %10 = sbr.rel target = $region3
    $region8: #{_lambda_.13} parent=1 // loop_exit
      _

// kernel: _lambda_.15
$region0: #{_lambda_.15}
  #allocation0 [shape = 'u32[]', space=smem, size = 0x4, offset = 0x4, fixed_abs, tag = 'smem constant byte address 0x4 - core index']
  #allocation1 [shape = 'u32[144,128]{1,0:T(1,128)}', space=vmem, size = 0x12000, scoped, tag = 'internal scratch']
  #allocation2 [shape = 'f32[8,128]{1,0:T(8,128)}', space=vmem, size = 0x1000, scoped, tag = 'scratch operand']
  %s0 = inlined_call_operand.vmem [shape: bf16[8,2048], index: 0, kind: input, shape index: {}]
  %s1 = inlined_call_operand.vmem [shape: bf16[2048,128], index: 1, kind: input, shape index: {}]
  %s2 = inlined_call_operand.vmem [shape: f32[1,128], index: 2, kind: input, shape index: {}]
  %s3 = inlined_call_operand.vmem [shape: f32[8,128], index: 3, kind: output, shape index: {0}]
  %s4 = inlined_call_operand.hbm [shape: f32[8,128], index: 4, kind: output, shape index: {1}]
  %5 = xla_tuple %s3, %s4
  %s6 = sld [smem:[#allocation0]]
  $region61: #{_lambda_.15} parent=0
    _
  %s8 = ssub.s32 1, %s6
  %s9 = scalar_select 0, %s8, %s6
  $region1: #{_lambda_.15} parent=0
    #allocation3 [shape = 'u8[4096]{0}', space=vmem, size = 0x1000, scoped, tag = 'output window, operand 1, single buffered']
    #allocation4 [shape = 's32[2]{0}', space=sflag, size = 0x8, scoped, tag = 'scoped memory for _lambda_.15']
    %10 = vsyncpa [#allocation4], 0
    loop: start=0, step=1, limit=6
    $region2: #{_lambda_.15} parent=1 // loop_pre_header
      _
    $region3: #{_lambda_.15} parent=1 // loop_header
      %s12 = sphi 0, %s16
      %p13 = scmp.ge.s32.totalorder %s12, 6
      %s19 = sphi 0, %s31
      %s20 = sphi 0, %s27
      %s21 = sphi 0, %s19
      %s22 = sphi 0, %s20
      %s23 = sphi 0, %s21
      %s24 = sphi 0, %s22
      %s36 = sphi 0, %s38
      %s39 = sphi 0, %s36
      %s40 = sphi 0, %s39
      %s56 = sphi 0, %s40
      %s62 = sphi 0, %s64
      %s65 = sphi 0, %s62
      %s66 = sphi 0, %s65
      %s82 = sphi 0, %s66
      %s86 = sphi 0, %s86
      %s88 = sphi 0, %s86
      %s89 = sphi 0, %s88
      %s103 = sphi 0, %s89
      %s109 = sphi 0, %s111
      %s112 = sphi 0, %s109
      %s113 = sphi 0, %s112
      %s129 = sphi 0, %s113
      %s135 = sphi 0, %s137
      %s138 = sphi 0, %s135
      %s139 = sphi 0, %s138
      %s155 = sphi 0, %s139
    $region4: #{_lambda_.15} parent=1 // loop_header_branch
      %15 = sbr.rel (%p13) target = $region8
    $region5: #{_lambda_.15} parent=1 // loop_body
      %s17 = ssub.s32 %s12, 1
      %s18 = ssub.s32 %s12, 2
      %s25 = sadd.s32 1, %s20
      %p26 = scmp.ge.s32.totalorder %s25, 4
      %s27 = scalar_select %p26, 0, %s25
      %s28 = sadd.s32 1, %s19
      %s29 = scalar_select %p26, %s28, %s19
      %p30 = scmp.ge.s32.totalorder %s29, 1
      %s31 = scalar_select %p30, 0, %s29
      %s32 = ssub.s32 %s19, %s31
      %s33 = ssub.s32 %s20, %s27
      %s34 = sor.u32 %s32, %s33
      %p35 = scmp.eq.s32.totalorder %s34, 0
      %s37 = sadd.s32 %s36, 1
      %s38 = scalar_select %p35, %s36, %s37
      %p41 = pneg %p35
      %p42 = scmp.eq.s32.totalorder %s12, 3
      %p43 = por %p41, %p42
      %p44 = scmp.ne.s32.totalorder %s36, %s39
      %p45 = scmp.eq.s32.totalorder %s12, 0
      %p46 = por %p44, %p45
      %p47 = scmp.ne.s32.totalorder %s36, %s39
      %p48 = scmp.eq.s32.totalorder %s17, 3
      %p49 = por %p47, %p48
      %p50 = scmp.ne.s32.totalorder %s39, %s40
      %p51 = scmp.eq.s32.totalorder %s17, 0
      %p52 = por %p50, %p51
      %p53 = scmp.ne.s32.totalorder %s39, %s40
      %p54 = scmp.eq.s32.totalorder %s18, 3
      %p55 = por %p53, %p54
      %p57 = scmp.ne.s32.totalorder %s40, %s56
      %p58 = scmp.eq.s32.totalorder %s18, 0
      %p59 = por %p57, %p58
      %s60 = ssub.s32 %s20, %s27
      %p61 = scmp.eq.s32.totalorder %s60, 0
      %s63 = sadd.s32 %s62, 1
      %s64 = scalar_select %p61, %s62, %s63
      %p67 = pneg %p61
      %p68 = scmp.eq.s32.totalorder %s12, 3
      %p69 = por %p67, %p68
      %p70 = scmp.ne.s32.totalorder %s62, %s65
      %p71 = scmp.eq.s32.totalorder %s12, 0
      %p72 = por %p70, %p71
      %p73 = scmp.ne.s32.totalorder %s62, %s65
      %p74 = scmp.eq.s32.totalorder %s17, 3
      %p75 = por %p73, %p74
      %p76 = scmp.ne.s32.totalorder %s65, %s66
      %p77 = scmp.eq.s32.totalorder %s17, 0
      %p78 = por %p76, %p77
      %p79 = scmp.ne.s32.totalorder %s65, %s66
      %p80 = scmp.eq.s32.totalorder %s18, 3
      %p81 = por %p79, %p80
      %p83 = scmp.ne.s32.totalorder %s66, %s82
      %p84 = scmp.eq.s32.totalorder %s18, 0
      %p85 = por %p83, %p84
      %s87 = sadd.s32 %s86, 1
      %p90 = scmp.eq.s32.totalorder %s12, 3
      %p91 = scmp.ne.s32.totalorder %s86, %s88
      %p92 = scmp.eq.s32.totalorder %s12, 0
      %p93 = por %p91, %p92
      %p94 = scmp.ne.s32.totalorder %s86, %s88
      %p95 = scmp.eq.s32.totalorder %s17, 3
      %p96 = por %p94, %p95
      %p97 = scmp.ne.s32.totalorder %s88, %s89
      %p98 = scmp.eq.s32.totalorder %s17, 0
      %p99 = por %p97, %p98
      %p100 = scmp.ne.s32.totalorder %s88, %s89
      %p101 = scmp.eq.s32.totalorder %s18, 3
      %p102 = por %p100, %p101
      %p104 = scmp.ne.s32.totalorder %s89, %s103
      %p105 = scmp.eq.s32.totalorder %s18, 0
      %p106 = por %p104, %p105
      %s107 = ssub.s32 %s19, %s31
      %p108 = scmp.eq.s32.totalorder %s107, 0
      %s110 = sadd.s32 %s109, 1
      %s111 = scalar_select %p108, %s109, %s110
      %p114 = pneg %p108
      %p115 = scmp.eq.s32.totalorder %s12, 3
      %p116 = por %p114, %p115
      %p117 = scmp.ne.s32.totalorder %s109, %s112
      %p118 = scmp.eq.s32.totalorder %s12, 0
      %p119 = por %p117, %p118
      %p120 = scmp.ne.s32.totalorder %s109, %s112
      %p121 = scmp.eq.s32.totalorder %s17, 3
      %p122 = por %p120, %p121
      %p123 = scmp.ne.s32.totalorder %s112, %s113
      %p124 = scmp.eq.s32.totalorder %s17, 0
      %p125 = por %p123, %p124
      %p126 = scmp.ne.s32.totalorder %s112, %s113
      %p127 = scmp.eq.s32.totalorder %s18, 3
      %p128 = por %p126, %p127
      %p130 = scmp.ne.s32.totalorder %s113, %s129
      %p131 = scmp.eq.s32.totalorder %s18, 0
      %p132 = por %p130, %p131
      %s133 = ssub.s32 %s19, %s31
      %p134 = scmp.eq.s32.totalorder %s133, 0
      %s136 = sadd.s32 %s135, 1
      %s137 = scalar_select %p134, %s135, %s136
      %p140 = pneg %p134
      %p141 = scmp.eq.s32.totalorder %s12, 3
      %p142 = por %p140, %p141
      %p143 = scmp.ne.s32.totalorder %s135, %s138
      %p144 = scmp.eq.s32.totalorder %s12, 0
      %p145 = por %p143, %p144
      %p146 = scmp.ne.s32.totalorder %s135, %s138
      %p147 = scmp.eq.s32.totalorder %s17, 3
      %p148 = por %p146, %p147
      %p149 = scmp.ne.s32.totalorder %s138, %s139
      %p150 = scmp.eq.s32.totalorder %s17, 0
      %p151 = por %p149, %p150
      %p152 = scmp.ne.s32.totalorder %s138, %s139
      %p153 = scmp.eq.s32.totalorder %s18, 3
      %p154 = por %p152, %p153
      %p156 = scmp.ne.s32.totalorder %s139, %s155
      %p157 = scmp.eq.s32.totalorder %s18, 0
      %p158 = por %p156, %p157
      %p159 = scmp.le.s32.totalorder 1, %s12
      %p160 = scmp.lt.s32.totalorder %s12, 5
      %p161 = pnand %p159, %p160
      %p162 = pneg %p161
      // Predicated region
      $region9: #{_lambda_.15} parent=5 // pred_check
        _
      $region10: #{_lambda_.15} parent=5 // pred_check_branch
        %164 = sbr.rel (%p161) target = $region12
      $region11: #{_lambda_.15} parent=5 // pred_region
        %s165 = ssub.s32 %s12, 1
        // Predicated region
        $region13: #{_lambda_.15} parent=11 // pred_check
          %p166 = pneg %p99
        $region14: #{_lambda_.15} parent=11 // pred_check_branch
          %168 = sbr.rel (%p166) target = $region16
        $region15: #{_lambda_.15} parent=11 // pred_region
          _
        $region16: #{_lambda_.15} parent=11 // pred_fallthru
          _
      $region12: #{_lambda_.15} parent=5 // pred_fallthru
        _
      %p169 = scmp.lt.s32.totalorder %s12, 4
      // Predicated region
      $region17: #{_lambda_.15} parent=5 // pred_check
        %p170 = pneg %p169
      $region18: #{_lambda_.15} parent=5 // pred_check_branch
        %172 = sbr.rel (%p170) target = $region20
      $region19: #{_lambda_.15} parent=5 // pred_region
        // Predicated region
        $region21: #{_lambda_.15} parent=19 // pred_check
          %p173 = pneg %p46
        $region22: #{_lambda_.15} parent=19 // pred_check_branch
          %175 = sbr.rel (%p173) target = $region24
        $region23: #{_lambda_.15} parent=19 // pred_region
          %s176 = smul.u32 4, %s20
          %p177 = scmp.lt.s32.totalorder %s19, 0
          %s178 = scalar_select %p177, %s19, 0
          %p179 = scmp.lt.s32.totalorder %s176, 15
          %s180 = scalar_select %p179, %s176, 15
          %s181 = smul.addr %s178, 16
          %s182 = sadd.s32 %s180, %s181
          %s183 = smul.addr %s182, 4
          %s184 = scalar_lea.vmem %s0, %s183
          %s185 = smul.u32 4, %s20
        $region24: #{_lambda_.15} parent=19 // pred_fallthru
          _
        // Predicated region
        $region25: #{_lambda_.15} parent=19 // pred_check
          %p186 = pneg %p72
        $region26: #{_lambda_.15} parent=19 // pred_check_branch
          %188 = sbr.rel (%p186) target = $region28
        $region27: #{_lambda_.15} parent=19 // pred_region
          %s189 = smul.u32 64, %s20
          %p190 = scmp.lt.s32.totalorder %s189, 255
          %s191 = scalar_select %p190, %s189, 255
          %s192 = smul.addr %s191, 4
          %s193 = scalar_lea.vmem %s1, %s192
          %s194 = smul.u32 64, %s20
        $region28: #{_lambda_.15} parent=19 // pred_fallthru
          _
      $region20: #{_lambda_.15} parent=5 // pred_fallthru
        _
      %p195 = scmp.le.s32.totalorder 1, %s12
      %p196 = scmp.lt.s32.totalorder %s12, 5
      %p197 = pnand %p195, %p196
      %p198 = pneg %p197
      // Predicated region
      $region29: #{_lambda_.15} parent=5 // pred_check
        _
      $region30: #{_lambda_.15} parent=5 // pred_check_branch
        %200 = sbr.rel (%p197) target = $region32
      $region31: #{_lambda_.15} parent=5 // pred_region
        %s201 = ssub.s32 %s12, 1
        %s202 = smul.u32 4, %s22
        %p203 = scmp.lt.s32.totalorder %s21, 0
        %s204 = scalar_select %p203, %s21, 0
        %p205 = scmp.lt.s32.totalorder %s202, 15
        %s206 = scalar_select %p205, %s202, 15
        %s207 = smul.addr %s204, 16
        %s208 = sadd.s32 %s206, %s207
        %s209 = smul.addr %s208, 4
        %s210 = scalar_lea.vmem %s0, %s209
        %p211 = pneg %p52
        %p212 = pneg %p49
        %s213 = smul.u32 64, %s22
        %p214 = scmp.lt.s32.totalorder %s213, 255
        %s215 = scalar_select %p214, %s213, 255
        %s216 = smul.addr %s215, 4
        %s217 = scalar_lea.vmem %s1, %s216
        %p218 = pneg %p78
        %p219 = pneg %p75
        %p220 = pneg %p99
        %p221 = pneg %p96
        %p222 = pneg %p125
        %p223 = pneg %p122
        %p224 = scmp.lt.s32.totalorder %s21, 0
        %s225 = scalar_select %p224, %s21, 0
        %s226 = smul.addr %s225, 8
        %s227 = scalar_lea.vmem %s3, %s226
        %p228 = pneg %p151
        %p229 = pneg %p148
        %s230 = smul.u32 4, %s22
        %p231 = scmp.lt.s32.totalorder %s21, 0
        %s232 = scalar_select %p231, %s21, 0
        %p233 = scmp.lt.s32.totalorder %s230, 15
        %s234 = scalar_select %p233, %s230, 15
        %s235 = smul.addr %s232, 16
        %s236 = sadd.s32 %s234, %s235
        %s237 = smul.addr %s236, 4
        %s238 = scalar_lea.vmem %s0, %s237
        %s239 = smul.u32 4, %s22
        %s240 = smul.u32 64, %s22
        %p241 = scmp.lt.s32.totalorder %s240, 255
        %s242 = scalar_select %p241, %s240, 255
        %s243 = smul.addr %s242, 4
        %s244 = scalar_lea.vmem %s1, %s243
        %s245 = smul.u32 64, %s22
        %p246 = scmp.lt.s32.totalorder %s21, 0
        %s247 = scalar_select %p246, %s21, 0
        %s248 = smul.addr %s247, 8
        %s249 = scalar_lea.vmem %s3, %s248
        %p251 = scmp.eq.s32.totalorder %s22, 0
        // Predicated region
        $region33: #{_lambda_.15} parent=31 // pred_check
          %p252 = pneg %p251
        $region34: #{_lambda_.15} parent=31 // pred_check_branch
          %254 = sbr.rel (%p252) target = $region36
        $region35: #{_lambda_.15} parent=31 // pred_region
          %255 = vst [vmem:[#allocation2] sm:$0xff] 0.0
        $region36: #{_lambda_.15} parent=31 // pred_fallthru
          _
        %v256 = vld [vmem:[#allocation2] sm:$0xff]
        %v257 = vld [vmem:[%s238] sm:$0xff]
        %v258 = vld [vmem:[%s238 + $0x8] sm:$0xff]
        %v259 = vld [vmem:[%s244] sm:$0xf]
        %v260 = vld [vmem:[%s244 + $0x4] sm:$0xf]
        %v261 = vld [vmem:[%s244 + $0x8] sm:$0xf]
        %v262 = vld [vmem:[%s244 + $0xc] sm:$0xf]
        %v263 = vld [vmem:[%s244 + $0x10] sm:$0xf]
        %v264 = vld [vmem:[%s244 + $0x14] sm:$0xf]
        %v265 = vld [vmem:[%s244 + $0x18] sm:$0xf]
        %v266 = vld [vmem:[%s244 + $0x1c] sm:$0xf]
        %v267 = vld [vmem:[%s244 + $0x20] sm:$0xf]
        %v268 = vld [vmem:[%s244 + $0x24] sm:$0xf]
        %v269 = vld [vmem:[%s244 + $0x28] sm:$0xf]
        %v270 = vld [vmem:[%s244 + $0x2c] sm:$0xf]
        %v271 = vld [vmem:[%s244 + $0x30] sm:$0xf]
        %v272 = vld [vmem:[%s244 + $0x34] sm:$0xf]
        %v273 = vld [vmem:[%s244 + $0x38] sm:$0xf]
        %v274 = vld [vmem:[%s244 + $0x3c] sm:$0xf]
        %v275 = vld [vmem:[%s244 + $0x40] sm:$0xf]
        %v276 = vld [vmem:[%s244 + $0x44] sm:$0xf]
        %v277 = vld [vmem:[%s244 + $0x48] sm:$0xf]
        %v278 = vld [vmem:[%s244 + $0x4c] sm:$0xf]
        %v279 = vld [vmem:[%s244 + $0x50] sm:$0xf]
        %v280 = vld [vmem:[%s244 + $0x54] sm:$0xf]
        %v281 = vld [vmem:[%s244 + $0x58] sm:$0xf]
        %v282 = vld [vmem:[%s244 + $0x5c] sm:$0xf]
        %v283 = vld [vmem:[%s244 + $0x60] sm:$0xf]
        %v284 = vld [vmem:[%s244 + $0x64] sm:$0xf]
        %v285 = vld [vmem:[%s244 + $0x68] sm:$0xf]
        %v286 = vld [vmem:[%s244 + $0x6c] sm:$0xf]
        %v287 = vld [vmem:[%s244 + $0x70] sm:$0xf]
        %v288 = vld [vmem:[%s244 + $0x74] sm:$0xf]
        %v289 = vld [vmem:[%s244 + $0x78] sm:$0xf]
        %v290 = vld [vmem:[%s244 + $0x7c] sm:$0xf]
        %v291 = vld [vmem:[%s244 + $0x80] sm:$0xf]
        %v292 = vld [vmem:[%s244 + $0x84] sm:$0xf]
        %v293 = vld [vmem:[%s244 + $0x88] sm:$0xf]
        %v294 = vld [vmem:[%s244 + $0x8c] sm:$0xf]
        %v295 = vld [vmem:[%s244 + $0x90] sm:$0xf]
        %v296 = vld [vmem:[%s244 + $0x94] sm:$0xf]
        %v297 = vld [vmem:[%s244 + $0x98] sm:$0xf]
        %v298 = vld [vmem:[%s244 + $0x9c] sm:$0xf]
        %v299 = vld [vmem:[%s244 + $0xa0] sm:$0xf]
        %v300 = vld [vmem:[%s244 + $0xa4] sm:$0xf]
        %v301 = vld [vmem:[%s244 + $0xa8] sm:$0xf]
        %v302 = vld [vmem:[%s244 + $0xac] sm:$0xf]
        %v303 = vld [vmem:[%s244 + $0xb0] sm:$0xf]
        %v304 = vld [vmem:[%s244 + $0xb4] sm:$0xf]
        %v305 = vld [vmem:[%s244 + $0xb8] sm:$0xf]
        %v306 = vld [vmem:[%s244 + $0xbc] sm:$0xf]
        %v307 = vld [vmem:[%s244 + $0xc0] sm:$0xf]
        %v308 = vld [vmem:[%s244 + $0xc4] sm:$0xf]
        %v309 = vld [vmem:[%s244 + $0xc8] sm:$0xf]
        %v310 = vld [vmem:[%s244 + $0xcc] sm:$0xf]
        %v311 = vld [vmem:[%s244 + $0xd0] sm:$0xf]
        %v312 = vld [vmem:[%s244 + $0xd4] sm:$0xf]
        %v313 = vld [vmem:[%s244 + $0xd8] sm:$0xf]
        %v314 = vld [vmem:[%s244 + $0xdc] sm:$0xf]
        %v315 = vld [vmem:[%s244 + $0xe0] sm:$0xf]
        %v316 = vld [vmem:[%s244 + $0xe4] sm:$0xf]
        %v317 = vld [vmem:[%s244 + $0xe8] sm:$0xf]
        %v318 = vld [vmem:[%s244 + $0xec] sm:$0xf]
        %v319 = vld [vmem:[%s244 + $0xf0] sm:$0xf]
        %v320 = vld [vmem:[%s244 + $0xf4] sm:$0xf]
        %v321 = vld [vmem:[%s244 + $0xf8] sm:$0xf]
        %v322 = vld [vmem:[%s244 + $0xfc] sm:$0xf]
        %v325 = vunpack.c.l.b16 %v257
        %v326 = vunpack.c.h.b16 %v257
        %v327 = vunpack.c.l.b16 %v258
        %v328 = vunpack.c.h.b16 %v258
        %v329 = vpack.c.b16 %v325, %v325
        %v330 = vpack.c.b16 %v326, %v326
        %v331 = vpack.c.b16 %v327, %v327
        %v332 = vpack.c.b16 %v328, %v328
        %v401 = vunpack.c.l.b16 %v259
        %v402 = vunpack.c.l.b16 %v260
        %v403 = vunpack.c.l.b16 %v261
        %v404 = vunpack.c.l.b16 %v262
        %v405 = vunpack.c.l.b16 %v263
        %v406 = vunpack.c.l.b16 %v264
        %v407 = vunpack.c.l.b16 %v265
        %v408 = vunpack.c.l.b16 %v266
        %v409 = vunpack.c.l.b16 %v267
        %v410 = vunpack.c.l.b16 %v268
        %v411 = vunpack.c.l.b16 %v269
        %v412 = vunpack.c.l.b16 %v270
        %v413 = vunpack.c.l.b16 %v271
        %v414 = vunpack.c.l.b16 %v272
        %v415 = vunpack.c.l.b16 %v273
        %v416 = vunpack.c.l.b16 %v274
        %v417 = vunpack.c.l.b16 %v275
        %v418 = vunpack.c.l.b16 %v276
        %v419 = vunpack.c.l.b16 %v277
        %v420 = vunpack.c.l.b16 %v278
        %v421 = vunpack.c.l.b16 %v279
        %v422 = vunpack.c.l.b16 %v280
        %v423 = vunpack.c.l.b16 %v281
        %v424 = vunpack.c.l.b16 %v282
        %v425 = vunpack.c.l.b16 %v283
        %v426 = vunpack.c.l.b16 %v284
        %v427 = vunpack.c.l.b16 %v285
        %v428 = vunpack.c.l.b16 %v286
        %v429 = vunpack.c.l.b16 %v287
        %v430 = vunpack.c.l.b16 %v288
        %v431 = vunpack.c.l.b16 %v289
        %v432 = vunpack.c.l.b16 %v290
        %v433 = vunpack.c.l.b16 %v291
        %v434 = vunpack.c.l.b16 %v292
        %v435 = vunpack.c.l.b16 %v293
        %v436 = vunpack.c.l.b16 %v294
        %v437 = vunpack.c.l.b16 %v295
        %v438 = vunpack.c.l.b16 %v296
        %v439 = vunpack.c.l.b16 %v297
        %v440 = vunpack.c.l.b16 %v298
        %v441 = vunpack.c.l.b16 %v299
        %v442 = vunpack.c.l.b16 %v300
        %v443 = vunpack.c.l.b16 %v301
        %v444 = vunpack.c.l.b16 %v302
        %v445 = vunpack.c.l.b16 %v303
        %v446 = vunpack.c.l.b16 %v304
        %v447 = vunpack.c.l.b16 %v305
        %v448 = vunpack.c.l.b16 %v306
        %v449 = vunpack.c.l.b16 %v307
        %v450 = vunpack.c.l.b16 %v308
        %v451 = vunpack.c.l.b16 %v309
        %v452 = vunpack.c.l.b16 %v310
        %v453 = vunpack.c.l.b16 %v311
        %v454 = vunpack.c.l.b16 %v312
        %v455 = vunpack.c.l.b16 %v313
        %v456 = vunpack.c.l.b16 %v314
        %v457 = vunpack.c.l.b16 %v315
        %v458 = vunpack.c.l.b16 %v316
        %v459 = vunpack.c.l.b16 %v317
        %v460 = vunpack.c.l.b16 %v318
        %v461 = vunpack.c.l.b16 %v319
        %v462 = vunpack.c.l.b16 %v320
        %v463 = vunpack.c.l.b16 %v321
        %v464 = vunpack.c.l.b16 %v322
        %v465 = vpack.c.b16 %v402, %v401
        %v466 = vpack.c.b16 %v404, %v403
        %v467 = vpack.c.b16 %v406, %v405
        %v468 = vpack.c.b16 %v408, %v407
        %v469 = vpack.c.b16 %v410, %v409
        %v470 = vpack.c.b16 %v412, %v411
        %v471 = vpack.c.b16 %v414, %v413
        %v472 = vpack.c.b16 %v416, %v415
        %v473 = vpack.c.b16 %v418, %v417
        %v474 = vpack.c.b16 %v420, %v419
        %v475 = vpack.c.b16 %v422, %v421
        %v476 = vpack.c.b16 %v424, %v423
        %v477 = vpack.c.b16 %v426, %v425
        %v478 = vpack.c.b16 %v428, %v427
        %v479 = vpack.c.b16 %v430, %v429
        %v480 = vpack.c.b16 %v432, %v431
        %v481 = vpack.c.b16 %v434, %v433
        %v482 = vpack.c.b16 %v436, %v435
        %v483 = vpack.c.b16 %v438, %v437
        %v484 = vpack.c.b16 %v440, %v439
        %v485 = vpack.c.b16 %v442, %v441
        %v486 = vpack.c.b16 %v444, %v443
        %v487 = vpack.c.b16 %v446, %v445
        %v488 = vpack.c.b16 %v448, %v447
        %v489 = vpack.c.b16 %v450, %v449
        %v490 = vpack.c.b16 %v452, %v451
        %v491 = vpack.c.b16 %v454, %v453
        %v492 = vpack.c.b16 %v456, %v455
        %v493 = vpack.c.b16 %v458, %v457
        %v494 = vpack.c.b16 %v460, %v459
        %v495 = vpack.c.b16 %v462, %v461
        %v496 = vpack.c.b16 %v464, %v463
        %529 = vmatprep.subr.bf16.mxu0 0
        %530 = vmatpush1.bf16.msra.mxu0 %v465
        %531 = vmatprep.subr.bf16.mxu0 0
        %532 = vmatpush1.bf16.msra.mxu0 %v466
        %533 = vmatprep.subr.bf16.mxu0 0
        %534 = vmatpush1.bf16.msra.mxu0 %v467
        %535 = vmatprep.subr.bf16.mxu0 0
        %536 = vmatpush1.bf16.msra.mxu0 %v468
        %537 = vmatprep.subr.bf16.mxu0 0
        %538 = vmatpush1.bf16.msra.mxu0 %v469
        %539 = vmatprep.subr.bf16.mxu0 0
        %540 = vmatpush1.bf16.msra.mxu0 %v470
        %541 = vmatprep.subr.bf16.mxu0 0
        %542 = vmatpush1.bf16.msra.mxu0 %v471
        %543 = vmatprep.subr.bf16.mxu0 0
        %544 = vmatpush1.bf16.msra.mxu0 %v472
        %545 = vmatprep.subr.bf16.mxu0 0
        %546 = vmatpush1.bf16.msra.mxu0 %v473
        %547 = vmatprep.subr.bf16.mxu0 0
        %548 = vmatpush1.bf16.msra.mxu0 %v474
        %549 = vmatprep.subr.bf16.mxu0 0
        %550 = vmatpush1.bf16.msra.mxu0 %v475
        %551 = vmatprep.subr.bf16.mxu0 0
        %552 = vmatpush1.bf16.msra.mxu0 %v476
        %553 = vmatprep.subr.bf16.mxu0 0
        %554 = vmatpush1.bf16.msra.mxu0 %v477
        %555 = vmatprep.subr.bf16.mxu0 0
        %556 = vmatpush1.bf16.msra.mxu0 %v478
        %557 = vmatprep.subr.bf16.mxu0 0
        %558 = vmatpush1.bf16.msra.mxu0 %v479
        %559 = vmatprep.subr.bf16.mxu0 0
        %560 = vmatpush1.bf16.msra.mxu0 %v480
        %561 = vmatprep.mubr.bf16.mxu0 %v330
        %562 = vmatmul.mubr.bf16.gmra.mrb[0].mxu0 %v329
        %v563 = vpop.f32.mrb[0].mxu0
        %v564 = vadd.f32 0.0, %v563
        %v565 = vpop.f32.mrb[0].mxu0
        %v566 = vpop.f32.mrb[0].mxu0
        %v567 = vpop.f32.mrb[0].mxu0
        %568 = vdwg.mxu0
        %569 = vmatprep.subr.bf16.mxu0 0
        %570 = vmatpush1.bf16.msra.mxu0 %v481
        %571 = vmatprep.subr.bf16.mxu0 0
        %572 = vmatpush1.bf16.msra.mxu0 %v482
        %573 = vmatprep.subr.bf16.mxu0 0
        %574 = vmatpush1.bf16.msra.mxu0 %v483
        %575 = vmatprep.subr.bf16.mxu0 0
        %576 = vmatpush1.bf16.msra.mxu0 %v484
        %577 = vmatprep.subr.bf16.mxu0 0
        %578 = vmatpush1.bf16.msra.mxu0 %v485
        %579 = vmatprep.subr.bf16.mxu0 0
        %580 = vmatpush1.bf16.msra.mxu0 %v486
        %581 = vmatprep.subr.bf16.mxu0 0
        %582 = vmatpush1.bf16.msra.mxu0 %v487
        %583 = vmatprep.subr.bf16.mxu0 0
        %584 = vmatpush1.bf16.msra.mxu0 %v488
        %585 = vmatprep.subr.bf16.mxu0 0
        %586 = vmatpush1.bf16.msra.mxu0 %v489
        %587 = vmatprep.subr.bf16.mxu0 0
        %588 = vmatpush1.bf16.msra.mxu0 %v490
        %589 = vmatprep.subr.bf16.mxu0 0
        %590 = vmatpush1.bf16.msra.mxu0 %v491
        %591 = vmatprep.subr.bf16.mxu0 0
        %592 = vmatpush1.bf16.msra.mxu0 %v492
        %593 = vmatprep.subr.bf16.mxu0 0
        %594 = vmatpush1.bf16.msra.mxu0 %v493
        %595 = vmatprep.subr.bf16.mxu0 0
        %596 = vmatpush1.bf16.msra.mxu0 %v494
        %597 = vmatprep.subr.bf16.mxu0 0
        %598 = vmatpush1.bf16.msra.mxu0 %v495
        %599 = vmatprep.subr.bf16.mxu0 0
        %600 = vmatpush1.bf16.msra.mxu0 %v496
        %601 = vmatprep.mubr.bf16.mxu0 %v332
        %602 = vmatmul.mubr.bf16.gmra.mrb[0].mxu0 %v331
        %v603 = vpop.f32.mrb[0].mxu0
        %v604 = vadd.f32 %v564, %v603
        %v605 = vpop.f32.mrb[0].mxu0
        %v606 = vpop.f32.mrb[0].mxu0
        %v607 = vpop.f32.mrb[0].mxu0
        %608 = vdwg.mxu0
        %v609 = vadd.f32 %v256, %v604
        %610 = vst [vmem:[#allocation2] sm:$0xff] %v609
        %p611 = scmp.eq.s32.totalorder %s22, 3
        // Predicated region
        $region37: #{_lambda_.15} parent=31 // pred_check
          %p612 = pneg %p611
        $region38: #{_lambda_.15} parent=31 // pred_check_branch
          %614 = sbr.rel (%p612) target = $region40
        $region39: #{_lambda_.15} parent=31 // pred_region
          %v615 = vld [vmem:[#allocation2] sm:$0xff]
          %v616 = vld [vmem:[%s2] sm:$0x1]
          %v618 = vlaneseq
          %v619 = vshrl.u32 %v618, 7
          %v620 = vsub.s32 0, %v619
          %v621 = vrot.slane %v616, %v620
          %v623 = vadd.f32 %v615, %v621
          %624 = vst [vmem:[%s249] sm:$0xff] %v623
          %v625 = vrot.slane %v623, 4
          %v626 = vadd.f32 %v623, %v625
          %v627 = vrot.slane %v626, 2
          %v628 = vadd.f32 %v626, %v627
          %v629 = vrot.slane %v628, 1
          %v630 = vadd.f32 %v628, %v629
          %v631 = vmul.f32 %v623, %v623
          %v632 = vrot.slane %v631, 4
          %v633 = vadd.f32 %v631, %v632
          %v634 = vrot.slane %v633, 2
          %v635 = vadd.f32 %v633, %v634
          %v636 = vrot.slane %v635, 1
          %v637 = vadd.f32 %v635, %v636
          %v638 = vlaneseq
          %v639 = vshrl.u32 %v638, 7
          %vm640 = vcmp.eq.s32.totalorder %v639, 0
          %v641 = vsel %vm640, %v630, 0.0
          %vm642 = vcmp.eq.s32.totalorder %v639, 1
          %v643 = vsel %vm642, %v637, 0.0
          %v644 = vadd.f32 %v641, %v643
          %645 = vst [vmem:[#allocation3] sm:$0xff] %v644
        $region40: #{_lambda_.15} parent=31 // pred_fallthru
          _
        %p646 = scmp.lt.s32.totalorder %s21, 0
        %s647 = scalar_select %p646, %s21, 0
        %s648 = smul.addr %s647, 8
        %s649 = scalar_lea.vmem %s3, %s648
        // Predicated region
        $region41: #{_lambda_.15} parent=31 // pred_check
          %p650 = pneg %p122
        $region42: #{_lambda_.15} parent=31 // pred_check_branch
          %652 = sbr.rel (%p650) target = $region44
        $region43: #{_lambda_.15} parent=31 // pred_region
          _
        $region44: #{_lambda_.15} parent=31 // pred_fallthru
          _
        // Predicated region
        $region45: #{_lambda_.15} parent=31 // pred_check
          %p653 = pneg %p148
        $region46: #{_lambda_.15} parent=31 // pred_check_branch
          %655 = sbr.rel (%p653) target = $region48
        $region47: #{_lambda_.15} parent=31 // pred_region
          %s657 = ssub.s32 128, 128
          %658 = vsyncadd [#allocation4], %s657
          %s659 = smul.addr %s21, 128
          %s660 = scalar_lea.hbm %s4, %s659
          %s662 = sshll.u32 [#allocation3], 4
          %s663 = int_to_ptr.vmem [resolvable:$true] %s662
          %665 = dma.vmem_to_hbm [thread:$0]  %s663, 128, %s660, [#allocation4]
        $region48: #{_lambda_.15} parent=31 // pred_fallthru
          _
        // Predicated region
        $region49: #{_lambda_.15} parent=31 // pred_check
          %p666 = pneg %p122
        $region50: #{_lambda_.15} parent=31 // pred_check_branch
          %668 = sbr.rel (%p666) target = $region52
        $region51: #{_lambda_.15} parent=31 // pred_region
          %p669 = scmp.lt.s32.totalorder %s21, 0
          %s670 = scalar_select %p669, %s21, 0
          %s671 = smul.addr %s670, 8
          %s672 = scalar_lea.vmem %s3, %s671
        $region52: #{_lambda_.15} parent=31 // pred_fallthru
          _
        // Predicated region
        $region53: #{_lambda_.15} parent=31 // pred_check
          %p673 = pneg %p148
        $region54: #{_lambda_.15} parent=31 // pred_check_branch
          %675 = sbr.rel (%p673) target = $region56
        $region55: #{_lambda_.15} parent=31 // pred_region
          %676 = dma.done [#allocation4], 128
        $region56: #{_lambda_.15} parent=31 // pred_fallthru
          _
      $region32: #{_lambda_.15} parent=5 // pred_fallthru
        _
      %p677 = scmp.le.s32.totalorder 2, %s12
      // Predicated region
      $region57: #{_lambda_.15} parent=5 // pred_check
        %p678 = pneg %p677
      $region58: #{_lambda_.15} parent=5 // pred_check_branch
        %680 = sbr.rel (%p678) target = $region60
      $region59: #{_lambda_.15} parent=5 // pred_region
        %s681 = ssub.s32 %s12, 2
      $region60: #{_lambda_.15} parent=5 // pred_fallthru
        _
    $region6: #{_lambda_.15} parent=1 // loop_footer
      %s16 = sadd.s32 1, %s12
    $region7: #{_lambda_.15} parent=1 // loop_footer_branch
      %11 = sbr.rel target = $region3
    $region8: #{_lambda_.15} parent=1 // loop_exit
      _
    %682 = vsyncpa [#allocation4], 1
    %s683 = scalar_lea.sflag [#allocation4], 1
    %684 = vsyncpa %s683, 1

</llo_original>
